<compile_context>
chip_gen: v7x
topology: tpu7x:2x2x1
jax: 0.10.0
libtpu: 0.0.40
codegen_flags: <defaults>
</compile_context>

<pallas_src>
import math

import jax
import jax.numpy as jnp
from jax.experimental import pallas as pl
from jax.experimental.pallas import tpu as pltpu

NUM_BUCKETS = 32
MAX_DISTANCE = 128
HEADS = 8
SCALE = 0.125  # e.g. dim_head ** -0.5 with dim_head = 64


def _bucket_thresholds(num_buckets: int, max_distance: int) -> list:
    """Integer thresholds t_k (k = 1 .. num_buckets//2 - 1) such that, for
    n >= max_exact, the T5 'large' bucket equals max_exact + #{k : n >= t_k}.
    Computed on the host in double precision; replaces per-element log/divide
    with int32 compares inside the kernel."""
    max_exact = num_buckets // 2
    num_large = num_buckets - max_exact
    log_denom = math.log(max_distance / max_exact)

    def large_bucket(n: int) -> int:
        return max_exact + int(math.log(n / max_exact) / log_denom * num_large)

    thresholds = []
    for k in range(1, num_large):
        t = max(max_exact + 1,
                math.ceil(max_exact * (max_distance / max_exact) ** (k / num_large)))
        while t > max_exact + 1 and large_bucket(t - 1) >= max_exact + k:
            t -= 1
        while large_bucket(t) < max_exact + k:
            t += 1
        thresholds.append(int(t))
    return thresholds


def _pick_tile(extent: int, target: int, quantum: int) -> int:
    """Largest divisor of `extent` that is <= target, preferring multiples of
    `quantum` (8 for sublane dims, 128 for the lane dim).  Returns `extent`
    when it already fits.  Replaces the old 'fall back to full axis' behaviour
    that could exceed the VMEM limit for large non-divisible shapes."""
    if extent <= target:
        return extent
    best_any = 1
    for t in range(target, 0, -1):
        if extent % t == 0:
            if t % quantum == 0:
                return t
            if best_any == 1:
                best_any = t
    return best_any


def _make_kernel(*, heads, num_buckets, max_exact, thresholds,
                 tile_i, tile_j, chunk_rows):
    n_chunks = tile_i // chunk_rows

    def kernel(emb_t_ref, qk_ref, out_ref, bias_ref):
        # program_id reads live at the TOP LEVEL of the kernel (never inside
        # pl.when): cond-branch jaxprs don't see the grid env, which broke
        # interpret mode and is also the cleanest Mosaic scalar path.
        i0 = pl.program_id(0) * tile_i
        j0 = pl.program_id(1) * tile_j
        b = pl.program_id(2)

        # Cold path: build the batch-invariant bias once per (i,j) tile into
        # VMEM scratch (batch is the innermost, sequential/"arbitrary" axis),
        # chunked over rows so the one-hot temporaries stay ~1 MiB.
        @pl.when(b == 0)
        def _build_bias():
            table = emb_t_ref[...]  # (H, NB) f32, scale already folded in

            def one_chunk(c, carry):
                row0 = c * chunk_rows
                ii = (i0 + row0) + jax.lax.broadcasted_iota(
                    jnp.int32, (chunk_rows, tile_j), 0)
                jj = j0 + jax.lax.broadcasted_iota(
                    jnp.int32, (chunk_rows, tile_j), 1)
                # rel = j - i ; n = max(-rel, 0) = max(i - j, 0)
                n = jnp.maximum(ii - jj, 0)

                # Causal T5 bucket in integer-threshold form (VPU compares
                # only; no EUP log, no fp divide, no dtype converts).
                large = jnp.full(n.shape, max_exact, dtype=jnp.int32)
                for t in thresholds:
                    large = large + (n >= t).astype(jnp.int32)
                bucket = jnp.where(n < max_exact, n, large)  # (chunk_rows, tJ)

                # Embedding gather as a one-hot matmul on the MXU, bounded to
                # this chunk; result goes straight into a slice of bias_ref.
                cols = chunk_rows * tile_j
                onehot = (bucket.reshape(1, cols)
                          == jax.lax.broadcasted_iota(
                              jnp.int32, (num_buckets, cols), 0)
                          ).astype(jnp.float32)                      # (NB, cols)
                chunk_bias = jnp.dot(table, onehot,
                                     preferred_element_type=jnp.float32)  # (H, cols)
                bias_ref[:, pl.ds(row0, chunk_rows), :] = (
                    chunk_bias.reshape(heads, chunk_rows, tile_j)
                    .astype(bias_ref.dtype))
                return carry

            jax.lax.fori_loop(0, n_chunks, one_chunk, 0)

        # Hot path: pure read-add-write (bias dtype matches qk for f32/bf16,
        # so there is no cast round-trip).
        out_ref[...] = (qk_ref[...] + bias_ref[...][None]).astype(out_ref.dtype)

    return kernel


def t5_relative_position_bias(qk_dots, emb, scale=SCALE, *,
                              num_buckets=NUM_BUCKETS, max_distance=MAX_DISTANCE,
                              block_i=128, block_j=1024,
                              vmem_limit_bytes=48 * 1024 * 1024):
    """qk_dots: (B, H, I, J); emb: (num_buckets, H)."""
    B, H, I, J = qk_dots.shape
    NB = emb.shape[0]
    assert emb.shape == (NB, H)
    assert NB == num_buckets

    # Fold the scalar `scale` into the tiny (H, NB) table once (NB*H muls)
    # so the per-element epilogue is a single add.
    emb_t = emb.astype(jnp.float32).T * jnp.float32(scale)  # (H, NB)

    # Lane-dense tiling: grow tJ (multiple of 128) before tI (multiple of 8);
    # both are divisors of the axis so there are no ragged / masked blocks.
    # Defaults keep total VMEM ~22 MiB (fits v7x's 64 MiB physical with
    # headroom); on v6e (128 MiB) block_j=2048, block_i=256,
    # vmem_limit_bytes=96 MiB are worthwhile.
    tJ = _pick_tile(J, block_j, 128)
    tI = _pick_tile(I, block_i, 8)

    # Cold-path chunk: keep the one-hot at roughly <= (NB, 8192) f32 (~1 MiB)
    # regardless of tile size; chunk_rows divides tI and prefers multiples of 8.
    chunk_rows = _pick_tile(tI, max(8, 8192 // max(tJ, 1)), 8)

    # bf16-native hot path on v6e/v7x when qk is bf16 (halves the bias scratch);
    # otherwise f32.
    if qk_dots.dtype in (jnp.dtype(jnp.bfloat16), jnp.dtype(jnp.float32)):
        bias_dtype = qk_dots.dtype
    else:
        bias_dtype = jnp.float32

    kernel = _make_kernel(
        heads=H, num_buckets=NB, max_exact=num_buckets // 2,
        thresholds=_bucket_thresholds(num_buckets, max_distance),
        tile_i=tI, tile_j=tJ, chunk_rows=chunk_rows)

    grid = (I // tI, J // tJ, B)

    return pl.pallas_call(
        kernel,
        out_shape=jax.ShapeDtypeStruct(qk_dots.shape, qk_dots.dtype),
        grid_spec=pltpu.PrefetchScalarGridSpec(
            num_scalar_prefetch=0,
            grid=grid,
            in_specs=[
                # tiny scaled table: same block every step, stays VMEM-resident
                pl.BlockSpec((H, NB), lambda i, j, b: (0, 0)),
                # qk slab for this (i_tile, j_tile, batch)
                pl.BlockSpec((1, H, tI, tJ), lambda i, j, b: (b, 0, i, j)),
            ],
            out_specs=pl.BlockSpec((1, H, tI, tJ), lambda i, j, b: (b, 0, i, j)),
            scratch_shapes=[pltpu.VMEM((H, tI, tJ), bias_dtype)],
        ),
        compiler_params=pltpu.CompilerParams(
            # i/j tiles can shard across megacore TCs; the batch axis carries
            # the bias-scratch dependency (init keyed on b == 0) so it must
            # remain "arbitrary" (sequential).
            dimension_semantics=("parallel", "parallel", "arbitrary"),
            vmem_limit_bytes=vmem_limit_bytes,
        ),
        # In-place add when the caller donates qk_dots (XLA inserts a copy
        # otherwise, so this is always safe).
        input_output_aliases={1: 0},
    )(emb_t, qk_dots)


def _reference(qk_dots, emb, scale):
    """Pure-JAX reference of the (intended) PyTorch forward."""
    B, H, I, J = qk_dots.shape
    q_pos = jnp.arange(I)
    k_pos = jnp.arange(J)
    rel = k_pos[None, :] - q_pos[:, None]
    n = jnp.maximum(-rel, 0)
    max_exact = NUM_BUCKETS // 2
    is_small = n < max_exact
    nf = jnp.maximum(n.astype(jnp.float32), float(max_exact))
    val_if_large = max_exact + (
        jnp.log(nf / max_exact) / math.log(MAX_DISTANCE / max_exact)
        * (NUM_BUCKETS - max_exact)
    ).astype(jnp.int32)
    val_if_large = jnp.minimum(val_if_large, NUM_BUCKETS - 1)
    bucket = jnp.where(is_small, n, val_if_large)          # (I, J)
    values = emb[bucket]                                   # (I, J, H)
    bias = jnp.transpose(values, (2, 0, 1))[None]          # (1, H, I, J)
    return qk_dots + bias * scale


if __name__ == "__main__":
    key = jax.random.PRNGKey(0)
    k_qk, k_emb = jax.random.split(key)

    # Small shapes, but enough to exercise I-tiling (2 i-tiles at tI=128),
    # the cold-path chunk loop (4 chunks) and the batch-reuse path (B=2).
    B, H, I, J = 2, HEADS, 256, 256
    qk_dots = jax.random.normal(k_qk, (B, H, I, J), dtype=jnp.float32)
    # nn.Embedding default init: N(0, 1)
    emb = jax.random.normal(k_emb, (NUM_BUCKETS, HEADS), dtype=jnp.float32)

    out = t5_relative_position_bias(qk_dots, emb, SCALE)
    out = jax.block_until_ready(out)

    ref = _reference(qk_dots, emb, SCALE)
    assert out.shape == qk_dots.shape and out.dtype == qk_dots.dtype
    assert jnp.allclose(out, ref, atol=1e-5, rtol=1e-5), "mismatch vs reference"

    print("KERNEL_OK")
</pallas_src>

<mosaic_0001>
module attributes {stable_mosaic.version = 11 : i64} {
  func.func @kernel(%arg0: i32, %arg1: i32, %arg2: i32, %arg3: memref<8x32xf32, #tpu.memory_space<vmem>>, %arg4: memref<1x8x128x256xf32, #tpu.memory_space<vmem>>, %arg5: memref<1x8x128x256xf32, #tpu.memory_space<vmem>>, %arg6: memref<8x128x256xf32, #tpu.memory_space<vmem>>) attributes {dimension_semantics = [#tpu.dimension_semantics<parallel>, #tpu.dimension_semantics<parallel>, #tpu.dimension_semantics<arbitrary>], iteration_bounds = array<i64: 2, 1, 2>, scalar_prefetch = 0 : i64, scratch_operands = 1 : i64, tpu.core_type = #tpu.core_type<tc>, window_params = [{pipeline_mode = #tpu.pipeline_mode<synchronous>, transform_indices = @transform_0, window_bounds = array<i64: 8, 32>}, {transform_indices = @transform_1, window_bounds = array<i64: 1, 8, 128, 256>}, {transform_indices = @transform_2, window_bounds = array<i64: 1, 8, 128, 256>}]} {
    %c128_i32 = arith.constant 128 : i32
    %0 = arith.muli %arg0, %c128_i32 : i32
    %c256_i32 = arith.constant 256 : i32
    %1 = arith.muli %arg1, %c256_i32 : i32
    %c0_i32 = arith.constant 0 : i32
    %2 = arith.cmpi eq, %arg2, %c0_i32 : i32
    %3 = arith.extui %2 : i1 to i32
    %c0_i32_0 = arith.constant 0 : i32
    %4 = arith.cmpi ne, %3, %c0_i32_0 : i32
    scf.if %4 {
      %c0_11 = arith.constant 0 : index
      %c0_12 = arith.constant 0 : index
      %10 = vector.load %arg3[%c0_11, %c0_12] : memref<8x32xf32, #tpu.memory_space<vmem>>, vector<8x32xf32>
      %c0_i32_13 = arith.constant 0 : i32
      %c4_i32 = arith.constant 4 : i32
      %11 = arith.addi %c0_i32_13, %c4_i32 : i32
      %c1_i32 = arith.constant 1 : i32
      scf.for %arg7 = %c0_i32_13 to %11 step %c1_i32  : i32 {
        %c32_i32 = arith.constant 32 : i32
        %12 = arith.muli %arg7, %c32_i32 : i32
        %13 = arith.addi %0, %12 : i32
        %14 = tpu.iota {dimensions = array<i32: 0>} : vector<32x256xi32>
        %15 = vector.broadcast %13 : i32 to vector<32x256xi32>
        %16 = arith.addi %15, %14 : vector<32x256xi32>
        %17 = tpu.iota {dimensions = array<i32: 1>} : vector<32x256xi32>
        %18 = vector.broadcast %1 : i32 to vector<32x256xi32>
        %19 = arith.addi %18, %17 : vector<32x256xi32>
        %20 = arith.subi %16, %19 : vector<32x256xi32>
        %c0_i32_15 = arith.constant 0 : i32
        %21 = vector.broadcast %c0_i32_15 : i32 to vector<32x256xi32>
        %22 = arith.maxsi %20, %21 : vector<32x256xi32>
        %c16_i32 = arith.constant 16 : i32
        %23 = vector.broadcast %c16_i32 : i32 to vector<32x256xi32>
        %c19_i32 = arith.constant 19 : i32
        %24 = vector.broadcast %c19_i32 : i32 to vector<32x256xi32>
        %25 = arith.cmpi sge, %22, %24 : vector<32x256xi32>
        %26 = arith.extui %25 : vector<32x256xi1> to vector<32x256xi32>
        %27 = arith.addi %23, %26 : vector<32x256xi32>
        %c21_i32 = arith.constant 21 : i32
        %28 = vector.broadcast %c21_i32 : i32 to vector<32x256xi32>
        %29 = arith.cmpi sge, %22, %28 : vector<32x256xi32>
        %30 = arith.extui %29 : vector<32x256xi1> to vector<32x256xi32>
        %31 = arith.addi %27, %30 : vector<32x256xi32>
        %c24_i32 = arith.constant 24 : i32
        %32 = vector.broadcast %c24_i32 : i32 to vector<32x256xi32>
        %33 = arith.cmpi sge, %22, %32 : vector<32x256xi32>
        %34 = arith.extui %33 : vector<32x256xi1> to vector<32x256xi32>
        %35 = arith.addi %31, %34 : vector<32x256xi32>
        %c27_i32 = arith.constant 27 : i32
        %36 = vector.broadcast %c27_i32 : i32 to vector<32x256xi32>
        %37 = arith.cmpi sge, %22, %36 : vector<32x256xi32>
        %38 = arith.extui %37 : vector<32x256xi1> to vector<32x256xi32>
        %39 = arith.addi %35, %38 : vector<32x256xi32>
        %c31_i32 = arith.constant 31 : i32
        %40 = vector.broadcast %c31_i32 : i32 to vector<32x256xi32>
        %41 = arith.cmpi sge, %22, %40 : vector<32x256xi32>
        %42 = arith.extui %41 : vector<32x256xi1> to vector<32x256xi32>
        %43 = arith.addi %39, %42 : vector<32x256xi32>
        %c35_i32 = arith.constant 35 : i32
        %44 = vector.broadcast %c35_i32 : i32 to vector<32x256xi32>
        %45 = arith.cmpi sge, %22, %44 : vector<32x256xi32>
        %46 = arith.extui %45 : vector<32x256xi1> to vector<32x256xi32>
        %47 = arith.addi %43, %46 : vector<32x256xi32>
        %c40_i32 = arith.constant 40 : i32
        %48 = vector.broadcast %c40_i32 : i32 to vector<32x256xi32>
        %49 = arith.cmpi sge, %22, %48 : vector<32x256xi32>
        %50 = arith.extui %49 : vector<32x256xi1> to vector<32x256xi32>
        %51 = arith.addi %47, %50 : vector<32x256xi32>
        %c46_i32 = arith.constant 46 : i32
        %52 = vector.broadcast %c46_i32 : i32 to vector<32x256xi32>
        %53 = arith.cmpi sge, %22, %52 : vector<32x256xi32>
        %54 = arith.extui %53 : vector<32x256xi1> to vector<32x256xi32>
        %55 = arith.addi %51, %54 : vector<32x256xi32>
        %c52_i32 = arith.constant 52 : i32
        %56 = vector.broadcast %c52_i32 : i32 to vector<32x256xi32>
        %57 = arith.cmpi sge, %22, %56 : vector<32x256xi32>
        %58 = arith.extui %57 : vector<32x256xi1> to vector<32x256xi32>
        %59 = arith.addi %55, %58 : vector<32x256xi32>
        %c59_i32 = arith.constant 59 : i32
        %60 = vector.broadcast %c59_i32 : i32 to vector<32x256xi32>
        %61 = arith.cmpi sge, %22, %60 : vector<32x256xi32>
        %62 = arith.extui %61 : vector<32x256xi1> to vector<32x256xi32>
        %63 = arith.addi %59, %62 : vector<32x256xi32>
        %c67_i32 = arith.constant 67 : i32
        %64 = vector.broadcast %c67_i32 : i32 to vector<32x256xi32>
        %65 = arith.cmpi sge, %22, %64 : vector<32x256xi32>
        %66 = arith.extui %65 : vector<32x256xi1> to vector<32x256xi32>
        %67 = arith.addi %63, %66 : vector<32x256xi32>
        %c77_i32 = arith.constant 77 : i32
        %68 = vector.broadcast %c77_i32 : i32 to vector<32x256xi32>
        %69 = arith.cmpi sge, %22, %68 : vector<32x256xi32>
        %70 = arith.extui %69 : vector<32x256xi1> to vector<32x256xi32>
        %71 = arith.addi %67, %70 : vector<32x256xi32>
        %c87_i32 = arith.constant 87 : i32
        %72 = vector.broadcast %c87_i32 : i32 to vector<32x256xi32>
        %73 = arith.cmpi sge, %22, %72 : vector<32x256xi32>
        %74 = arith.extui %73 : vector<32x256xi1> to vector<32x256xi32>
        %75 = arith.addi %71, %74 : vector<32x256xi32>
        %c99_i32 = arith.constant 99 : i32
        %76 = vector.broadcast %c99_i32 : i32 to vector<32x256xi32>
        %77 = arith.cmpi sge, %22, %76 : vector<32x256xi32>
        %78 = arith.extui %77 : vector<32x256xi1> to vector<32x256xi32>
        %79 = arith.addi %75, %78 : vector<32x256xi32>
        %c113_i32 = arith.constant 113 : i32
        %80 = vector.broadcast %c113_i32 : i32 to vector<32x256xi32>
        %81 = arith.cmpi sge, %22, %80 : vector<32x256xi32>
        %82 = arith.extui %81 : vector<32x256xi1> to vector<32x256xi32>
        %83 = arith.addi %79, %82 : vector<32x256xi32>
        %c16_i32_16 = arith.constant 16 : i32
        %84 = vector.broadcast %c16_i32_16 : i32 to vector<32x256xi32>
        %85 = arith.cmpi slt, %22, %84 : vector<32x256xi32>
        %86 = arith.select %85, %22, %83 : vector<32x256xi1>, vector<32x256xi32>
        %87 = vector.shape_cast %86 : vector<32x256xi32> to vector<1x8192xi32>
        %88 = tpu.iota {dimensions = array<i32: 0>} : vector<32x8192xi32>
        %89 = vector.broadcast %87 : vector<1x8192xi32> to vector<32x8192xi32>
        %90 = arith.cmpi eq, %89, %88 : vector<32x8192xi32>
        %91 = arith.extui %90 : vector<32x8192xi1> to vector<32x8192xi32>
        %92 = arith.sitofp %91 : vector<32x8192xi32> to vector<32x8192xf32>
        %cst = arith.constant dense<0.000000e+00> : vector<8x8192xf32>
        %93 = tpu.matmul %10, %92, %cst {dimension_numbers = #tpu.dot_dimension_numbers<[1], [0], [0], [1], [0, 0, 1, 1], [], []>} : vector<8x32xf32>, vector<32x8192xf32>, vector<8x8192xf32> -> vector<8x8192xf32>
        %94 = vector.shape_cast %93 : vector<8x8192xf32> to vector<8x32x256xf32>
        %c0_17 = arith.constant 0 : index
        %95 = arith.index_cast %12 : i32 to index
        %c0_18 = arith.constant 0 : index
        %96 = vector.load %arg6[%c0_17, %95, %c0_18] : memref<8x128x256xf32, #tpu.memory_space<vmem>>, vector<8x32x256xf32>
        tpu.vector_store %arg6[%c0_17, %95, %c0_18], %94 {strides = array<i32>} : memref<8x128x256xf32, #tpu.memory_space<vmem>>, vector<8x32x256xf32>,
      }
      %c4_i32_14 = arith.constant 4 : i32
    } else {
    }
    %c0 = arith.constant 0 : index
    %c0_1 = arith.constant 0 : index
    %c0_2 = arith.constant 0 : index
    %c0_3 = arith.constant 0 : index
    %5 = vector.load %arg4[%c0, %c0_1, %c0_2, %c0_3] : memref<1x8x128x256xf32, #tpu.memory_space<vmem>>, vector<1x8x128x256xf32>
    %c0_4 = arith.constant 0 : index
    %c0_5 = arith.constant 0 : index
    %c0_6 = arith.constant 0 : index
    %6 = vector.load %arg6[%c0_4, %c0_5, %c0_6] : memref<8x128x256xf32, #tpu.memory_space<vmem>>, vector<8x128x256xf32>
    %7 = vector.shape_cast %6 : vector<8x128x256xf32> to vector<1x8x128x256xf32>
    %8 = arith.addf %5, %7 : vector<1x8x128x256xf32>
    %c0_7 = arith.constant 0 : index
    %c0_8 = arith.constant 0 : index
    %c0_9 = arith.constant 0 : index
    %c0_10 = arith.constant 0 : index
    %9 = vector.load %arg5[%c0_7, %c0_8, %c0_9, %c0_10] : memref<1x8x128x256xf32, #tpu.memory_space<vmem>>, vector<1x8x128x256xf32>
    tpu.vector_store %arg5[%c0_7, %c0_8, %c0_9, %c0_10], %8 {strides = array<i32>} : memref<1x8x128x256xf32, #tpu.memory_space<vmem>>, vector<1x8x128x256xf32>,
    return
  }
  func.func @transform_0(%arg0: i32, %arg1: i32, %arg2: i32) -> (i32, i32) {
    %c0_i32 = arith.constant 0 : i32
    %c0_i32_0 = arith.constant 0 : i32
    %c0_i32_1 = arith.constant 0 : i32
    return %c0_i32, %c0_i32_0 : i32, i32
  }
  func.func @transform_1(%arg0: i32, %arg1: i32, %arg2: i32) -> (i32, i32, i32, i32) {
    %c0_i32 = arith.constant 0 : i32
    %c0_i32_0 = arith.constant 0 : i32
    return %arg2, %c0_i32, %arg0, %arg1 : i32, i32, i32, i32
  }
  func.func @transform_2(%arg0: i32, %arg1: i32, %arg2: i32) -> (i32, i32, i32, i32) {
    %c0_i32 = arith.constant 0 : i32
    %c0_i32_0 = arith.constant 0 : i32
    return %arg2, %c0_i32, %arg0, %arg1 : i32, i32, i32, i32
  }
}

</mosaic_0001>

<llo_original>
// kernel: tpu_custom_call.1
$region0: #{tpu_custom_call.1}
  #allocation0 [shape = 'u32[]', space=smem, size = 0x4, offset = 0x4, fixed_abs, tag = 'smem constant byte address 0x4 - core index']
  #allocation1 [shape = 'u32[144,128]{1,0:T(1,128)}', space=vmem, size = 0x12000, scoped, tag = 'internal scratch']
  #allocation2 [shape = 'f32[8,128,256]{2,1,0:T(8,128)}', space=vmem, size = 0x100000, scoped, tag = 'scratch operand']
  #allocation7 [shape = 's32[]', space=sflag, size = 0x4, offset = 0, fixed_abs, tag = 'sflag constant byte address 0x0 - dummy sync flag']
  #allocation9 [shape = 's32[]', space=sflag, size = 0x4, offset = 0, fixed_abs, tag = 'sflag constant byte address 0x0 - dummy sync flag']
  %s0 = inlined_call_operand.vmem [shape: f32[8,32], index: 0, kind: input, shape index: {}]
  %s1 = inlined_call_operand.hbm [shape: f32[2,8,256,256], index: 1, kind: input, shape index: {}, may-alias: {1,2}]
  %s2 = inlined_call_operand.hbm [shape: f32[2,8,256,256], index: 2, kind: output, shape index: {}, may-alias: {1,2}]
  %s3 = sld [smem:[#allocation0]]
  $region56: #{tpu_custom_call.1} parent=0
    _
  %s5 = ssub.s32 1, %s3
  %s6 = scalar_select 0, %s5, %s3
  $region1: #{tpu_custom_call.1} parent=0
    #allocation3 [shape = 'u8[2097152]{0}', space=vmem, size = 0x200000, scoped, tag = 'input window, operand 1']
    #allocation4 [shape = 's32[2]{0}', space=sflag, size = 0x8, scoped, tag = 'scoped memory for tpu_custom_call.1']
    #allocation5 [shape = 's32[2]{0}', space=sflag, size = 0x8, scoped, tag = 'scoped memory for tpu_custom_call.1']
    #allocation6 [shape = 'u8[2097152]{0}', space=vmem, size = 0x200000, scoped, tag = 'output window, operand 0']
    %7 = vsyncpa [#allocation4], 0
    %s8 = scalar_lea.sflag [#allocation4], 1
    %9 = vsyncpa %s8, 0
    %10 = vsyncpa [#allocation5], 0
    %s11 = scalar_lea.sflag [#allocation5], 1
    %12 = vsyncpa %s11, 0
    loop: start=0, step=1, limit=6
    $region2: #{tpu_custom_call.1} parent=1 // loop_pre_header
      _
    $region3: #{tpu_custom_call.1} parent=1 // loop_header
      %s14 = sphi 0, %s18
      %p15 = scmp.ge.s32.totalorder %s14, 6
      %s21 = sphi 0, %s40
      %s22 = sphi 0, %s36
      %s23 = sphi 0, %s32
      %s24 = sphi 0, %s21
      %s25 = sphi 0, %s22
      %s26 = sphi 0, %s23
      %s27 = sphi 0, %s24
      %s28 = sphi 0, %s25
      %s29 = sphi 0, %s26
      %s41 = sphi 0, %s41
      %s43 = sphi 0, %s41
      %s44 = sphi 0, %s43
      %s58 = sphi 0, %s44
      %s68 = sphi 0, %s70
      %s71 = sphi 0, %s68
      %s72 = sphi 0, %s71
      %s88 = sphi 0, %s72
      %s98 = sphi 0, %s100
      %s101 = sphi 0, %s98
      %s102 = sphi 0, %s101
      %s118 = sphi 0, %s102
    $region4: #{tpu_custom_call.1} parent=1 // loop_header_branch
      %17 = sbr.rel (%p15) target = $region8
    $region5: #{tpu_custom_call.1} parent=1 // loop_body
      %s19 = ssub.s32 %s14, 1
      %s20 = ssub.s32 %s14, 2
      %s30 = sadd.s32 1, %s23
      %p31 = scmp.ge.s32.totalorder %s30, 2
      %s32 = scalar_select %p31, 0, %s30
      %s33 = sadd.s32 1, %s22
      %s34 = scalar_select %p31, %s33, %s22
      %p35 = scmp.ge.s32.totalorder %s34, 1
      %s36 = scalar_select %p35, 0, %s34
      %s37 = sadd.s32 1, %s21
      %s38 = scalar_select %p35, %s37, %s21
      %p39 = scmp.ge.s32.totalorder %s38, 2
      %s40 = scalar_select %p39, 0, %s38
      %s42 = sadd.s32 %s41, 1
      %p45 = scmp.eq.s32.totalorder %s14, 3
      %p46 = scmp.ne.s32.totalorder %s41, %s43
      %p47 = scmp.eq.s32.totalorder %s14, 0
      %p48 = por %p46, %p47
      %p49 = scmp.ne.s32.totalorder %s41, %s43
      %p50 = scmp.eq.s32.totalorder %s19, 3
      %p51 = por %p49, %p50
      %p52 = scmp.ne.s32.totalorder %s43, %s44
      %p53 = scmp.eq.s32.totalorder %s19, 0
      %p54 = por %p52, %p53
      %p55 = scmp.ne.s32.totalorder %s43, %s44
      %p56 = scmp.eq.s32.totalorder %s20, 3
      %p57 = por %p55, %p56
      %p59 = scmp.ne.s32.totalorder %s44, %s58
      %p60 = scmp.eq.s32.totalorder %s20, 0
      %p61 = por %p59, %p60
      %s62 = ssub.s32 %s23, %s32
      %s63 = ssub.s32 %s21, %s40
      %s64 = sor.u32 %s62, %s63
      %s65 = ssub.s32 %s22, %s36
      %s66 = sor.u32 %s64, %s65
      %p67 = scmp.eq.s32.totalorder %s66, 0
      %s69 = sadd.s32 %s68, 1
      %s70 = scalar_select %p67, %s68, %s69
      %p73 = pneg %p67
      %p74 = scmp.eq.s32.totalorder %s14, 3
      %p75 = por %p73, %p74
      %p76 = scmp.ne.s32.totalorder %s68, %s71
      %p77 = scmp.eq.s32.totalorder %s14, 0
      %p78 = por %p76, %p77
      %p79 = scmp.ne.s32.totalorder %s68, %s71
      %p80 = scmp.eq.s32.totalorder %s19, 3
      %p81 = por %p79, %p80
      %p82 = scmp.ne.s32.totalorder %s71, %s72
      %p83 = scmp.eq.s32.totalorder %s19, 0
      %p84 = por %p82, %p83
      %p85 = scmp.ne.s32.totalorder %s71, %s72
      %p86 = scmp.eq.s32.totalorder %s20, 3
      %p87 = por %p85, %p86
      %p89 = scmp.ne.s32.totalorder %s72, %s88
      %p90 = scmp.eq.s32.totalorder %s20, 0
      %p91 = por %p89, %p90
      %s92 = ssub.s32 %s23, %s32
      %s93 = ssub.s32 %s21, %s40
      %s94 = sor.u32 %s92, %s93
      %s95 = ssub.s32 %s22, %s36
      %s96 = sor.u32 %s94, %s95
      %p97 = scmp.eq.s32.totalorder %s96, 0
      %s99 = sadd.s32 %s98, 1
      %s100 = scalar_select %p97, %s98, %s99
      %p103 = pneg %p97
      %p104 = scmp.eq.s32.totalorder %s14, 3
      %p105 = por %p103, %p104
      %p106 = scmp.ne.s32.totalorder %s98, %s101
      %p107 = scmp.eq.s32.totalorder %s14, 0
      %p108 = por %p106, %p107
      %p109 = scmp.ne.s32.totalorder %s98, %s101
      %p110 = scmp.eq.s32.totalorder %s19, 3
      %p111 = por %p109, %p110
      %p112 = scmp.ne.s32.totalorder %s101, %s102
      %p113 = scmp.eq.s32.totalorder %s19, 0
      %p114 = por %p112, %p113
      %p115 = scmp.ne.s32.totalorder %s101, %s102
      %p116 = scmp.eq.s32.totalorder %s20, 3
      %p117 = por %p115, %p116
      %p119 = scmp.ne.s32.totalorder %s102, %s118
      %p120 = scmp.eq.s32.totalorder %s20, 0
      %p121 = por %p119, %p120
      %p122 = scmp.le.s32.totalorder 1, %s14
      %p123 = scmp.lt.s32.totalorder %s14, 5
      %p124 = pnand %p122, %p123
      %p125 = pneg %p124
      // Predicated region
      $region9: #{tpu_custom_call.1} parent=5 // pred_check
        _
      $region10: #{tpu_custom_call.1} parent=5 // pred_check_branch
        %127 = sbr.rel (%p124) target = $region12
      $region11: #{tpu_custom_call.1} parent=5 // pred_region
        %s128 = ssub.s32 %s14, 1
        // Predicated region
        $region13: #{tpu_custom_call.1} parent=11 // pred_check
          %p129 = pneg %p54
        $region14: #{tpu_custom_call.1} parent=11 // pred_check_branch
          %131 = sbr.rel (%p129) target = $region16
        $region15: #{tpu_custom_call.1} parent=11 // pred_region
          _
        $region16: #{tpu_custom_call.1} parent=11 // pred_fallthru
          _
      $region12: #{tpu_custom_call.1} parent=5 // pred_fallthru
        _
      %p132 = scmp.lt.s32.totalorder %s14, 4
      // Predicated region
      $region17: #{tpu_custom_call.1} parent=5 // pred_check
        %p133 = pneg %p132
      $region18: #{tpu_custom_call.1} parent=5 // pred_check_branch
        %135 = sbr.rel (%p133) target = $region20
      $region19: #{tpu_custom_call.1} parent=5 // pred_region
        // Predicated region
        $region21: #{tpu_custom_call.1} parent=19 // pred_check
          %p136 = pneg %p78
        $region22: #{tpu_custom_call.1} parent=19 // pred_check_branch
          %138 = sbr.rel (%p136) target = $region24
        $region23: #{tpu_custom_call.1} parent=19 // pred_region
          #allocation8 [shape = 'u32[6]{0}', space=smem, size = 0x18, scoped, tag = 'DMA stride descriptor']
          %s139 = sand.u32 %s68, 1
          %s140 = scalar_lea.sflag [#allocation4], %s139
          %s141 = sand.u32 %s68, 1
          %s142 = smul.addr %s141, 2048
          %s143 = scalar_lea.vmem [#allocation3], %s142
          %s144 = smul.u32 16, %s21
          %s145 = smul.u32 2, %s22
          %s147 = ssub.s32 32768, 32768
          %148 = vsyncadd %s140, %s147
          %s149 = smul.addr %s144, 2
          %s150 = sadd.s32 %s145, %s149
          %s151 = smul.addr %s23, 512
          %s152 = sadd.s32 %s150, %s151
          %s153 = smul.addr %s152, 128
          %s154 = scalar_lea.hbm %s1, %s153
          %s156 = sshll.u32 1, 14
          %s157 = sxor.u32 4294967295, %s156
          %s159 = sld [smem:[#allocation0]]
          %s160 = sadd.s32 2, %s159
          %s162 = sshll.u32 7, 26
          %s163 = sxor.u32 4294967295, %s162
          %s164 = sand.u32 0, %s163
          %s165 = sshll.u32 %s160, 26
          %s166 = sor.u32 %s164, %s165
          %s167 = sshll.u32 %s143, 4
          %s168 = int_to_ptr.vmem [resolvable:$true] %s167
          %174 = sst [smem:[#allocation8]] 8192
          %s175 = scalar_lea.smem [#allocation8], 1
          %176 = sst [smem:[%s175]] 4096
          %s177 = scalar_lea.smem [#allocation8], 2
          %178 = sst [smem:[%s177]] 16
          %s179 = scalar_lea.smem [#allocation8], 3
          %180 = sst [smem:[%s179]] 256
          %s181 = scalar_lea.smem [#allocation8], 4
          %182 = sst [smem:[%s181]] 256
          %s183 = scalar_lea.smem [#allocation8], 5
          %184 = sst [smem:[%s183]] 16
          %186 = dma.general %s154, 32768, %s168, %s140, [#allocation7], [#allocation8], %s166, 0
        $region24: #{tpu_custom_call.1} parent=19 // pred_fallthru
          _
      $region20: #{tpu_custom_call.1} parent=5 // pred_fallthru
        _
      %p187 = scmp.le.s32.totalorder 1, %s14
      %p188 = scmp.lt.s32.totalorder %s14, 5
      %p189 = pnand %p187, %p188
      %p190 = pneg %p189
      // Predicated region
      $region25: #{tpu_custom_call.1} parent=5 // pred_check
        _
      $region26: #{tpu_custom_call.1} parent=5 // pred_check_branch
        %192 = sbr.rel (%p189) target = $region28
      $region27: #{tpu_custom_call.1} parent=5 // pred_region
        %s193 = ssub.s32 %s14, 1
        %s194 = sand.u32 %s71, 1
        %s195 = scalar_lea.sflag [#allocation4], %s194
        %s196 = sand.u32 %s71, 1
        %s197 = smul.addr %s196, 2048
        %s198 = scalar_lea.vmem [#allocation3], %s197
        // Predicated region
        $region29: #{tpu_custom_call.1} parent=27 // pred_check
          %p199 = pneg %p84
        $region30: #{tpu_custom_call.1} parent=27 // pred_check_branch
          %201 = sbr.rel (%p199) target = $region32
        $region31: #{tpu_custom_call.1} parent=27 // pred_region
          %202 = dma.done %s195, 32768
        $region32: #{tpu_custom_call.1} parent=27 // pred_fallthru
          _
        %p203 = pneg %p54
        %p204 = pneg %p51
        %s205 = sand.u32 %s71, 1
        %s206 = scalar_lea.sflag [#allocation4], %s205
        %s207 = sand.u32 %s71, 1
        %s208 = smul.addr %s207, 2048
        %s209 = scalar_lea.vmem [#allocation3], %s208
        %p210 = pneg %p84
        %p211 = pneg %p81
        %p212 = pneg %p114
        %p213 = pneg %p111
        %s214 = sand.u32 %s101, 1
        %s215 = scalar_lea.sflag [#allocation5], %s214
        %s216 = sand.u32 %s101, 1
        %s217 = smul.addr %s216, 2048
        %s218 = scalar_lea.vmem [#allocation6], %s217
        %s219 = smul.u32 16, %s24
        %s220 = smul.u32 2, %s25
        %s221 = smul.u32 16, %s24
        %s222 = smul.u32 2, %s25
        %s223 = smul.u32 %s24, 128
        %s224 = smul.u32 %s25, 256
        %p225 = scmp.eq.s32.totalorder %s26, 0
        // Predicated region
        $region33: #{tpu_custom_call.1} parent=27 // pred_check
          %p226 = pneg %p225
        $region34: #{tpu_custom_call.1} parent=27 // pred_check_branch
          %228 = sbr.rel (%p226) target = $region36
        $region35: #{tpu_custom_call.1} parent=27 // pred_region
          %v229 = vld [vmem:[%s0] sm:$0xff]
          loop: start=0, step=1, limit=4
          $region37: #{tpu_custom_call.1} parent=35 // loop_pre_header
            _
          $region38: #{tpu_custom_call.1} parent=35 // loop_header
            %s231 = sphi 0, %s235
            %p232 = scmp.ge.s32.totalorder %s231, 4
          $region39: #{tpu_custom_call.1} parent=35 // loop_header_branch
            %234 = sbr.rel (%p232) target = $region43
          $region40: #{tpu_custom_call.1} parent=35 // loop_body
            %s236 = smul.u32 %s231, 32
            %s237 = sadd.s32 %s223, %s236
            %v238 = vlaneseq
            %v239 = vshrl.u32 %v238, 7
            %v240 = vadd.s32 %v239, 8
            %v241 = vadd.s32 %v239, 16
            %v242 = vadd.s32 %v239, 24
            %v243 = vstv %s237
            %v244 = vadd.s32 %v243, %v239
            %v245 = vadd.s32 %v243, %v240
            %v246 = vadd.s32 %v243, %v241
            %v247 = vadd.s32 %v243, %v242
            %v248 = vlaneseq
            %v249 = vand.u32 %v248, 127
            %v250 = vadd.s32 %v249, 128
            %v251 = vstv %s224
            %v252 = vadd.s32 %v251, %v249
            %v253 = vadd.s32 %v251, %v250
            %v254 = vsub.s32 %v244, %v252
            %v255 = vsub.s32 %v244, %v253
            %v256 = vsub.s32 %v245, %v252
            %v257 = vsub.s32 %v245, %v253
            %v258 = vsub.s32 %v246, %v252
            %v259 = vsub.s32 %v246, %v253
            %v260 = vsub.s32 %v247, %v252
            %v261 = vsub.s32 %v247, %v253
            %vm262 = vcmp.gt.s32.totalorder %v254, 0
            %v263 = vsel %vm262, %v254, 0
            %vm264 = vcmp.gt.s32.totalorder %v255, 0
            %v265 = vsel %vm264, %v255, 0
            %vm266 = vcmp.gt.s32.totalorder %v256, 0
            %v267 = vsel %vm266, %v256, 0
            %vm268 = vcmp.gt.s32.totalorder %v257, 0
            %v269 = vsel %vm268, %v257, 0
            %vm270 = vcmp.gt.s32.totalorder %v258, 0
            %v271 = vsel %vm270, %v258, 0
            %vm272 = vcmp.gt.s32.totalorder %v259, 0
            %v273 = vsel %vm272, %v259, 0
            %vm274 = vcmp.gt.s32.totalorder %v260, 0
            %v275 = vsel %vm274, %v260, 0
            %vm276 = vcmp.gt.s32.totalorder %v261, 0
            %v277 = vsel %vm276, %v261, 0
            %vm278 = vcmp.ge.s32.totalorder %v263, 19
            %vm279 = vcmp.ge.s32.totalorder %v265, 19
            %vm280 = vcmp.ge.s32.totalorder %v267, 19
            %vm281 = vcmp.ge.s32.totalorder %v269, 19
            %vm282 = vcmp.ge.s32.totalorder %v271, 19
            %vm283 = vcmp.ge.s32.totalorder %v273, 19
            %vm284 = vcmp.ge.s32.totalorder %v275, 19
            %vm285 = vcmp.ge.s32.totalorder %v277, 19
            %v286 = vsel %vm278, 1, 0
            %v287 = vsel %vm279, 1, 0
            %v288 = vsel %vm280, 1, 0
            %v289 = vsel %vm281, 1, 0
            %v290 = vsel %vm282, 1, 0
            %v291 = vsel %vm283, 1, 0
            %v292 = vsel %vm284, 1, 0
            %v293 = vsel %vm285, 1, 0
            %v294 = vadd.s32 %v286, 16
            %v295 = vadd.s32 %v287, 16
            %v296 = vadd.s32 %v288, 16
            %v297 = vadd.s32 %v289, 16
            %v298 = vadd.s32 %v290, 16
            %v299 = vadd.s32 %v291, 16
            %v300 = vadd.s32 %v292, 16
            %v301 = vadd.s32 %v293, 16
            %vm302 = vcmp.ge.s32.totalorder %v263, 21
            %vm303 = vcmp.ge.s32.totalorder %v265, 21
            %vm304 = vcmp.ge.s32.totalorder %v267, 21
            %vm305 = vcmp.ge.s32.totalorder %v269, 21
            %vm306 = vcmp.ge.s32.totalorder %v271, 21
            %vm307 = vcmp.ge.s32.totalorder %v273, 21
            %vm308 = vcmp.ge.s32.totalorder %v275, 21
            %vm309 = vcmp.ge.s32.totalorder %v277, 21
            %v310 = vsel %vm302, 1, 0
            %v311 = vsel %vm303, 1, 0
            %v312 = vsel %vm304, 1, 0
            %v313 = vsel %vm305, 1, 0
            %v314 = vsel %vm306, 1, 0
            %v315 = vsel %vm307, 1, 0
            %v316 = vsel %vm308, 1, 0
            %v317 = vsel %vm309, 1, 0
            %v318 = vadd.s32 %v294, %v310
            %v319 = vadd.s32 %v295, %v311
            %v320 = vadd.s32 %v296, %v312
            %v321 = vadd.s32 %v297, %v313
            %v322 = vadd.s32 %v298, %v314
            %v323 = vadd.s32 %v299, %v315
            %v324 = vadd.s32 %v300, %v316
            %v325 = vadd.s32 %v301, %v317
            %vm326 = vcmp.ge.s32.totalorder %v263, 24
            %vm327 = vcmp.ge.s32.totalorder %v265, 24
            %vm328 = vcmp.ge.s32.totalorder %v267, 24
            %vm329 = vcmp.ge.s32.totalorder %v269, 24
            %vm330 = vcmp.ge.s32.totalorder %v271, 24
            %vm331 = vcmp.ge.s32.totalorder %v273, 24
            %vm332 = vcmp.ge.s32.totalorder %v275, 24
            %vm333 = vcmp.ge.s32.totalorder %v277, 24
            %v334 = vsel %vm326, 1, 0
            %v335 = vsel %vm327, 1, 0
            %v336 = vsel %vm328, 1, 0
            %v337 = vsel %vm329, 1, 0
            %v338 = vsel %vm330, 1, 0
            %v339 = vsel %vm331, 1, 0
            %v340 = vsel %vm332, 1, 0
            %v341 = vsel %vm333, 1, 0
            %v342 = vadd.s32 %v318, %v334
            %v343 = vadd.s32 %v319, %v335
            %v344 = vadd.s32 %v320, %v336
            %v345 = vadd.s32 %v321, %v337
            %v346 = vadd.s32 %v322, %v338
            %v347 = vadd.s32 %v323, %v339
            %v348 = vadd.s32 %v324, %v340
            %v349 = vadd.s32 %v325, %v341
            %vm350 = vcmp.ge.s32.totalorder %v263, 27
            %vm351 = vcmp.ge.s32.totalorder %v265, 27
            %vm352 = vcmp.ge.s32.totalorder %v267, 27
            %vm353 = vcmp.ge.s32.totalorder %v269, 27
            %vm354 = vcmp.ge.s32.totalorder %v271, 27
            %vm355 = vcmp.ge.s32.totalorder %v273, 27
            %vm356 = vcmp.ge.s32.totalorder %v275, 27
            %vm357 = vcmp.ge.s32.totalorder %v277, 27
            %v358 = vsel %vm350, 1, 0
            %v359 = vsel %vm351, 1, 0
            %v360 = vsel %vm352, 1, 0
            %v361 = vsel %vm353, 1, 0
            %v362 = vsel %vm354, 1, 0
            %v363 = vsel %vm355, 1, 0
            %v364 = vsel %vm356, 1, 0
            %v365 = vsel %vm357, 1, 0
            %v366 = vadd.s32 %v342, %v358
            %v367 = vadd.s32 %v343, %v359
            %v368 = vadd.s32 %v344, %v360
            %v369 = vadd.s32 %v345, %v361
            %v370 = vadd.s32 %v346, %v362
            %v371 = vadd.s32 %v347, %v363
            %v372 = vadd.s32 %v348, %v364
            %v373 = vadd.s32 %v349, %v365
            %vm374 = vcmp.ge.s32.totalorder %v263, 31
            %vm375 = vcmp.ge.s32.totalorder %v265, 31
            %vm376 = vcmp.ge.s32.totalorder %v267, 31
            %vm377 = vcmp.ge.s32.totalorder %v269, 31
            %vm378 = vcmp.ge.s32.totalorder %v271, 31
            %vm379 = vcmp.ge.s32.totalorder %v273, 31
            %vm380 = vcmp.ge.s32.totalorder %v275, 31
            %vm381 = vcmp.ge.s32.totalorder %v277, 31
            %v382 = vsel %vm374, 1, 0
            %v383 = vsel %vm375, 1, 0
            %v384 = vsel %vm376, 1, 0
            %v385 = vsel %vm377, 1, 0
            %v386 = vsel %vm378, 1, 0
            %v387 = vsel %vm379, 1, 0
            %v388 = vsel %vm380, 1, 0
            %v389 = vsel %vm381, 1, 0
            %v390 = vadd.s32 %v366, %v382
            %v391 = vadd.s32 %v367, %v383
            %v392 = vadd.s32 %v368, %v384
            %v393 = vadd.s32 %v369, %v385
            %v394 = vadd.s32 %v370, %v386
            %v395 = vadd.s32 %v371, %v387
            %v396 = vadd.s32 %v372, %v388
            %v397 = vadd.s32 %v373, %v389
            %vm398 = vcmp.ge.s32.totalorder %v263, 35
            %vm399 = vcmp.ge.s32.totalorder %v265, 35
            %vm400 = vcmp.ge.s32.totalorder %v267, 35
            %vm401 = vcmp.ge.s32.totalorder %v269, 35
            %vm402 = vcmp.ge.s32.totalorder %v271, 35
            %vm403 = vcmp.ge.s32.totalorder %v273, 35
            %vm404 = vcmp.ge.s32.totalorder %v275, 35
            %vm405 = vcmp.ge.s32.totalorder %v277, 35
            %v406 = vsel %vm398, 1, 0
            %v407 = vsel %vm399, 1, 0
            %v408 = vsel %vm400, 1, 0
            %v409 = vsel %vm401, 1, 0
            %v410 = vsel %vm402, 1, 0
            %v411 = vsel %vm403, 1, 0
            %v412 = vsel %vm404, 1, 0
            %v413 = vsel %vm405, 1, 0
            %v414 = vadd.s32 %v390, %v406
            %v415 = vadd.s32 %v391, %v407
            %v416 = vadd.s32 %v392, %v408
            %v417 = vadd.s32 %v393, %v409
            %v418 = vadd.s32 %v394, %v410
            %v419 = vadd.s32 %v395, %v411
            %v420 = vadd.s32 %v396, %v412
            %v421 = vadd.s32 %v397, %v413
            %vm422 = vcmp.ge.s32.totalorder %v263, 40
            %vm423 = vcmp.ge.s32.totalorder %v265, 40
            %vm424 = vcmp.ge.s32.totalorder %v267, 40
            %vm425 = vcmp.ge.s32.totalorder %v269, 40
            %vm426 = vcmp.ge.s32.totalorder %v271, 40
            %vm427 = vcmp.ge.s32.totalorder %v273, 40
            %vm428 = vcmp.ge.s32.totalorder %v275, 40
            %vm429 = vcmp.ge.s32.totalorder %v277, 40
            %v430 = vsel %vm422, 1, 0
            %v431 = vsel %vm423, 1, 0
            %v432 = vsel %vm424, 1, 0
            %v433 = vsel %vm425, 1, 0
            %v434 = vsel %vm426, 1, 0
            %v435 = vsel %vm427, 1, 0
            %v436 = vsel %vm428, 1, 0
            %v437 = vsel %vm429, 1, 0
            %v438 = vadd.s32 %v414, %v430
            %v439 = vadd.s32 %v415, %v431
            %v440 = vadd.s32 %v416, %v432
            %v441 = vadd.s32 %v417, %v433
            %v442 = vadd.s32 %v418, %v434
            %v443 = vadd.s32 %v419, %v435
            %v444 = vadd.s32 %v420, %v436
            %v445 = vadd.s32 %v421, %v437
            %vm446 = vcmp.ge.s32.totalorder %v263, 46
            %vm447 = vcmp.ge.s32.totalorder %v265, 46
            %vm448 = vcmp.ge.s32.totalorder %v267, 46
            %vm449 = vcmp.ge.s32.totalorder %v269, 46
            %vm450 = vcmp.ge.s32.totalorder %v271, 46
            %vm451 = vcmp.ge.s32.totalorder %v273, 46
            %vm452 = vcmp.ge.s32.totalorder %v275, 46
            %vm453 = vcmp.ge.s32.totalorder %v277, 46
            %v454 = vsel %vm446, 1, 0
            %v455 = vsel %vm447, 1, 0
            %v456 = vsel %vm448, 1, 0
            %v457 = vsel %vm449, 1, 0
            %v458 = vsel %vm450, 1, 0
            %v459 = vsel %vm451, 1, 0
            %v460 = vsel %vm452, 1, 0
            %v461 = vsel %vm453, 1, 0
            %v462 = vadd.s32 %v438, %v454
            %v463 = vadd.s32 %v439, %v455
            %v464 = vadd.s32 %v440, %v456
            %v465 = vadd.s32 %v441, %v457
            %v466 = vadd.s32 %v442, %v458
            %v467 = vadd.s32 %v443, %v459
            %v468 = vadd.s32 %v444, %v460
            %v469 = vadd.s32 %v445, %v461
            %vm470 = vcmp.ge.s32.totalorder %v263, 52
            %vm471 = vcmp.ge.s32.totalorder %v265, 52
            %vm472 = vcmp.ge.s32.totalorder %v267, 52
            %vm473 = vcmp.ge.s32.totalorder %v269, 52
            %vm474 = vcmp.ge.s32.totalorder %v271, 52
            %vm475 = vcmp.ge.s32.totalorder %v273, 52
            %vm476 = vcmp.ge.s32.totalorder %v275, 52
            %vm477 = vcmp.ge.s32.totalorder %v277, 52
            %v478 = vsel %vm470, 1, 0
            %v479 = vsel %vm471, 1, 0
            %v480 = vsel %vm472, 1, 0
            %v481 = vsel %vm473, 1, 0
            %v482 = vsel %vm474, 1, 0
            %v483 = vsel %vm475, 1, 0
            %v484 = vsel %vm476, 1, 0
            %v485 = vsel %vm477, 1, 0
            %v486 = vadd.s32 %v462, %v478
            %v487 = vadd.s32 %v463, %v479
            %v488 = vadd.s32 %v464, %v480
            %v489 = vadd.s32 %v465, %v481
            %v490 = vadd.s32 %v466, %v482
            %v491 = vadd.s32 %v467, %v483
            %v492 = vadd.s32 %v468, %v484
            %v493 = vadd.s32 %v469, %v485
            %vm494 = vcmp.ge.s32.totalorder %v263, 59
            %vm495 = vcmp.ge.s32.totalorder %v265, 59
            %vm496 = vcmp.ge.s32.totalorder %v267, 59
            %vm497 = vcmp.ge.s32.totalorder %v269, 59
            %vm498 = vcmp.ge.s32.totalorder %v271, 59
            %vm499 = vcmp.ge.s32.totalorder %v273, 59
            %vm500 = vcmp.ge.s32.totalorder %v275, 59
            %vm501 = vcmp.ge.s32.totalorder %v277, 59
            %v502 = vsel %vm494, 1, 0
            %v503 = vsel %vm495, 1, 0
            %v504 = vsel %vm496, 1, 0
            %v505 = vsel %vm497, 1, 0
            %v506 = vsel %vm498, 1, 0
            %v507 = vsel %vm499, 1, 0
            %v508 = vsel %vm500, 1, 0
            %v509 = vsel %vm501, 1, 0
            %v510 = vadd.s32 %v486, %v502
            %v511 = vadd.s32 %v487, %v503
            %v512 = vadd.s32 %v488, %v504
            %v513 = vadd.s32 %v489, %v505
            %v514 = vadd.s32 %v490, %v506
            %v515 = vadd.s32 %v491, %v507
            %v516 = vadd.s32 %v492, %v508
            %v517 = vadd.s32 %v493, %v509
            %vm518 = vcmp.ge.s32.totalorder %v263, 67
            %vm519 = vcmp.ge.s32.totalorder %v265, 67
            %vm520 = vcmp.ge.s32.totalorder %v267, 67
            %vm521 = vcmp.ge.s32.totalorder %v269, 67
            %vm522 = vcmp.ge.s32.totalorder %v271, 67
            %vm523 = vcmp.ge.s32.totalorder %v273, 67
            %vm524 = vcmp.ge.s32.totalorder %v275, 67
            %vm525 = vcmp.ge.s32.totalorder %v277, 67
            %v526 = vsel %vm518, 1, 0
            %v527 = vsel %vm519, 1, 0
            %v528 = vsel %vm520, 1, 0
            %v529 = vsel %vm521, 1, 0
            %v530 = vsel %vm522, 1, 0
            %v531 = vsel %vm523, 1, 0
            %v532 = vsel %vm524, 1, 0
            %v533 = vsel %vm525, 1, 0
            %v534 = vadd.s32 %v510, %v526
            %v535 = vadd.s32 %v511, %v527
            %v536 = vadd.s32 %v512, %v528
            %v537 = vadd.s32 %v513, %v529
            %v538 = vadd.s32 %v514, %v530
            %v539 = vadd.s32 %v515, %v531
            %v540 = vadd.s32 %v516, %v532
            %v541 = vadd.s32 %v517, %v533
            %vm542 = vcmp.ge.s32.totalorder %v263, 77
            %vm543 = vcmp.ge.s32.totalorder %v265, 77
            %vm544 = vcmp.ge.s32.totalorder %v267, 77
            %vm545 = vcmp.ge.s32.totalorder %v269, 77
            %vm546 = vcmp.ge.s32.totalorder %v271, 77
            %vm547 = vcmp.ge.s32.totalorder %v273, 77
            %vm548 = vcmp.ge.s32.totalorder %v275, 77
            %vm549 = vcmp.ge.s32.totalorder %v277, 77
            %v550 = vsel %vm542, 1, 0
            %v551 = vsel %vm543, 1, 0
            %v552 = vsel %vm544, 1, 0
            %v553 = vsel %vm545, 1, 0
            %v554 = vsel %vm546, 1, 0
            %v555 = vsel %vm547, 1, 0
            %v556 = vsel %vm548, 1, 0
            %v557 = vsel %vm549, 1, 0
            %v558 = vadd.s32 %v534, %v550
            %v559 = vadd.s32 %v535, %v551
            %v560 = vadd.s32 %v536, %v552
            %v561 = vadd.s32 %v537, %v553
            %v562 = vadd.s32 %v538, %v554
            %v563 = vadd.s32 %v539, %v555
            %v564 = vadd.s32 %v540, %v556
            %v565 = vadd.s32 %v541, %v557
            %vm566 = vcmp.ge.s32.totalorder %v263, 87
            %vm567 = vcmp.ge.s32.totalorder %v265, 87
            %vm568 = vcmp.ge.s32.totalorder %v267, 87
            %vm569 = vcmp.ge.s32.totalorder %v269, 87
            %vm570 = vcmp.ge.s32.totalorder %v271, 87
            %vm571 = vcmp.ge.s32.totalorder %v273, 87
            %vm572 = vcmp.ge.s32.totalorder %v275, 87
            %vm573 = vcmp.ge.s32.totalorder %v277, 87
            %v574 = vsel %vm566, 1, 0
            %v575 = vsel %vm567, 1, 0
            %v576 = vsel %vm568, 1, 0
            %v577 = vsel %vm569, 1, 0
            %v578 = vsel %vm570, 1, 0
            %v579 = vsel %vm571, 1, 0
            %v580 = vsel %vm572, 1, 0
            %v581 = vsel %vm573, 1, 0
            %v582 = vadd.s32 %v558, %v574
            %v583 = vadd.s32 %v559, %v575
            %v584 = vadd.s32 %v560, %v576
            %v585 = vadd.s32 %v561, %v577
            %v586 = vadd.s32 %v562, %v578
            %v587 = vadd.s32 %v563, %v579
            %v588 = vadd.s32 %v564, %v580
            %v589 = vadd.s32 %v565, %v581
            %vm590 = vcmp.ge.s32.totalorder %v263, 99
            %vm591 = vcmp.ge.s32.totalorder %v265, 99
            %vm592 = vcmp.ge.s32.totalorder %v267, 99
            %vm593 = vcmp.ge.s32.totalorder %v269, 99
            %vm594 = vcmp.ge.s32.totalorder %v271, 99
            %vm595 = vcmp.ge.s32.totalorder %v273, 99
            %vm596 = vcmp.ge.s32.totalorder %v275, 99
            %vm597 = vcmp.ge.s32.totalorder %v277, 99
            %v598 = vsel %vm590, 1, 0
            %v599 = vsel %vm591, 1, 0
            %v600 = vsel %vm592, 1, 0
            %v601 = vsel %vm593, 1, 0
            %v602 = vsel %vm594, 1, 0
            %v603 = vsel %vm595, 1, 0
            %v604 = vsel %vm596, 1, 0
            %v605 = vsel %vm597, 1, 0
            %v606 = vadd.s32 %v582, %v598
            %v607 = vadd.s32 %v583, %v599
            %v608 = vadd.s32 %v584, %v600
            %v609 = vadd.s32 %v585, %v601
            %v610 = vadd.s32 %v586, %v602
            %v611 = vadd.s32 %v587, %v603
            %v612 = vadd.s32 %v588, %v604
            %v613 = vadd.s32 %v589, %v605
            %vm614 = vcmp.ge.s32.totalorder %v263, 113
            %vm615 = vcmp.ge.s32.totalorder %v265, 113
            %vm616 = vcmp.ge.s32.totalorder %v267, 113
            %vm617 = vcmp.ge.s32.totalorder %v269, 113
            %vm618 = vcmp.ge.s32.totalorder %v271, 113
            %vm619 = vcmp.ge.s32.totalorder %v273, 113
            %vm620 = vcmp.ge.s32.totalorder %v275, 113
            %vm621 = vcmp.ge.s32.totalorder %v277, 113
            %v622 = vsel %vm614, 1, 0
            %v623 = vsel %vm615, 1, 0
            %v624 = vsel %vm616, 1, 0
            %v625 = vsel %vm617, 1, 0
            %v626 = vsel %vm618, 1, 0
            %v627 = vsel %vm619, 1, 0
            %v628 = vsel %vm620, 1, 0
            %v629 = vsel %vm621, 1, 0
            %v630 = vadd.s32 %v606, %v622
            %v631 = vadd.s32 %v607, %v623
            %v632 = vadd.s32 %v608, %v624
            %v633 = vadd.s32 %v609, %v625
            %v634 = vadd.s32 %v610, %v626
            %v635 = vadd.s32 %v611, %v627
            %v636 = vadd.s32 %v612, %v628
            %v637 = vadd.s32 %v613, %v629
            %vm638 = vcmp.lt.s32.totalorder %v263, 16
            %vm639 = vcmp.lt.s32.totalorder %v265, 16
            %vm640 = vcmp.lt.s32.totalorder %v267, 16
            %vm641 = vcmp.lt.s32.totalorder %v269, 16
            %vm642 = vcmp.lt.s32.totalorder %v271, 16
            %vm643 = vcmp.lt.s32.totalorder %v273, 16
            %vm644 = vcmp.lt.s32.totalorder %v275, 16
            %vm645 = vcmp.lt.s32.totalorder %v277, 16
            %v646 = vsel %vm638, %v263, %v630
            %v647 = vsel %vm639, %v265, %v631
            %v648 = vsel %vm640, %v267, %v632
            %v649 = vsel %vm641, %v269, %v633
            %v650 = vsel %vm642, %v271, %v634
            %v651 = vsel %vm643, %v273, %v635
            %v652 = vsel %vm644, %v275, %v636
            %v653 = vsel %vm645, %v277, %v637
            %v654 = vcombine.low %v646, %v647
            %v655 = vcombine.high %v646, %v647
            %v656 = vcombine.low %v648, %v649
            %v657 = vcombine.high %v648, %v649
            %v658 = vcombine.low %v650, %v651
            %v659 = vcombine.high %v650, %v651
            %v660 = vcombine.low %v652, %v653
            %v661 = vcombine.high %v652, %v653
            %v663 = vunpack.c.l.s4 1935823168
            %v664 = vunpack.c.0.s8 %v663
            %v665 = vlaneseq
            %v666 = vshrl.u32 %v665, 7
            %v667 = vsub.s32 %v664, %v666
            %v668 = vrot.slane %v654, %v667
            %v670 = vunpack.c.l.s4 1935823168
            %v671 = vunpack.c.0.s8 %v670
            %v672 = vlaneseq
            %v673 = vshrl.u32 %v672, 7
            %v674 = vsub.s32 %v671, %v673
            %v675 = vrot.slane %v655, %v674
            %v677 = vunpack.c.l.s4 1935823168
            %v678 = vunpack.c.0.s8 %v677
            %v679 = vlaneseq
            %v680 = vshrl.u32 %v679, 7
            %v681 = vsub.s32 %v678, %v680
            %v682 = vrot.slane %v656, %v681
            %v684 = vunpack.c.l.s4 1935823168
            %v685 = vunpack.c.0.s8 %v684
            %v686 = vlaneseq
            %v687 = vshrl.u32 %v686, 7
            %v688 = vsub.s32 %v685, %v687
            %v689 = vrot.slane %v657, %v688
            %v691 = vunpack.c.l.s4 1935823168
            %v692 = vunpack.c.0.s8 %v691
            %v693 = vlaneseq
            %v694 = vshrl.u32 %v693, 7
            %v695 = vsub.s32 %v692, %v694
            %v696 = vrot.slane %v658, %v695
            %v698 = vunpack.c.l.s4 1935823168
            %v699 = vunpack.c.0.s8 %v698
            %v700 = vlaneseq
            %v701 = vshrl.u32 %v700, 7
            %v702 = vsub.s32 %v699, %v701
            %v703 = vrot.slane %v659, %v702
            %v705 = vunpack.c.l.s4 1935823168
            %v706 = vunpack.c.0.s8 %v705
            %v707 = vlaneseq
            %v708 = vshrl.u32 %v707, 7
            %v709 = vsub.s32 %v706, %v708
            %v710 = vrot.slane %v660, %v709
            %v712 = vunpack.c.l.s4 1935823168
            %v713 = vunpack.c.0.s8 %v712
            %v714 = vlaneseq
            %v715 = vshrl.u32 %v714, 7
            %v716 = vsub.s32 %v713, %v715
            %v717 = vrot.slane %v661, %v716
            %v718 = vlaneseq
            %v719 = vshrl.u32 %v718, 7
            %v720 = vsub.s32 0, %v719
            %v721 = vrot.slane %v668, %v720
            %v722 = vlaneseq
            %v723 = vshrl.u32 %v722, 7
            %v724 = vsub.s32 1, %v723
            %v725 = vrot.slane %v668, %v724
            %v726 = vlaneseq
            %v727 = vshrl.u32 %v726, 7
            %v728 = vsub.s32 2, %v727
            %v729 = vrot.slane %v668, %v728
            %v730 = vlaneseq
            %v731 = vshrl.u32 %v730, 7
            %v732 = vsub.s32 3, %v731
            %v733 = vrot.slane %v668, %v732
            %v734 = vlaneseq
            %v735 = vshrl.u32 %v734, 7
            %v736 = vsub.s32 4, %v735
            %v737 = vrot.slane %v668, %v736
            %v738 = vlaneseq
            %v739 = vshrl.u32 %v738, 7
            %v740 = vsub.s32 5, %v739
            %v741 = vrot.slane %v668, %v740
            %v742 = vlaneseq
            %v743 = vshrl.u32 %v742, 7
            %v744 = vsub.s32 6, %v743
            %v745 = vrot.slane %v668, %v744
            %v746 = vlaneseq
            %v747 = vshrl.u32 %v746, 7
            %v748 = vsub.s32 7, %v747
            %v749 = vrot.slane %v668, %v748
            %v750 = vlaneseq
            %v751 = vshrl.u32 %v750, 7
            %v752 = vsub.s32 0, %v751
            %v753 = vrot.slane %v675, %v752
            %v754 = vlaneseq
            %v755 = vshrl.u32 %v754, 7
            %v756 = vsub.s32 1, %v755
            %v757 = vrot.slane %v675, %v756
            %v758 = vlaneseq
            %v759 = vshrl.u32 %v758, 7
            %v760 = vsub.s32 2, %v759
            %v761 = vrot.slane %v675, %v760
            %v762 = vlaneseq
            %v763 = vshrl.u32 %v762, 7
            %v764 = vsub.s32 3, %v763
            %v765 = vrot.slane %v675, %v764
            %v766 = vlaneseq
            %v767 = vshrl.u32 %v766, 7
            %v768 = vsub.s32 4, %v767
            %v769 = vrot.slane %v675, %v768
            %v770 = vlaneseq
            %v771 = vshrl.u32 %v770, 7
            %v772 = vsub.s32 5, %v771
            %v773 = vrot.slane %v675, %v772
            %v774 = vlaneseq
            %v775 = vshrl.u32 %v774, 7
            %v776 = vsub.s32 6, %v775
            %v777 = vrot.slane %v675, %v776
            %v778 = vlaneseq
            %v779 = vshrl.u32 %v778, 7
            %v780 = vsub.s32 7, %v779
            %v781 = vrot.slane %v675, %v780
            %v782 = vlaneseq
            %v783 = vshrl.u32 %v782, 7
            %v784 = vsub.s32 0, %v783
            %v785 = vrot.slane %v682, %v784
            %v786 = vlaneseq
            %v787 = vshrl.u32 %v786, 7
            %v788 = vsub.s32 1, %v787
            %v789 = vrot.slane %v682, %v788
            %v790 = vlaneseq
            %v791 = vshrl.u32 %v790, 7
            %v792 = vsub.s32 2, %v791
            %v793 = vrot.slane %v682, %v792
            %v794 = vlaneseq
            %v795 = vshrl.u32 %v794, 7
            %v796 = vsub.s32 3, %v795
            %v797 = vrot.slane %v682, %v796
            %v798 = vlaneseq
            %v799 = vshrl.u32 %v798, 7
            %v800 = vsub.s32 4, %v799
            %v801 = vrot.slane %v682, %v800
            %v802 = vlaneseq
            %v803 = vshrl.u32 %v802, 7
            %v804 = vsub.s32 5, %v803
            %v805 = vrot.slane %v682, %v804
            %v806 = vlaneseq
            %v807 = vshrl.u32 %v806, 7
            %v808 = vsub.s32 6, %v807
            %v809 = vrot.slane %v682, %v808
            %v810 = vlaneseq
            %v811 = vshrl.u32 %v810, 7
            %v812 = vsub.s32 7, %v811
            %v813 = vrot.slane %v682, %v812
            %v814 = vlaneseq
            %v815 = vshrl.u32 %v814, 7
            %v816 = vsub.s32 0, %v815
            %v817 = vrot.slane %v689, %v816
            %v818 = vlaneseq
            %v819 = vshrl.u32 %v818, 7
            %v820 = vsub.s32 1, %v819
            %v821 = vrot.slane %v689, %v820
            %v822 = vlaneseq
            %v823 = vshrl.u32 %v822, 7
            %v824 = vsub.s32 2, %v823
            %v825 = vrot.slane %v689, %v824
            %v826 = vlaneseq
            %v827 = vshrl.u32 %v826, 7
            %v828 = vsub.s32 3, %v827
            %v829 = vrot.slane %v689, %v828
            %v830 = vlaneseq
            %v831 = vshrl.u32 %v830, 7
            %v832 = vsub.s32 4, %v831
            %v833 = vrot.slane %v689, %v832
            %v834 = vlaneseq
            %v835 = vshrl.u32 %v834, 7
            %v836 = vsub.s32 5, %v835
            %v837 = vrot.slane %v689, %v836
            %v838 = vlaneseq
            %v839 = vshrl.u32 %v838, 7
            %v840 = vsub.s32 6, %v839
            %v841 = vrot.slane %v689, %v840
            %v842 = vlaneseq
            %v843 = vshrl.u32 %v842, 7
            %v844 = vsub.s32 7, %v843
            %v845 = vrot.slane %v689, %v844
            %v846 = vlaneseq
            %v847 = vshrl.u32 %v846, 7
            %v848 = vsub.s32 0, %v847
            %v849 = vrot.slane %v696, %v848
            %v850 = vlaneseq
            %v851 = vshrl.u32 %v850, 7
            %v852 = vsub.s32 1, %v851
            %v853 = vrot.slane %v696, %v852
            %v854 = vlaneseq
            %v855 = vshrl.u32 %v854, 7
            %v856 = vsub.s32 2, %v855
            %v857 = vrot.slane %v696, %v856
            %v858 = vlaneseq
            %v859 = vshrl.u32 %v858, 7
            %v860 = vsub.s32 3, %v859
            %v861 = vrot.slane %v696, %v860
            %v862 = vlaneseq
            %v863 = vshrl.u32 %v862, 7
            %v864 = vsub.s32 4, %v863
            %v865 = vrot.slane %v696, %v864
            %v866 = vlaneseq
            %v867 = vshrl.u32 %v866, 7
            %v868 = vsub.s32 5, %v867
            %v869 = vrot.slane %v696, %v868
            %v870 = vlaneseq
            %v871 = vshrl.u32 %v870, 7
            %v872 = vsub.s32 6, %v871
            %v873 = vrot.slane %v696, %v872
            %v874 = vlaneseq
            %v875 = vshrl.u32 %v874, 7
            %v876 = vsub.s32 7, %v875
            %v877 = vrot.slane %v696, %v876
            %v878 = vlaneseq
            %v879 = vshrl.u32 %v878, 7
            %v880 = vsub.s32 0, %v879
            %v881 = vrot.slane %v703, %v880
            %v882 = vlaneseq
            %v883 = vshrl.u32 %v882, 7
            %v884 = vsub.s32 1, %v883
            %v885 = vrot.slane %v703, %v884
            %v886 = vlaneseq
            %v887 = vshrl.u32 %v886, 7
            %v888 = vsub.s32 2, %v887
            %v889 = vrot.slane %v703, %v888
            %v890 = vlaneseq
            %v891 = vshrl.u32 %v890, 7
            %v892 = vsub.s32 3, %v891
            %v893 = vrot.slane %v703, %v892
            %v894 = vlaneseq
            %v895 = vshrl.u32 %v894, 7
            %v896 = vsub.s32 4, %v895
            %v897 = vrot.slane %v703, %v896
            %v898 = vlaneseq
            %v899 = vshrl.u32 %v898, 7
            %v900 = vsub.s32 5, %v899
            %v901 = vrot.slane %v703, %v900
            %v902 = vlaneseq
            %v903 = vshrl.u32 %v902, 7
            %v904 = vsub.s32 6, %v903
            %v905 = vrot.slane %v703, %v904
            %v906 = vlaneseq
            %v907 = vshrl.u32 %v906, 7
            %v908 = vsub.s32 7, %v907
            %v909 = vrot.slane %v703, %v908
            %v910 = vlaneseq
            %v911 = vshrl.u32 %v910, 7
            %v912 = vsub.s32 0, %v911
            %v913 = vrot.slane %v710, %v912
            %v914 = vlaneseq
            %v915 = vshrl.u32 %v914, 7
            %v916 = vsub.s32 1, %v915
            %v917 = vrot.slane %v710, %v916
            %v918 = vlaneseq
            %v919 = vshrl.u32 %v918, 7
            %v920 = vsub.s32 2, %v919
            %v921 = vrot.slane %v710, %v920
            %v922 = vlaneseq
            %v923 = vshrl.u32 %v922, 7
            %v924 = vsub.s32 3, %v923
            %v925 = vrot.slane %v710, %v924
            %v926 = vlaneseq
            %v927 = vshrl.u32 %v926, 7
            %v928 = vsub.s32 4, %v927
            %v929 = vrot.slane %v710, %v928
            %v930 = vlaneseq
            %v931 = vshrl.u32 %v930, 7
            %v932 = vsub.s32 5, %v931
            %v933 = vrot.slane %v710, %v932
            %v934 = vlaneseq
            %v935 = vshrl.u32 %v934, 7
            %v936 = vsub.s32 6, %v935
            %v937 = vrot.slane %v710, %v936
            %v938 = vlaneseq
            %v939 = vshrl.u32 %v938, 7
            %v940 = vsub.s32 7, %v939
            %v941 = vrot.slane %v710, %v940
            %v942 = vlaneseq
            %v943 = vshrl.u32 %v942, 7
            %v944 = vsub.s32 0, %v943
            %v945 = vrot.slane %v717, %v944
            %v946 = vlaneseq
            %v947 = vshrl.u32 %v946, 7
            %v948 = vsub.s32 1, %v947
            %v949 = vrot.slane %v717, %v948
            %v950 = vlaneseq
            %v951 = vshrl.u32 %v950, 7
            %v952 = vsub.s32 2, %v951
            %v953 = vrot.slane %v717, %v952
            %v954 = vlaneseq
            %v955 = vshrl.u32 %v954, 7
            %v956 = vsub.s32 3, %v955
            %v957 = vrot.slane %v717, %v956
            %v958 = vlaneseq
            %v959 = vshrl.u32 %v958, 7
            %v960 = vsub.s32 4, %v959
            %v961 = vrot.slane %v717, %v960
            %v962 = vlaneseq
            %v963 = vshrl.u32 %v962, 7
            %v964 = vsub.s32 5, %v963
            %v965 = vrot.slane %v717, %v964
            %v966 = vlaneseq
            %v967 = vshrl.u32 %v966, 7
            %v968 = vsub.s32 6, %v967
            %v969 = vrot.slane %v717, %v968
            %v970 = vlaneseq
            %v971 = vshrl.u32 %v970, 7
            %v972 = vsub.s32 7, %v971
            %v973 = vrot.slane %v717, %v972
            %vm974 = vcmp.eq.s32.totalorder %v721, %v239
            %vm975 = vcmp.eq.s32.totalorder %v725, %v239
            %vm976 = vcmp.eq.s32.totalorder %v729, %v239
            %vm977 = vcmp.eq.s32.totalorder %v733, %v239
            %vm978 = vcmp.eq.s32.totalorder %v737, %v239
            %vm979 = vcmp.eq.s32.totalorder %v741, %v239
            %vm980 = vcmp.eq.s32.totalorder %v745, %v239
            %vm981 = vcmp.eq.s32.totalorder %v749, %v239
            %vm982 = vcmp.eq.s32.totalorder %v753, %v239
            %vm983 = vcmp.eq.s32.totalorder %v757, %v239
            %vm984 = vcmp.eq.s32.totalorder %v761, %v239
            %vm985 = vcmp.eq.s32.totalorder %v765, %v239
            %vm986 = vcmp.eq.s32.totalorder %v769, %v239
            %vm987 = vcmp.eq.s32.totalorder %v773, %v239
            %vm988 = vcmp.eq.s32.totalorder %v777, %v239
            %vm989 = vcmp.eq.s32.totalorder %v781, %v239
            %vm990 = vcmp.eq.s32.totalorder %v785, %v239
            %vm991 = vcmp.eq.s32.totalorder %v789, %v239
            %vm992 = vcmp.eq.s32.totalorder %v793, %v239
            %vm993 = vcmp.eq.s32.totalorder %v797, %v239
            %vm994 = vcmp.eq.s32.totalorder %v801, %v239
            %vm995 = vcmp.eq.s32.totalorder %v805, %v239
            %vm996 = vcmp.eq.s32.totalorder %v809, %v239
            %vm997 = vcmp.eq.s32.totalorder %v813, %v239
            %vm998 = vcmp.eq.s32.totalorder %v817, %v239
            %vm999 = vcmp.eq.s32.totalorder %v821, %v239
            %vm1000 = vcmp.eq.s32.totalorder %v825, %v239
            %vm1001 = vcmp.eq.s32.totalorder %v829, %v239
            %vm1002 = vcmp.eq.s32.totalorder %v833, %v239
            %vm1003 = vcmp.eq.s32.totalorder %v837, %v239
            %vm1004 = vcmp.eq.s32.totalorder %v841, %v239
            %vm1005 = vcmp.eq.s32.totalorder %v845, %v239
            %vm1006 = vcmp.eq.s32.totalorder %v849, %v239
            %vm1007 = vcmp.eq.s32.totalorder %v853, %v239
            %vm1008 = vcmp.eq.s32.totalorder %v857, %v239
            %vm1009 = vcmp.eq.s32.totalorder %v861, %v239
            %vm1010 = vcmp.eq.s32.totalorder %v865, %v239
            %vm1011 = vcmp.eq.s32.totalorder %v869, %v239
            %vm1012 = vcmp.eq.s32.totalorder %v873, %v239
            %vm1013 = vcmp.eq.s32.totalorder %v877, %v239
            %vm1014 = vcmp.eq.s32.totalorder %v881, %v239
            %vm1015 = vcmp.eq.s32.totalorder %v885, %v239
            %vm1016 = vcmp.eq.s32.totalorder %v889, %v239
            %vm1017 = vcmp.eq.s32.totalorder %v893, %v239
            %vm1018 = vcmp.eq.s32.totalorder %v897, %v239
            %vm1019 = vcmp.eq.s32.totalorder %v901, %v239
            %vm1020 = vcmp.eq.s32.totalorder %v905, %v239
            %vm1021 = vcmp.eq.s32.totalorder %v909, %v239
            %vm1022 = vcmp.eq.s32.totalorder %v913, %v239
            %vm1023 = vcmp.eq.s32.totalorder %v917, %v239
            %vm1024 = vcmp.eq.s32.totalorder %v921, %v239
            %vm1025 = vcmp.eq.s32.totalorder %v925, %v239
            %vm1026 = vcmp.eq.s32.totalorder %v929, %v239
            %vm1027 = vcmp.eq.s32.totalorder %v933, %v239
            %vm1028 = vcmp.eq.s32.totalorder %v937, %v239
            %vm1029 = vcmp.eq.s32.totalorder %v941, %v239
            %vm1030 = vcmp.eq.s32.totalorder %v945, %v239
            %vm1031 = vcmp.eq.s32.totalorder %v949, %v239
            %vm1032 = vcmp.eq.s32.totalorder %v953, %v239
            %vm1033 = vcmp.eq.s32.totalorder %v957, %v239
            %vm1034 = vcmp.eq.s32.totalorder %v961, %v239
            %vm1035 = vcmp.eq.s32.totalorder %v965, %v239
            %vm1036 = vcmp.eq.s32.totalorder %v969, %v239
            %vm1037 = vcmp.eq.s32.totalorder %v973, %v239
            %vm1038 = vcmp.eq.s32.totalorder %v721, %v240
            %vm1039 = vcmp.eq.s32.totalorder %v725, %v240
            %vm1040 = vcmp.eq.s32.totalorder %v729, %v240
            %vm1041 = vcmp.eq.s32.totalorder %v733, %v240
            %vm1042 = vcmp.eq.s32.totalorder %v737, %v240
            %vm1043 = vcmp.eq.s32.totalorder %v741, %v240
            %vm1044 = vcmp.eq.s32.totalorder %v745, %v240
            %vm1045 = vcmp.eq.s32.totalorder %v749, %v240
            %vm1046 = vcmp.eq.s32.totalorder %v753, %v240
            %vm1047 = vcmp.eq.s32.totalorder %v757, %v240
            %vm1048 = vcmp.eq.s32.totalorder %v761, %v240
            %vm1049 = vcmp.eq.s32.totalorder %v765, %v240
            %vm1050 = vcmp.eq.s32.totalorder %v769, %v240
            %vm1051 = vcmp.eq.s32.totalorder %v773, %v240
            %vm1052 = vcmp.eq.s32.totalorder %v777, %v240
            %vm1053 = vcmp.eq.s32.totalorder %v781, %v240
            %vm1054 = vcmp.eq.s32.totalorder %v785, %v240
            %vm1055 = vcmp.eq.s32.totalorder %v789, %v240
            %vm1056 = vcmp.eq.s32.totalorder %v793, %v240
            %vm1057 = vcmp.eq.s32.totalorder %v797, %v240
            %vm1058 = vcmp.eq.s32.totalorder %v801, %v240
            %vm1059 = vcmp.eq.s32.totalorder %v805, %v240
            %vm1060 = vcmp.eq.s32.totalorder %v809, %v240
            %vm1061 = vcmp.eq.s32.totalorder %v813, %v240
            %vm1062 = vcmp.eq.s32.totalorder %v817, %v240
            %vm1063 = vcmp.eq.s32.totalorder %v821, %v240
            %vm1064 = vcmp.eq.s32.totalorder %v825, %v240
            %vm1065 = vcmp.eq.s32.totalorder %v829, %v240
            %vm1066 = vcmp.eq.s32.totalorder %v833, %v240
            %vm1067 = vcmp.eq.s32.totalorder %v837, %v240
            %vm1068 = vcmp.eq.s32.totalorder %v841, %v240
            %vm1069 = vcmp.eq.s32.totalorder %v845, %v240
            %vm1070 = vcmp.eq.s32.totalorder %v849, %v240
            %vm1071 = vcmp.eq.s32.totalorder %v853, %v240
            %vm1072 = vcmp.eq.s32.totalorder %v857, %v240
            %vm1073 = vcmp.eq.s32.totalorder %v861, %v240
            %vm1074 = vcmp.eq.s32.totalorder %v865, %v240
            %vm1075 = vcmp.eq.s32.totalorder %v869, %v240
            %vm1076 = vcmp.eq.s32.totalorder %v873, %v240
            %vm1077 = vcmp.eq.s32.totalorder %v877, %v240
            %vm1078 = vcmp.eq.s32.totalorder %v881, %v240
            %vm1079 = vcmp.eq.s32.totalorder %v885, %v240
            %vm1080 = vcmp.eq.s32.totalorder %v889, %v240
            %vm1081 = vcmp.eq.s32.totalorder %v893, %v240
            %vm1082 = vcmp.eq.s32.totalorder %v897, %v240
            %vm1083 = vcmp.eq.s32.totalorder %v901, %v240
            %vm1084 = vcmp.eq.s32.totalorder %v905, %v240
            %vm1085 = vcmp.eq.s32.totalorder %v909, %v240
            %vm1086 = vcmp.eq.s32.totalorder %v913, %v240
            %vm1087 = vcmp.eq.s32.totalorder %v917, %v240
            %vm1088 = vcmp.eq.s32.totalorder %v921, %v240
            %vm1089 = vcmp.eq.s32.totalorder %v925, %v240
            %vm1090 = vcmp.eq.s32.totalorder %v929, %v240
            %vm1091 = vcmp.eq.s32.totalorder %v933, %v240
            %vm1092 = vcmp.eq.s32.totalorder %v937, %v240
            %vm1093 = vcmp.eq.s32.totalorder %v941, %v240
            %vm1094 = vcmp.eq.s32.totalorder %v945, %v240
            %vm1095 = vcmp.eq.s32.totalorder %v949, %v240
            %vm1096 = vcmp.eq.s32.totalorder %v953, %v240
            %vm1097 = vcmp.eq.s32.totalorder %v957, %v240
            %vm1098 = vcmp.eq.s32.totalorder %v961, %v240
            %vm1099 = vcmp.eq.s32.totalorder %v965, %v240
            %vm1100 = vcmp.eq.s32.totalorder %v969, %v240
            %vm1101 = vcmp.eq.s32.totalorder %v973, %v240
            %vm1102 = vcmp.eq.s32.totalorder %v721, %v241
            %vm1103 = vcmp.eq.s32.totalorder %v725, %v241
            %vm1104 = vcmp.eq.s32.totalorder %v729, %v241
            %vm1105 = vcmp.eq.s32.totalorder %v733, %v241
            %vm1106 = vcmp.eq.s32.totalorder %v737, %v241
            %vm1107 = vcmp.eq.s32.totalorder %v741, %v241
            %vm1108 = vcmp.eq.s32.totalorder %v745, %v241
            %vm1109 = vcmp.eq.s32.totalorder %v749, %v241
            %vm1110 = vcmp.eq.s32.totalorder %v753, %v241
            %vm1111 = vcmp.eq.s32.totalorder %v757, %v241
            %vm1112 = vcmp.eq.s32.totalorder %v761, %v241
            %vm1113 = vcmp.eq.s32.totalorder %v765, %v241
            %vm1114 = vcmp.eq.s32.totalorder %v769, %v241
            %vm1115 = vcmp.eq.s32.totalorder %v773, %v241
            %vm1116 = vcmp.eq.s32.totalorder %v777, %v241
            %vm1117 = vcmp.eq.s32.totalorder %v781, %v241
            %vm1118 = vcmp.eq.s32.totalorder %v785, %v241
            %vm1119 = vcmp.eq.s32.totalorder %v789, %v241
            %vm1120 = vcmp.eq.s32.totalorder %v793, %v241
            %vm1121 = vcmp.eq.s32.totalorder %v797, %v241
            %vm1122 = vcmp.eq.s32.totalorder %v801, %v241
            %vm1123 = vcmp.eq.s32.totalorder %v805, %v241
            %vm1124 = vcmp.eq.s32.totalorder %v809, %v241
            %vm1125 = vcmp.eq.s32.totalorder %v813, %v241
            %vm1126 = vcmp.eq.s32.totalorder %v817, %v241
            %vm1127 = vcmp.eq.s32.totalorder %v821, %v241
            %vm1128 = vcmp.eq.s32.totalorder %v825, %v241
            %vm1129 = vcmp.eq.s32.totalorder %v829, %v241
            %vm1130 = vcmp.eq.s32.totalorder %v833, %v241
            %vm1131 = vcmp.eq.s32.totalorder %v837, %v241
            %vm1132 = vcmp.eq.s32.totalorder %v841, %v241
            %vm1133 = vcmp.eq.s32.totalorder %v845, %v241
            %vm1134 = vcmp.eq.s32.totalorder %v849, %v241
            %vm1135 = vcmp.eq.s32.totalorder %v853, %v241
            %vm1136 = vcmp.eq.s32.totalorder %v857, %v241
            %vm1137 = vcmp.eq.s32.totalorder %v861, %v241
            %vm1138 = vcmp.eq.s32.totalorder %v865, %v241
            %vm1139 = vcmp.eq.s32.totalorder %v869, %v241
            %vm1140 = vcmp.eq.s32.totalorder %v873, %v241
            %vm1141 = vcmp.eq.s32.totalorder %v877, %v241
            %vm1142 = vcmp.eq.s32.totalorder %v881, %v241
            %vm1143 = vcmp.eq.s32.totalorder %v885, %v241
            %vm1144 = vcmp.eq.s32.totalorder %v889, %v241
            %vm1145 = vcmp.eq.s32.totalorder %v893, %v241
            %vm1146 = vcmp.eq.s32.totalorder %v897, %v241
            %vm1147 = vcmp.eq.s32.totalorder %v901, %v241
            %vm1148 = vcmp.eq.s32.totalorder %v905, %v241
            %vm1149 = vcmp.eq.s32.totalorder %v909, %v241
            %vm1150 = vcmp.eq.s32.totalorder %v913, %v241
            %vm1151 = vcmp.eq.s32.totalorder %v917, %v241
            %vm1152 = vcmp.eq.s32.totalorder %v921, %v241
            %vm1153 = vcmp.eq.s32.totalorder %v925, %v241
            %vm1154 = vcmp.eq.s32.totalorder %v929, %v241
            %vm1155 = vcmp.eq.s32.totalorder %v933, %v241
            %vm1156 = vcmp.eq.s32.totalorder %v937, %v241
            %vm1157 = vcmp.eq.s32.totalorder %v941, %v241
            %vm1158 = vcmp.eq.s32.totalorder %v945, %v241
            %vm1159 = vcmp.eq.s32.totalorder %v949, %v241
            %vm1160 = vcmp.eq.s32.totalorder %v953, %v241
            %vm1161 = vcmp.eq.s32.totalorder %v957, %v241
            %vm1162 = vcmp.eq.s32.totalorder %v961, %v241
            %vm1163 = vcmp.eq.s32.totalorder %v965, %v241
            %vm1164 = vcmp.eq.s32.totalorder %v969, %v241
            %vm1165 = vcmp.eq.s32.totalorder %v973, %v241
            %vm1166 = vcmp.eq.s32.totalorder %v721, %v242
            %vm1167 = vcmp.eq.s32.totalorder %v725, %v242
            %vm1168 = vcmp.eq.s32.totalorder %v729, %v242
            %vm1169 = vcmp.eq.s32.totalorder %v733, %v242
            %vm1170 = vcmp.eq.s32.totalorder %v737, %v242
            %vm1171 = vcmp.eq.s32.totalorder %v741, %v242
            %vm1172 = vcmp.eq.s32.totalorder %v745, %v242
            %vm1173 = vcmp.eq.s32.totalorder %v749, %v242
            %vm1174 = vcmp.eq.s32.totalorder %v753, %v242
            %vm1175 = vcmp.eq.s32.totalorder %v757, %v242
            %vm1176 = vcmp.eq.s32.totalorder %v761, %v242
            %vm1177 = vcmp.eq.s32.totalorder %v765, %v242
            %vm1178 = vcmp.eq.s32.totalorder %v769, %v242
            %vm1179 = vcmp.eq.s32.totalorder %v773, %v242
            %vm1180 = vcmp.eq.s32.totalorder %v777, %v242
            %vm1181 = vcmp.eq.s32.totalorder %v781, %v242
            %vm1182 = vcmp.eq.s32.totalorder %v785, %v242
            %vm1183 = vcmp.eq.s32.totalorder %v789, %v242
            %vm1184 = vcmp.eq.s32.totalorder %v793, %v242
            %vm1185 = vcmp.eq.s32.totalorder %v797, %v242
            %vm1186 = vcmp.eq.s32.totalorder %v801, %v242
            %vm1187 = vcmp.eq.s32.totalorder %v805, %v242
            %vm1188 = vcmp.eq.s32.totalorder %v809, %v242
            %vm1189 = vcmp.eq.s32.totalorder %v813, %v242
            %vm1190 = vcmp.eq.s32.totalorder %v817, %v242
            %vm1191 = vcmp.eq.s32.totalorder %v821, %v242
            %vm1192 = vcmp.eq.s32.totalorder %v825, %v242
            %vm1193 = vcmp.eq.s32.totalorder %v829, %v242
            %vm1194 = vcmp.eq.s32.totalorder %v833, %v242
            %vm1195 = vcmp.eq.s32.totalorder %v837, %v242
            %vm1196 = vcmp.eq.s32.totalorder %v841, %v242
            %vm1197 = vcmp.eq.s32.totalorder %v845, %v242
            %vm1198 = vcmp.eq.s32.totalorder %v849, %v242
            %vm1199 = vcmp.eq.s32.totalorder %v853, %v242
            %vm1200 = vcmp.eq.s32.totalorder %v857, %v242
            %vm1201 = vcmp.eq.s32.totalorder %v861, %v242
            %vm1202 = vcmp.eq.s32.totalorder %v865, %v242
            %vm1203 = vcmp.eq.s32.totalorder %v869, %v242
            %vm1204 = vcmp.eq.s32.totalorder %v873, %v242
            %vm1205 = vcmp.eq.s32.totalorder %v877, %v242
            %vm1206 = vcmp.eq.s32.totalorder %v881, %v242
            %vm1207 = vcmp.eq.s32.totalorder %v885, %v242
            %vm1208 = vcmp.eq.s32.totalorder %v889, %v242
            %vm1209 = vcmp.eq.s32.totalorder %v893, %v242
            %vm1210 = vcmp.eq.s32.totalorder %v897, %v242
            %vm1211 = vcmp.eq.s32.totalorder %v901, %v242
            %vm1212 = vcmp.eq.s32.totalorder %v905, %v242
            %vm1213 = vcmp.eq.s32.totalorder %v909, %v242
            %vm1214 = vcmp.eq.s32.totalorder %v913, %v242
            %vm1215 = vcmp.eq.s32.totalorder %v917, %v242
            %vm1216 = vcmp.eq.s32.totalorder %v921, %v242
            %vm1217 = vcmp.eq.s32.totalorder %v925, %v242
            %vm1218 = vcmp.eq.s32.totalorder %v929, %v242
            %vm1219 = vcmp.eq.s32.totalorder %v933, %v242
            %vm1220 = vcmp.eq.s32.totalorder %v937, %v242
            %vm1221 = vcmp.eq.s32.totalorder %v941, %v242
            %vm1222 = vcmp.eq.s32.totalorder %v945, %v242
            %vm1223 = vcmp.eq.s32.totalorder %v949, %v242
            %vm1224 = vcmp.eq.s32.totalorder %v953, %v242
            %vm1225 = vcmp.eq.s32.totalorder %v957, %v242
            %vm1226 = vcmp.eq.s32.totalorder %v961, %v242
            %vm1227 = vcmp.eq.s32.totalorder %v965, %v242
            %vm1228 = vcmp.eq.s32.totalorder %v969, %v242
            %vm1229 = vcmp.eq.s32.totalorder %v973, %v242
            %v1230 = vsel %vm974, 1, 0
            %v1231 = vsel %vm975, 1, 0
            %v1232 = vsel %vm976, 1, 0
            %v1233 = vsel %vm977, 1, 0
            %v1234 = vsel %vm978, 1, 0
            %v1235 = vsel %vm979, 1, 0
            %v1236 = vsel %vm980, 1, 0
            %v1237 = vsel %vm981, 1, 0
            %v1238 = vsel %vm982, 1, 0
            %v1239 = vsel %vm983, 1, 0
            %v1240 = vsel %vm984, 1, 0
            %v1241 = vsel %vm985, 1, 0
            %v1242 = vsel %vm986, 1, 0
            %v1243 = vsel %vm987, 1, 0
            %v1244 = vsel %vm988, 1, 0
            %v1245 = vsel %vm989, 1, 0
            %v1246 = vsel %vm990, 1, 0
            %v1247 = vsel %vm991, 1, 0
            %v1248 = vsel %vm992, 1, 0
            %v1249 = vsel %vm993, 1, 0
            %v1250 = vsel %vm994, 1, 0
            %v1251 = vsel %vm995, 1, 0
            %v1252 = vsel %vm996, 1, 0
            %v1253 = vsel %vm997, 1, 0
            %v1254 = vsel %vm998, 1, 0
            %v1255 = vsel %vm999, 1, 0
            %v1256 = vsel %vm1000, 1, 0
            %v1257 = vsel %vm1001, 1, 0
            %v1258 = vsel %vm1002, 1, 0
            %v1259 = vsel %vm1003, 1, 0
            %v1260 = vsel %vm1004, 1, 0
            %v1261 = vsel %vm1005, 1, 0
            %v1262 = vsel %vm1006, 1, 0
            %v1263 = vsel %vm1007, 1, 0
            %v1264 = vsel %vm1008, 1, 0
            %v1265 = vsel %vm1009, 1, 0
            %v1266 = vsel %vm1010, 1, 0
            %v1267 = vsel %vm1011, 1, 0
            %v1268 = vsel %vm1012, 1, 0
            %v1269 = vsel %vm1013, 1, 0
            %v1270 = vsel %vm1014, 1, 0
            %v1271 = vsel %vm1015, 1, 0
            %v1272 = vsel %vm1016, 1, 0
            %v1273 = vsel %vm1017, 1, 0
            %v1274 = vsel %vm1018, 1, 0
            %v1275 = vsel %vm1019, 1, 0
            %v1276 = vsel %vm1020, 1, 0
            %v1277 = vsel %vm1021, 1, 0
            %v1278 = vsel %vm1022, 1, 0
            %v1279 = vsel %vm1023, 1, 0
            %v1280 = vsel %vm1024, 1, 0
            %v1281 = vsel %vm1025, 1, 0
            %v1282 = vsel %vm1026, 1, 0
            %v1283 = vsel %vm1027, 1, 0
            %v1284 = vsel %vm1028, 1, 0
            %v1285 = vsel %vm1029, 1, 0
            %v1286 = vsel %vm1030, 1, 0
            %v1287 = vsel %vm1031, 1, 0
            %v1288 = vsel %vm1032, 1, 0
            %v1289 = vsel %vm1033, 1, 0
            %v1290 = vsel %vm1034, 1, 0
            %v1291 = vsel %vm1035, 1, 0
            %v1292 = vsel %vm1036, 1, 0
            %v1293 = vsel %vm1037, 1, 0
            %v1294 = vsel %vm1038, 1, 0
            %v1295 = vsel %vm1039, 1, 0
            %v1296 = vsel %vm1040, 1, 0
            %v1297 = vsel %vm1041, 1, 0
            %v1298 = vsel %vm1042, 1, 0
            %v1299 = vsel %vm1043, 1, 0
            %v1300 = vsel %vm1044, 1, 0
            %v1301 = vsel %vm1045, 1, 0
            %v1302 = vsel %vm1046, 1, 0
            %v1303 = vsel %vm1047, 1, 0
            %v1304 = vsel %vm1048, 1, 0
            %v1305 = vsel %vm1049, 1, 0
            %v1306 = vsel %vm1050, 1, 0
            %v1307 = vsel %vm1051, 1, 0
            %v1308 = vsel %vm1052, 1, 0
            %v1309 = vsel %vm1053, 1, 0
            %v1310 = vsel %vm1054, 1, 0
            %v1311 = vsel %vm1055, 1, 0
            %v1312 = vsel %vm1056, 1, 0
            %v1313 = vsel %vm1057, 1, 0
            %v1314 = vsel %vm1058, 1, 0
            %v1315 = vsel %vm1059, 1, 0
            %v1316 = vsel %vm1060, 1, 0
            %v1317 = vsel %vm1061, 1, 0
            %v1318 = vsel %vm1062, 1, 0
            %v1319 = vsel %vm1063, 1, 0
            %v1320 = vsel %vm1064, 1, 0
            %v1321 = vsel %vm1065, 1, 0
            %v1322 = vsel %vm1066, 1, 0
            %v1323 = vsel %vm1067, 1, 0
            %v1324 = vsel %vm1068, 1, 0
            %v1325 = vsel %vm1069, 1, 0
            %v1326 = vsel %vm1070, 1, 0
            %v1327 = vsel %vm1071, 1, 0
            %v1328 = vsel %vm1072, 1, 0
            %v1329 = vsel %vm1073, 1, 0
            %v1330 = vsel %vm1074, 1, 0
            %v1331 = vsel %vm1075, 1, 0
            %v1332 = vsel %vm1076, 1, 0
            %v1333 = vsel %vm1077, 1, 0
            %v1334 = vsel %vm1078, 1, 0
            %v1335 = vsel %vm1079, 1, 0
            %v1336 = vsel %vm1080, 1, 0
            %v1337 = vsel %vm1081, 1, 0
            %v1338 = vsel %vm1082, 1, 0
            %v1339 = vsel %vm1083, 1, 0
            %v1340 = vsel %vm1084, 1, 0
            %v1341 = vsel %vm1085, 1, 0
            %v1342 = vsel %vm1086, 1, 0
            %v1343 = vsel %vm1087, 1, 0
            %v1344 = vsel %vm1088, 1, 0
            %v1345 = vsel %vm1089, 1, 0
            %v1346 = vsel %vm1090, 1, 0
            %v1347 = vsel %vm1091, 1, 0
            %v1348 = vsel %vm1092, 1, 0
            %v1349 = vsel %vm1093, 1, 0
            %v1350 = vsel %vm1094, 1, 0
            %v1351 = vsel %vm1095, 1, 0
            %v1352 = vsel %vm1096, 1, 0
            %v1353 = vsel %vm1097, 1, 0
            %v1354 = vsel %vm1098, 1, 0
            %v1355 = vsel %vm1099, 1, 0
            %v1356 = vsel %vm1100, 1, 0
            %v1357 = vsel %vm1101, 1, 0
            %v1358 = vsel %vm1102, 1, 0
            %v1359 = vsel %vm1103, 1, 0
            %v1360 = vsel %vm1104, 1, 0
            %v1361 = vsel %vm1105, 1, 0
            %v1362 = vsel %vm1106, 1, 0
            %v1363 = vsel %vm1107, 1, 0
            %v1364 = vsel %vm1108, 1, 0
            %v1365 = vsel %vm1109, 1, 0
            %v1366 = vsel %vm1110, 1, 0
            %v1367 = vsel %vm1111, 1, 0
            %v1368 = vsel %vm1112, 1, 0
            %v1369 = vsel %vm1113, 1, 0
            %v1370 = vsel %vm1114, 1, 0
            %v1371 = vsel %vm1115, 1, 0
            %v1372 = vsel %vm1116, 1, 0
            %v1373 = vsel %vm1117, 1, 0
            %v1374 = vsel %vm1118, 1, 0
            %v1375 = vsel %vm1119, 1, 0
            %v1376 = vsel %vm1120, 1, 0
            %v1377 = vsel %vm1121, 1, 0
            %v1378 = vsel %vm1122, 1, 0
            %v1379 = vsel %vm1123, 1, 0
            %v1380 = vsel %vm1124, 1, 0
            %v1381 = vsel %vm1125, 1, 0
            %v1382 = vsel %vm1126, 1, 0
            %v1383 = vsel %vm1127, 1, 0
            %v1384 = vsel %vm1128, 1, 0
            %v1385 = vsel %vm1129, 1, 0
            %v1386 = vsel %vm1130, 1, 0
            %v1387 = vsel %vm1131, 1, 0
            %v1388 = vsel %vm1132, 1, 0
            %v1389 = vsel %vm1133, 1, 0
            %v1390 = vsel %vm1134, 1, 0
            %v1391 = vsel %vm1135, 1, 0
            %v1392 = vsel %vm1136, 1, 0
            %v1393 = vsel %vm1137, 1, 0
            %v1394 = vsel %vm1138, 1, 0
            %v1395 = vsel %vm1139, 1, 0
            %v1396 = vsel %vm1140, 1, 0
            %v1397 = vsel %vm1141, 1, 0
            %v1398 = vsel %vm1142, 1, 0
            %v1399 = vsel %vm1143, 1, 0
            %v1400 = vsel %vm1144, 1, 0
            %v1401 = vsel %vm1145, 1, 0
            %v1402 = vsel %vm1146, 1, 0
            %v1403 = vsel %vm1147, 1, 0
            %v1404 = vsel %vm1148, 1, 0
            %v1405 = vsel %vm1149, 1, 0
            %v1406 = vsel %vm1150, 1, 0
            %v1407 = vsel %vm1151, 1, 0
            %v1408 = vsel %vm1152, 1, 0
            %v1409 = vsel %vm1153, 1, 0
            %v1410 = vsel %vm1154, 1, 0
            %v1411 = vsel %vm1155, 1, 0
            %v1412 = vsel %vm1156, 1, 0
            %v1413 = vsel %vm1157, 1, 0
            %v1414 = vsel %vm1158, 1, 0
            %v1415 = vsel %vm1159, 1, 0
            %v1416 = vsel %vm1160, 1, 0
            %v1417 = vsel %vm1161, 1, 0
            %v1418 = vsel %vm1162, 1, 0
            %v1419 = vsel %vm1163, 1, 0
            %v1420 = vsel %vm1164, 1, 0
            %v1421 = vsel %vm1165, 1, 0
            %v1422 = vsel %vm1166, 1, 0
            %v1423 = vsel %vm1167, 1, 0
            %v1424 = vsel %vm1168, 1, 0
            %v1425 = vsel %vm1169, 1, 0
            %v1426 = vsel %vm1170, 1, 0
            %v1427 = vsel %vm1171, 1, 0
            %v1428 = vsel %vm1172, 1, 0
            %v1429 = vsel %vm1173, 1, 0
            %v1430 = vsel %vm1174, 1, 0
            %v1431 = vsel %vm1175, 1, 0
            %v1432 = vsel %vm1176, 1, 0
            %v1433 = vsel %vm1177, 1, 0
            %v1434 = vsel %vm1178, 1, 0
            %v1435 = vsel %vm1179, 1, 0
            %v1436 = vsel %vm1180, 1, 0
            %v1437 = vsel %vm1181, 1, 0
            %v1438 = vsel %vm1182, 1, 0
            %v1439 = vsel %vm1183, 1, 0
            %v1440 = vsel %vm1184, 1, 0
            %v1441 = vsel %vm1185, 1, 0
            %v1442 = vsel %vm1186, 1, 0
            %v1443 = vsel %vm1187, 1, 0
            %v1444 = vsel %vm1188, 1, 0
            %v1445 = vsel %vm1189, 1, 0
            %v1446 = vsel %vm1190, 1, 0
            %v1447 = vsel %vm1191, 1, 0
            %v1448 = vsel %vm1192, 1, 0
            %v1449 = vsel %vm1193, 1, 0
            %v1450 = vsel %vm1194, 1, 0
            %v1451 = vsel %vm1195, 1, 0
            %v1452 = vsel %vm1196, 1, 0
            %v1453 = vsel %vm1197, 1, 0
            %v1454 = vsel %vm1198, 1, 0
            %v1455 = vsel %vm1199, 1, 0
            %v1456 = vsel %vm1200, 1, 0
            %v1457 = vsel %vm1201, 1, 0
            %v1458 = vsel %vm1202, 1, 0
            %v1459 = vsel %vm1203, 1, 0
            %v1460 = vsel %vm1204, 1, 0
            %v1461 = vsel %vm1205, 1, 0
            %v1462 = vsel %vm1206, 1, 0
            %v1463 = vsel %vm1207, 1, 0
            %v1464 = vsel %vm1208, 1, 0
            %v1465 = vsel %vm1209, 1, 0
            %v1466 = vsel %vm1210, 1, 0
            %v1467 = vsel %vm1211, 1, 0
            %v1468 = vsel %vm1212, 1, 0
            %v1469 = vsel %vm1213, 1, 0
            %v1470 = vsel %vm1214, 1, 0
            %v1471 = vsel %vm1215, 1, 0
            %v1472 = vsel %vm1216, 1, 0
            %v1473 = vsel %vm1217, 1, 0
            %v1474 = vsel %vm1218, 1, 0
            %v1475 = vsel %vm1219, 1, 0
            %v1476 = vsel %vm1220, 1, 0
            %v1477 = vsel %vm1221, 1, 0
            %v1478 = vsel %vm1222, 1, 0
            %v1479 = vsel %vm1223, 1, 0
            %v1480 = vsel %vm1224, 1, 0
            %v1481 = vsel %vm1225, 1, 0
            %v1482 = vsel %vm1226, 1, 0
            %v1483 = vsel %vm1227, 1, 0
            %v1484 = vsel %vm1228, 1, 0
            %v1485 = vsel %vm1229, 1, 0
            %v1486 = vcvt.s32.f32 %v1230
            %v1487 = vcvt.s32.f32 %v1231
            %v1488 = vcvt.s32.f32 %v1232
            %v1489 = vcvt.s32.f32 %v1233
            %v1490 = vcvt.s32.f32 %v1234
            %v1491 = vcvt.s32.f32 %v1235
            %v1492 = vcvt.s32.f32 %v1236
            %v1493 = vcvt.s32.f32 %v1237
            %v1494 = vcvt.s32.f32 %v1238
            %v1495 = vcvt.s32.f32 %v1239
            %v1496 = vcvt.s32.f32 %v1240
            %v1497 = vcvt.s32.f32 %v1241
            %v1498 = vcvt.s32.f32 %v1242
            %v1499 = vcvt.s32.f32 %v1243
            %v1500 = vcvt.s32.f32 %v1244
            %v1501 = vcvt.s32.f32 %v1245
            %v1502 = vcvt.s32.f32 %v1246
            %v1503 = vcvt.s32.f32 %v1247
            %v1504 = vcvt.s32.f32 %v1248
            %v1505 = vcvt.s32.f32 %v1249
            %v1506 = vcvt.s32.f32 %v1250
            %v1507 = vcvt.s32.f32 %v1251
            %v1508 = vcvt.s32.f32 %v1252
            %v1509 = vcvt.s32.f32 %v1253
            %v1510 = vcvt.s32.f32 %v1254
            %v1511 = vcvt.s32.f32 %v1255
            %v1512 = vcvt.s32.f32 %v1256
            %v1513 = vcvt.s32.f32 %v1257
            %v1514 = vcvt.s32.f32 %v1258
            %v1515 = vcvt.s32.f32 %v1259
            %v1516 = vcvt.s32.f32 %v1260
            %v1517 = vcvt.s32.f32 %v1261
            %v1518 = vcvt.s32.f32 %v1262
            %v1519 = vcvt.s32.f32 %v1263
            %v1520 = vcvt.s32.f32 %v1264
            %v1521 = vcvt.s32.f32 %v1265
            %v1522 = vcvt.s32.f32 %v1266
            %v1523 = vcvt.s32.f32 %v1267
            %v1524 = vcvt.s32.f32 %v1268
            %v1525 = vcvt.s32.f32 %v1269
            %v1526 = vcvt.s32.f32 %v1270
            %v1527 = vcvt.s32.f32 %v1271
            %v1528 = vcvt.s32.f32 %v1272
            %v1529 = vcvt.s32.f32 %v1273
            %v1530 = vcvt.s32.f32 %v1274
            %v1531 = vcvt.s32.f32 %v1275
            %v1532 = vcvt.s32.f32 %v1276
            %v1533 = vcvt.s32.f32 %v1277
            %v1534 = vcvt.s32.f32 %v1278
            %v1535 = vcvt.s32.f32 %v1279
            %v1536 = vcvt.s32.f32 %v1280
            %v1537 = vcvt.s32.f32 %v1281
            %v1538 = vcvt.s32.f32 %v1282
            %v1539 = vcvt.s32.f32 %v1283
            %v1540 = vcvt.s32.f32 %v1284
            %v1541 = vcvt.s32.f32 %v1285
            %v1542 = vcvt.s32.f32 %v1286
            %v1543 = vcvt.s32.f32 %v1287
            %v1544 = vcvt.s32.f32 %v1288
            %v1545 = vcvt.s32.f32 %v1289
            %v1546 = vcvt.s32.f32 %v1290
            %v1547 = vcvt.s32.f32 %v1291
            %v1548 = vcvt.s32.f32 %v1292
            %v1549 = vcvt.s32.f32 %v1293
            %v1550 = vcvt.s32.f32 %v1294
            %v1551 = vcvt.s32.f32 %v1295
            %v1552 = vcvt.s32.f32 %v1296
            %v1553 = vcvt.s32.f32 %v1297
            %v1554 = vcvt.s32.f32 %v1298
            %v1555 = vcvt.s32.f32 %v1299
            %v1556 = vcvt.s32.f32 %v1300
            %v1557 = vcvt.s32.f32 %v1301
            %v1558 = vcvt.s32.f32 %v1302
            %v1559 = vcvt.s32.f32 %v1303
            %v1560 = vcvt.s32.f32 %v1304
            %v1561 = vcvt.s32.f32 %v1305
            %v1562 = vcvt.s32.f32 %v1306
            %v1563 = vcvt.s32.f32 %v1307
            %v1564 = vcvt.s32.f32 %v1308
            %v1565 = vcvt.s32.f32 %v1309
            %v1566 = vcvt.s32.f32 %v1310
            %v1567 = vcvt.s32.f32 %v1311
            %v1568 = vcvt.s32.f32 %v1312
            %v1569 = vcvt.s32.f32 %v1313
            %v1570 = vcvt.s32.f32 %v1314
            %v1571 = vcvt.s32.f32 %v1315
            %v1572 = vcvt.s32.f32 %v1316
            %v1573 = vcvt.s32.f32 %v1317
            %v1574 = vcvt.s32.f32 %v1318
            %v1575 = vcvt.s32.f32 %v1319
            %v1576 = vcvt.s32.f32 %v1320
            %v1577 = vcvt.s32.f32 %v1321
            %v1578 = vcvt.s32.f32 %v1322
            %v1579 = vcvt.s32.f32 %v1323
            %v1580 = vcvt.s32.f32 %v1324
            %v1581 = vcvt.s32.f32 %v1325
            %v1582 = vcvt.s32.f32 %v1326
            %v1583 = vcvt.s32.f32 %v1327
            %v1584 = vcvt.s32.f32 %v1328
            %v1585 = vcvt.s32.f32 %v1329
            %v1586 = vcvt.s32.f32 %v1330
            %v1587 = vcvt.s32.f32 %v1331
            %v1588 = vcvt.s32.f32 %v1332
            %v1589 = vcvt.s32.f32 %v1333
            %v1590 = vcvt.s32.f32 %v1334
            %v1591 = vcvt.s32.f32 %v1335
            %v1592 = vcvt.s32.f32 %v1336
            %v1593 = vcvt.s32.f32 %v1337
            %v1594 = vcvt.s32.f32 %v1338
            %v1595 = vcvt.s32.f32 %v1339
            %v1596 = vcvt.s32.f32 %v1340
            %v1597 = vcvt.s32.f32 %v1341
            %v1598 = vcvt.s32.f32 %v1342
            %v1599 = vcvt.s32.f32 %v1343
            %v1600 = vcvt.s32.f32 %v1344
            %v1601 = vcvt.s32.f32 %v1345
            %v1602 = vcvt.s32.f32 %v1346
            %v1603 = vcvt.s32.f32 %v1347
            %v1604 = vcvt.s32.f32 %v1348
            %v1605 = vcvt.s32.f32 %v1349
            %v1606 = vcvt.s32.f32 %v1350
            %v1607 = vcvt.s32.f32 %v1351
            %v1608 = vcvt.s32.f32 %v1352
            %v1609 = vcvt.s32.f32 %v1353
            %v1610 = vcvt.s32.f32 %v1354
            %v1611 = vcvt.s32.f32 %v1355
            %v1612 = vcvt.s32.f32 %v1356
            %v1613 = vcvt.s32.f32 %v1357
            %v1614 = vcvt.s32.f32 %v1358
            %v1615 = vcvt.s32.f32 %v1359
            %v1616 = vcvt.s32.f32 %v1360
            %v1617 = vcvt.s32.f32 %v1361
            %v1618 = vcvt.s32.f32 %v1362
            %v1619 = vcvt.s32.f32 %v1363
            %v1620 = vcvt.s32.f32 %v1364
            %v1621 = vcvt.s32.f32 %v1365
            %v1622 = vcvt.s32.f32 %v1366
            %v1623 = vcvt.s32.f32 %v1367
            %v1624 = vcvt.s32.f32 %v1368
            %v1625 = vcvt.s32.f32 %v1369
            %v1626 = vcvt.s32.f32 %v1370
            %v1627 = vcvt.s32.f32 %v1371
            %v1628 = vcvt.s32.f32 %v1372
            %v1629 = vcvt.s32.f32 %v1373
            %v1630 = vcvt.s32.f32 %v1374
            %v1631 = vcvt.s32.f32 %v1375
            %v1632 = vcvt.s32.f32 %v1376
            %v1633 = vcvt.s32.f32 %v1377
            %v1634 = vcvt.s32.f32 %v1378
            %v1635 = vcvt.s32.f32 %v1379
            %v1636 = vcvt.s32.f32 %v1380
            %v1637 = vcvt.s32.f32 %v1381
            %v1638 = vcvt.s32.f32 %v1382
            %v1639 = vcvt.s32.f32 %v1383
            %v1640 = vcvt.s32.f32 %v1384
            %v1641 = vcvt.s32.f32 %v1385
            %v1642 = vcvt.s32.f32 %v1386
            %v1643 = vcvt.s32.f32 %v1387
            %v1644 = vcvt.s32.f32 %v1388
            %v1645 = vcvt.s32.f32 %v1389
            %v1646 = vcvt.s32.f32 %v1390
            %v1647 = vcvt.s32.f32 %v1391
            %v1648 = vcvt.s32.f32 %v1392
            %v1649 = vcvt.s32.f32 %v1393
            %v1650 = vcvt.s32.f32 %v1394
            %v1651 = vcvt.s32.f32 %v1395
            %v1652 = vcvt.s32.f32 %v1396
            %v1653 = vcvt.s32.f32 %v1397
            %v1654 = vcvt.s32.f32 %v1398
            %v1655 = vcvt.s32.f32 %v1399
            %v1656 = vcvt.s32.f32 %v1400
            %v1657 = vcvt.s32.f32 %v1401
            %v1658 = vcvt.s32.f32 %v1402
            %v1659 = vcvt.s32.f32 %v1403
            %v1660 = vcvt.s32.f32 %v1404
            %v1661 = vcvt.s32.f32 %v1405
            %v1662 = vcvt.s32.f32 %v1406
            %v1663 = vcvt.s32.f32 %v1407
            %v1664 = vcvt.s32.f32 %v1408
            %v1665 = vcvt.s32.f32 %v1409
            %v1666 = vcvt.s32.f32 %v1410
            %v1667 = vcvt.s32.f32 %v1411
            %v1668 = vcvt.s32.f32 %v1412
            %v1669 = vcvt.s32.f32 %v1413
            %v1670 = vcvt.s32.f32 %v1414
            %v1671 = vcvt.s32.f32 %v1415
            %v1672 = vcvt.s32.f32 %v1416
            %v1673 = vcvt.s32.f32 %v1417
            %v1674 = vcvt.s32.f32 %v1418
            %v1675 = vcvt.s32.f32 %v1419
            %v1676 = vcvt.s32.f32 %v1420
            %v1677 = vcvt.s32.f32 %v1421
            %v1678 = vcvt.s32.f32 %v1422
            %v1679 = vcvt.s32.f32 %v1423
            %v1680 = vcvt.s32.f32 %v1424
            %v1681 = vcvt.s32.f32 %v1425
            %v1682 = vcvt.s32.f32 %v1426
            %v1683 = vcvt.s32.f32 %v1427
            %v1684 = vcvt.s32.f32 %v1428
            %v1685 = vcvt.s32.f32 %v1429
            %v1686 = vcvt.s32.f32 %v1430
            %v1687 = vcvt.s32.f32 %v1431
            %v1688 = vcvt.s32.f32 %v1432
            %v1689 = vcvt.s32.f32 %v1433
            %v1690 = vcvt.s32.f32 %v1434
            %v1691 = vcvt.s32.f32 %v1435
            %v1692 = vcvt.s32.f32 %v1436
            %v1693 = vcvt.s32.f32 %v1437
            %v1694 = vcvt.s32.f32 %v1438
            %v1695 = vcvt.s32.f32 %v1439
            %v1696 = vcvt.s32.f32 %v1440
            %v1697 = vcvt.s32.f32 %v1441
            %v1698 = vcvt.s32.f32 %v1442
            %v1699 = vcvt.s32.f32 %v1443
            %v1700 = vcvt.s32.f32 %v1444
            %v1701 = vcvt.s32.f32 %v1445
            %v1702 = vcvt.s32.f32 %v1446
            %v1703 = vcvt.s32.f32 %v1447
            %v1704 = vcvt.s32.f32 %v1448
            %v1705 = vcvt.s32.f32 %v1449
            %v1706 = vcvt.s32.f32 %v1450
            %v1707 = vcvt.s32.f32 %v1451
            %v1708 = vcvt.s32.f32 %v1452
            %v1709 = vcvt.s32.f32 %v1453
            %v1710 = vcvt.s32.f32 %v1454
            %v1711 = vcvt.s32.f32 %v1455
            %v1712 = vcvt.s32.f32 %v1456
            %v1713 = vcvt.s32.f32 %v1457
            %v1714 = vcvt.s32.f32 %v1458
            %v1715 = vcvt.s32.f32 %v1459
            %v1716 = vcvt.s32.f32 %v1460
            %v1717 = vcvt.s32.f32 %v1461
            %v1718 = vcvt.s32.f32 %v1462
            %v1719 = vcvt.s32.f32 %v1463
            %v1720 = vcvt.s32.f32 %v1464
            %v1721 = vcvt.s32.f32 %v1465
            %v1722 = vcvt.s32.f32 %v1466
            %v1723 = vcvt.s32.f32 %v1467
            %v1724 = vcvt.s32.f32 %v1468
            %v1725 = vcvt.s32.f32 %v1469
            %v1726 = vcvt.s32.f32 %v1470
            %v1727 = vcvt.s32.f32 %v1471
            %v1728 = vcvt.s32.f32 %v1472
            %v1729 = vcvt.s32.f32 %v1473
            %v1730 = vcvt.s32.f32 %v1474
            %v1731 = vcvt.s32.f32 %v1475
            %v1732 = vcvt.s32.f32 %v1476
            %v1733 = vcvt.s32.f32 %v1477
            %v1734 = vcvt.s32.f32 %v1478
            %v1735 = vcvt.s32.f32 %v1479
            %v1736 = vcvt.s32.f32 %v1480
            %v1737 = vcvt.s32.f32 %v1481
            %v1738 = vcvt.s32.f32 %v1482
            %v1739 = vcvt.s32.f32 %v1483
            %v1740 = vcvt.s32.f32 %v1484
            %v1741 = vcvt.s32.f32 %v1485
            %vm1742 = vcmask 261120
            %v1744 = vsel %vm1742, %v229, 0
            %1746 = vmatprep.subr.mxu0 %v1487
            %1747 = vmatpush1.msra.mxu0 %v1486
            %1748 = vmatprep.subr.mxu0 %v1551
            %1749 = vmatpush1.msra.mxu0 %v1550
            %1750 = vmatprep.subr.mxu0 %v1615
            %1751 = vmatpush1.msra.mxu0 %v1614
            %1752 = vmatprep.subr.mxu0 %v1679
            %1753 = vmatpush1.msra.mxu0 %v1678
            %1754 = vmatprep.subr.mxu0 0.0
            %1755 = vmatpush1.msra.mxu0 0.0
            %1756 = vmatprep.subr.mxu0 0.0
            %1757 = vmatpush1.msra.mxu0 0.0
            %1758 = vmatprep.subr.mxu0 0.0
            %1759 = vmatpush1.msra.mxu0 0.0
            %1760 = vmatprep.subr.mxu0 0.0
            %1761 = vmatpush1.msra.mxu0 0.0
            %1762 = vmatprep.subr.mxu0 0.0
            %1763 = vmatpush1.msra.mxu0 0.0
            %1764 = vmatprep.subr.mxu0 0.0
            %1765 = vmatpush1.msra.mxu0 0.0
            %1766 = vmatprep.subr.mxu0 0.0
            %1767 = vmatpush1.msra.mxu0 0.0
            %1768 = vmatprep.subr.mxu0 0.0
            %1769 = vmatpush1.msra.mxu0 0.0
            %1770 = vmatprep.subr.mxu0 0.0
            %1771 = vmatpush1.msra.mxu0 0.0
            %1772 = vmatprep.subr.mxu0 0.0
            %1773 = vmatpush1.msra.mxu0 0.0
            %1774 = vmatprep.subr.mxu0 0.0
            %1775 = vmatpush1.msra.mxu0 0.0
            %1776 = vmatprep.subr.mxu0 0.0
            %1777 = vmatpush1.msra.mxu0 0.0
            %1778 = vmatprep.subr.mxu0 0.0
            %1779 = vmatpush1.msra.mxu0 0.0
            %1780 = vmatprep.subr.mxu0 0.0
            %1781 = vmatpush1.msra.mxu0 0.0
            %1782 = vmatprep.subr.mxu0 0.0
            %1783 = vmatpush1.msra.mxu0 0.0
            %1784 = vmatprep.subr.mxu0 0.0
            %1785 = vmatpush1.msra.mxu0 0.0
            %1786 = vmatprep.subr.mxu0 0.0
            %1787 = vmatpush1.msra.mxu0 0.0
            %1788 = vmatprep.subr.mxu0 0.0
            %1789 = vmatpush1.msra.mxu0 0.0
            %1790 = vmatprep.subr.mxu0 0.0
            %1791 = vmatpush1.msra.mxu0 0.0
            %1792 = vmatprep.subr.mxu0 0.0
            %1793 = vmatpush1.msra.mxu0 0.0
            %1794 = vmatprep.subr.mxu0 0.0
            %1795 = vmatpush1.msra.mxu0 0.0
            %1796 = vmatprep.subr.mxu0 0.0
            %1797 = vmatpush1.msra.mxu0 0.0
            %1798 = vmatprep.subr.mxu0 0.0
            %1799 = vmatpush1.msra.mxu0 0.0
            %1800 = vmatprep.subr.mxu0 0.0
            %1801 = vmatpush1.msra.mxu0 0.0
            %1802 = vmatprep.subr.mxu0 0.0
            %1803 = vmatpush1.msra.mxu0 0.0
            %1804 = vmatprep.subr.mxu0 0.0
            %1805 = vmatpush1.msra.mxu0 0.0
            %1806 = vmatprep.subr.mxu0 0.0
            %1807 = vmatpush1.msra.mxu0 0.0
            %1808 = vmatprep.subr.mxu0 0.0
            %1809 = vmatpush1.msra.mxu0 0.0
            %1810 = vmatprep.mubr.f32.mxu0 0.0
            %1811 = vmatmul.mubr.f32.gmra.mrb[0].mxu0 %v1744
            %v1812 = vpop.f32.mrb[0].mxu0
            %v1813 = vadd.f32 0.0, %v1812
            %v1814 = vpop.f32.mrb[0].mxu0
            %v1815 = vadd.f32 0.0, %v1814
            %1816 = vdwg.mxu0
            %1817 = vmatprep.subr.mxu0 %v1489
            %1818 = vmatpush1.msra.mxu0 %v1488
            %1819 = vmatprep.subr.mxu0 %v1553
            %1820 = vmatpush1.msra.mxu0 %v1552
            %1821 = vmatprep.subr.mxu0 %v1617
            %1822 = vmatpush1.msra.mxu0 %v1616
            %1823 = vmatprep.subr.mxu0 %v1681
            %1824 = vmatpush1.msra.mxu0 %v1680
            %1825 = vmatprep.subr.mxu0 0.0
            %1826 = vmatpush1.msra.mxu0 0.0
            %1827 = vmatprep.subr.mxu0 0.0
            %1828 = vmatpush1.msra.mxu0 0.0
            %1829 = vmatprep.subr.mxu0 0.0
            %1830 = vmatpush1.msra.mxu0 0.0
            %1831 = vmatprep.subr.mxu0 0.0
            %1832 = vmatpush1.msra.mxu0 0.0
            %1833 = vmatprep.subr.mxu0 0.0
            %1834 = vmatpush1.msra.mxu0 0.0
            %1835 = vmatprep.subr.mxu0 0.0
            %1836 = vmatpush1.msra.mxu0 0.0
            %1837 = vmatprep.subr.mxu0 0.0
            %1838 = vmatpush1.msra.mxu0 0.0
            %1839 = vmatprep.subr.mxu0 0.0
            %1840 = vmatpush1.msra.mxu0 0.0
            %1841 = vmatprep.subr.mxu0 0.0
            %1842 = vmatpush1.msra.mxu0 0.0
            %1843 = vmatprep.subr.mxu0 0.0
            %1844 = vmatpush1.msra.mxu0 0.0
            %1845 = vmatprep.subr.mxu0 0.0
            %1846 = vmatpush1.msra.mxu0 0.0
            %1847 = vmatprep.subr.mxu0 0.0
            %1848 = vmatpush1.msra.mxu0 0.0
            %1849 = vmatprep.subr.mxu0 0.0
            %1850 = vmatpush1.msra.mxu0 0.0
            %1851 = vmatprep.subr.mxu0 0.0
            %1852 = vmatpush1.msra.mxu0 0.0
            %1853 = vmatprep.subr.mxu0 0.0
            %1854 = vmatpush1.msra.mxu0 0.0
            %1855 = vmatprep.subr.mxu0 0.0
            %1856 = vmatpush1.msra.mxu0 0.0
            %1857 = vmatprep.subr.mxu0 0.0
            %1858 = vmatpush1.msra.mxu0 0.0
            %1859 = vmatprep.subr.mxu0 0.0
            %1860 = vmatpush1.msra.mxu0 0.0
            %1861 = vmatprep.subr.mxu0 0.0
            %1862 = vmatpush1.msra.mxu0 0.0
            %1863 = vmatprep.subr.mxu0 0.0
            %1864 = vmatpush1.msra.mxu0 0.0
            %1865 = vmatprep.subr.mxu0 0.0
            %1866 = vmatpush1.msra.mxu0 0.0
            %1867 = vmatprep.subr.mxu0 0.0
            %1868 = vmatpush1.msra.mxu0 0.0
            %1869 = vmatprep.subr.mxu0 0.0
            %1870 = vmatpush1.msra.mxu0 0.0
            %1871 = vmatprep.subr.mxu0 0.0
            %1872 = vmatpush1.msra.mxu0 0.0
            %1873 = vmatprep.subr.mxu0 0.0
            %1874 = vmatpush1.msra.mxu0 0.0
            %1875 = vmatprep.subr.mxu0 0.0
            %1876 = vmatpush1.msra.mxu0 0.0
            %1877 = vmatprep.subr.mxu0 0.0
            %1878 = vmatpush1.msra.mxu0 0.0
            %1879 = vmatprep.subr.mxu0 0.0
            %1880 = vmatpush1.msra.mxu0 0.0
            %1881 = vmatprep.mubr.f32.mxu0 0.0
            %1882 = vmatmul.mubr.f32.gmra.mrb[0].mxu0 %v1744
            %v1883 = vpop.f32.mrb[0].mxu0
            %v1884 = vadd.f32 0.0, %v1883
            %v1885 = vpop.f32.mrb[0].mxu0
            %v1886 = vadd.f32 0.0, %v1885
            %1887 = vdwg.mxu0
            %1888 = vmatprep.subr.mxu0 %v1491
            %1889 = vmatpush1.msra.mxu0 %v1490
            %1890 = vmatprep.subr.mxu0 %v1555
            %1891 = vmatpush1.msra.mxu0 %v1554
            %1892 = vmatprep.subr.mxu0 %v1619
            %1893 = vmatpush1.msra.mxu0 %v1618
            %1894 = vmatprep.subr.mxu0 %v1683
            %1895 = vmatpush1.msra.mxu0 %v1682
            %1896 = vmatprep.subr.mxu0 0.0
            %1897 = vmatpush1.msra.mxu0 0.0
            %1898 = vmatprep.subr.mxu0 0.0
            %1899 = vmatpush1.msra.mxu0 0.0
            %1900 = vmatprep.subr.mxu0 0.0
            %1901 = vmatpush1.msra.mxu0 0.0
            %1902 = vmatprep.subr.mxu0 0.0
            %1903 = vmatpush1.msra.mxu0 0.0
            %1904 = vmatprep.subr.mxu0 0.0
            %1905 = vmatpush1.msra.mxu0 0.0
            %1906 = vmatprep.subr.mxu0 0.0
            %1907 = vmatpush1.msra.mxu0 0.0
            %1908 = vmatprep.subr.mxu0 0.0
            %1909 = vmatpush1.msra.mxu0 0.0
            %1910 = vmatprep.subr.mxu0 0.0
            %1911 = vmatpush1.msra.mxu0 0.0
            %1912 = vmatprep.subr.mxu0 0.0
            %1913 = vmatpush1.msra.mxu0 0.0
            %1914 = vmatprep.subr.mxu0 0.0
            %1915 = vmatpush1.msra.mxu0 0.0
            %1916 = vmatprep.subr.mxu0 0.0
            %1917 = vmatpush1.msra.mxu0 0.0
            %1918 = vmatprep.subr.mxu0 0.0
            %1919 = vmatpush1.msra.mxu0 0.0
            %1920 = vmatprep.subr.mxu0 0.0
            %1921 = vmatpush1.msra.mxu0 0.0
            %1922 = vmatprep.subr.mxu0 0.0
            %1923 = vmatpush1.msra.mxu0 0.0
            %1924 = vmatprep.subr.mxu0 0.0
            %1925 = vmatpush1.msra.mxu0 0.0
            %1926 = vmatprep.subr.mxu0 0.0
            %1927 = vmatpush1.msra.mxu0 0.0
            %1928 = vmatprep.subr.mxu0 0.0
            %1929 = vmatpush1.msra.mxu0 0.0
            %1930 = vmatprep.subr.mxu0 0.0
            %1931 = vmatpush1.msra.mxu0 0.0
            %1932 = vmatprep.subr.mxu0 0.0
            %1933 = vmatpush1.msra.mxu0 0.0
            %1934 = vmatprep.subr.mxu0 0.0
            %1935 = vmatpush1.msra.mxu0 0.0
            %1936 = vmatprep.subr.mxu0 0.0
            %1937 = vmatpush1.msra.mxu0 0.0
            %1938 = vmatprep.subr.mxu0 0.0
            %1939 = vmatpush1.msra.mxu0 0.0
            %1940 = vmatprep.subr.mxu0 0.0
            %1941 = vmatpush1.msra.mxu0 0.0
            %1942 = vmatprep.subr.mxu0 0.0
            %1943 = vmatpush1.msra.mxu0 0.0
            %1944 = vmatprep.subr.mxu0 0.0
            %1945 = vmatpush1.msra.mxu0 0.0
            %1946 = vmatprep.subr.mxu0 0.0
            %1947 = vmatpush1.msra.mxu0 0.0
            %1948 = vmatprep.subr.mxu0 0.0
            %1949 = vmatpush1.msra.mxu0 0.0
            %1950 = vmatprep.subr.mxu0 0.0
            %1951 = vmatpush1.msra.mxu0 0.0
            %1952 = vmatprep.mubr.f32.mxu0 0.0
            %1953 = vmatmul.mubr.f32.gmra.mrb[0].mxu0 %v1744
            %v1954 = vpop.f32.mrb[0].mxu0
            %v1955 = vadd.f32 0.0, %v1954
            %v1956 = vpop.f32.mrb[0].mxu0
            %v1957 = vadd.f32 0.0, %v1956
            %1958 = vdwg.mxu0
            %1959 = vmatprep.subr.mxu0 %v1493
            %1960 = vmatpush1.msra.mxu0 %v1492
            %1961 = vmatprep.subr.mxu0 %v1557
            %1962 = vmatpush1.msra.mxu0 %v1556
            %1963 = vmatprep.subr.mxu0 %v1621
            %1964 = vmatpush1.msra.mxu0 %v1620
            %1965 = vmatprep.subr.mxu0 %v1685
            %1966 = vmatpush1.msra.mxu0 %v1684
            %1967 = vmatprep.subr.mxu0 0.0
            %1968 = vmatpush1.msra.mxu0 0.0
            %1969 = vmatprep.subr.mxu0 0.0
            %1970 = vmatpush1.msra.mxu0 0.0
            %1971 = vmatprep.subr.mxu0 0.0
            %1972 = vmatpush1.msra.mxu0 0.0
            %1973 = vmatprep.subr.mxu0 0.0
            %1974 = vmatpush1.msra.mxu0 0.0
            %1975 = vmatprep.subr.mxu0 0.0
            %1976 = vmatpush1.msra.mxu0 0.0
            %1977 = vmatprep.subr.mxu0 0.0
            %1978 = vmatpush1.msra.mxu0 0.0
            %1979 = vmatprep.subr.mxu0 0.0
            %1980 = vmatpush1.msra.mxu0 0.0
            %1981 = vmatprep.subr.mxu0 0.0
            %1982 = vmatpush1.msra.mxu0 0.0
            %1983 = vmatprep.subr.mxu0 0.0
            %1984 = vmatpush1.msra.mxu0 0.0
            %1985 = vmatprep.subr.mxu0 0.0
            %1986 = vmatpush1.msra.mxu0 0.0
            %1987 = vmatprep.subr.mxu0 0.0
            %1988 = vmatpush1.msra.mxu0 0.0
            %1989 = vmatprep.subr.mxu0 0.0
            %1990 = vmatpush1.msra.mxu0 0.0
            %1991 = vmatprep.subr.mxu0 0.0
            %1992 = vmatpush1.msra.mxu0 0.0
            %1993 = vmatprep.subr.mxu0 0.0
            %1994 = vmatpush1.msra.mxu0 0.0
            %1995 = vmatprep.subr.mxu0 0.0
            %1996 = vmatpush1.msra.mxu0 0.0
            %1997 = vmatprep.subr.mxu0 0.0
            %1998 = vmatpush1.msra.mxu0 0.0
            %1999 = vmatprep.subr.mxu0 0.0
            %2000 = vmatpush1.msra.mxu0 0.0
            %2001 = vmatprep.subr.mxu0 0.0
            %2002 = vmatpush1.msra.mxu0 0.0
            %2003 = vmatprep.subr.mxu0 0.0
            %2004 = vmatpush1.msra.mxu0 0.0
            %2005 = vmatprep.subr.mxu0 0.0
            %2006 = vmatpush1.msra.mxu0 0.0
            %2007 = vmatprep.subr.mxu0 0.0
            %2008 = vmatpush1.msra.mxu0 0.0
            %2009 = vmatprep.subr.mxu0 0.0
            %2010 = vmatpush1.msra.mxu0 0.0
            %2011 = vmatprep.subr.mxu0 0.0
            %2012 = vmatpush1.msra.mxu0 0.0
            %2013 = vmatprep.subr.mxu0 0.0
            %2014 = vmatpush1.msra.mxu0 0.0
            %2015 = vmatprep.subr.mxu0 0.0
            %2016 = vmatpush1.msra.mxu0 0.0
            %2017 = vmatprep.subr.mxu0 0.0
            %2018 = vmatpush1.msra.mxu0 0.0
            %2019 = vmatprep.subr.mxu0 0.0
            %2020 = vmatpush1.msra.mxu0 0.0
            %2021 = vmatprep.subr.mxu0 0.0
            %2022 = vmatpush1.msra.mxu0 0.0
            %2023 = vmatprep.mubr.f32.mxu0 0.0
            %2024 = vmatmul.mubr.f32.gmra.mrb[0].mxu0 %v1744
            %v2025 = vpop.f32.mrb[0].mxu0
            %v2026 = vadd.f32 0.0, %v2025
            %v2027 = vpop.f32.mrb[0].mxu0
            %v2028 = vadd.f32 0.0, %v2027
            %2029 = vdwg.mxu0
            %2030 = vmatprep.subr.mxu0 %v1495
            %2031 = vmatpush1.msra.mxu0 %v1494
            %2032 = vmatprep.subr.mxu0 %v1559
            %2033 = vmatpush1.msra.mxu0 %v1558
            %2034 = vmatprep.subr.mxu0 %v1623
            %2035 = vmatpush1.msra.mxu0 %v1622
            %2036 = vmatprep.subr.mxu0 %v1687
            %2037 = vmatpush1.msra.mxu0 %v1686
            %2038 = vmatprep.subr.mxu0 0.0
            %2039 = vmatpush1.msra.mxu0 0.0
            %2040 = vmatprep.subr.mxu0 0.0
            %2041 = vmatpush1.msra.mxu0 0.0
            %2042 = vmatprep.subr.mxu0 0.0
            %2043 = vmatpush1.msra.mxu0 0.0
            %2044 = vmatprep.subr.mxu0 0.0
            %2045 = vmatpush1.msra.mxu0 0.0
            %2046 = vmatprep.subr.mxu0 0.0
            %2047 = vmatpush1.msra.mxu0 0.0
            %2048 = vmatprep.subr.mxu0 0.0
            %2049 = vmatpush1.msra.mxu0 0.0
            %2050 = vmatprep.subr.mxu0 0.0
            %2051 = vmatpush1.msra.mxu0 0.0
            %2052 = vmatprep.subr.mxu0 0.0
            %2053 = vmatpush1.msra.mxu0 0.0
            %2054 = vmatprep.subr.mxu0 0.0
            %2055 = vmatpush1.msra.mxu0 0.0
            %2056 = vmatprep.subr.mxu0 0.0
            %2057 = vmatpush1.msra.mxu0 0.0
            %2058 = vmatprep.subr.mxu0 0.0
            %2059 = vmatpush1.msra.mxu0 0.0
            %2060 = vmatprep.subr.mxu0 0.0
            %2061 = vmatpush1.msra.mxu0 0.0
            %2062 = vmatprep.subr.mxu0 0.0
            %2063 = vmatpush1.msra.mxu0 0.0
            %2064 = vmatprep.subr.mxu0 0.0
            %2065 = vmatpush1.msra.mxu0 0.0
            %2066 = vmatprep.subr.mxu0 0.0
            %2067 = vmatpush1.msra.mxu0 0.0
            %2068 = vmatprep.subr.mxu0 0.0
            %2069 = vmatpush1.msra.mxu0 0.0
            %2070 = vmatprep.subr.mxu0 0.0
            %2071 = vmatpush1.msra.mxu0 0.0
            %2072 = vmatprep.subr.mxu0 0.0
            %2073 = vmatpush1.msra.mxu0 0.0
            %2074 = vmatprep.subr.mxu0 0.0
            %2075 = vmatpush1.msra.mxu0 0.0
            %2076 = vmatprep.subr.mxu0 0.0
            %2077 = vmatpush1.msra.mxu0 0.0
            %2078 = vmatprep.subr.mxu0 0.0
            %2079 = vmatpush1.msra.mxu0 0.0
            %2080 = vmatprep.subr.mxu0 0.0
            %2081 = vmatpush1.msra.mxu0 0.0
            %2082 = vmatprep.subr.mxu0 0.0
            %2083 = vmatpush1.msra.mxu0 0.0
            %2084 = vmatprep.subr.mxu0 0.0
            %2085 = vmatpush1.msra.mxu0 0.0
            %2086 = vmatprep.subr.mxu0 0.0
            %2087 = vmatpush1.msra.mxu0 0.0
            %2088 = vmatprep.subr.mxu0 0.0
            %2089 = vmatpush1.msra.mxu0 0.0
            %2090 = vmatprep.subr.mxu0 0.0
            %2091 = vmatpush1.msra.mxu0 0.0
            %2092 = vmatprep.subr.mxu0 0.0
            %2093 = vmatpush1.msra.mxu0 0.0
            %2094 = vmatprep.mubr.f32.mxu0 0.0
            %2095 = vmatmul.mubr.f32.gmra.mrb[0].mxu0 %v1744
            %v2096 = vpop.f32.mrb[0].mxu0
            %v2097 = vadd.f32 0.0, %v2096
            %v2098 = vpop.f32.mrb[0].mxu0
            %v2099 = vadd.f32 0.0, %v2098
            %2100 = vdwg.mxu0
            %2101 = vmatprep.subr.mxu0 %v1497
            %2102 = vmatpush1.msra.mxu0 %v1496
            %2103 = vmatprep.subr.mxu0 %v1561
            %2104 = vmatpush1.msra.mxu0 %v1560
            %2105 = vmatprep.subr.mxu0 %v1625
            %2106 = vmatpush1.msra.mxu0 %v1624
            %2107 = vmatprep.subr.mxu0 %v1689
            %2108 = vmatpush1.msra.mxu0 %v1688
            %2109 = vmatprep.subr.mxu0 0.0
            %2110 = vmatpush1.msra.mxu0 0.0
            %2111 = vmatprep.subr.mxu0 0.0
            %2112 = vmatpush1.msra.mxu0 0.0
            %2113 = vmatprep.subr.mxu0 0.0
            %2114 = vmatpush1.msra.mxu0 0.0
            %2115 = vmatprep.subr.mxu0 0.0
            %2116 = vmatpush1.msra.mxu0 0.0
            %2117 = vmatprep.subr.mxu0 0.0
            %2118 = vmatpush1.msra.mxu0 0.0
            %2119 = vmatprep.subr.mxu0 0.0
            %2120 = vmatpush1.msra.mxu0 0.0
            %2121 = vmatprep.subr.mxu0 0.0
            %2122 = vmatpush1.msra.mxu0 0.0
            %2123 = vmatprep.subr.mxu0 0.0
            %2124 = vmatpush1.msra.mxu0 0.0
            %2125 = vmatprep.subr.mxu0 0.0
            %2126 = vmatpush1.msra.mxu0 0.0
            %2127 = vmatprep.subr.mxu0 0.0
            %2128 = vmatpush1.msra.mxu0 0.0
            %2129 = vmatprep.subr.mxu0 0.0
            %2130 = vmatpush1.msra.mxu0 0.0
            %2131 = vmatprep.subr.mxu0 0.0
            %2132 = vmatpush1.msra.mxu0 0.0
            %2133 = vmatprep.subr.mxu0 0.0
            %2134 = vmatpush1.msra.mxu0 0.0
            %2135 = vmatprep.subr.mxu0 0.0
            %2136 = vmatpush1.msra.mxu0 0.0
            %2137 = vmatprep.subr.mxu0 0.0
            %2138 = vmatpush1.msra.mxu0 0.0
            %2139 = vmatprep.subr.mxu0 0.0
            %2140 = vmatpush1.msra.mxu0 0.0
            %2141 = vmatprep.subr.mxu0 0.0
            %2142 = vmatpush1.msra.mxu0 0.0
            %2143 = vmatprep.subr.mxu0 0.0
            %2144 = vmatpush1.msra.mxu0 0.0
            %2145 = vmatprep.subr.mxu0 0.0
            %2146 = vmatpush1.msra.mxu0 0.0
            %2147 = vmatprep.subr.mxu0 0.0
            %2148 = vmatpush1.msra.mxu0 0.0
            %2149 = vmatprep.subr.mxu0 0.0
            %2150 = vmatpush1.msra.mxu0 0.0
            %2151 = vmatprep.subr.mxu0 0.0
            %2152 = vmatpush1.msra.mxu0 0.0
            %2153 = vmatprep.subr.mxu0 0.0
            %2154 = vmatpush1.msra.mxu0 0.0
            %2155 = vmatprep.subr.mxu0 0.0
            %2156 = vmatpush1.msra.mxu0 0.0
            %2157 = vmatprep.subr.mxu0 0.0
            %2158 = vmatpush1.msra.mxu0 0.0
            %2159 = vmatprep.subr.mxu0 0.0
            %2160 = vmatpush1.msra.mxu0 0.0
            %2161 = vmatprep.subr.mxu0 0.0
            %2162 = vmatpush1.msra.mxu0 0.0
            %2163 = vmatprep.subr.mxu0 0.0
            %2164 = vmatpush1.msra.mxu0 0.0
            %2165 = vmatprep.mubr.f32.mxu0 0.0
            %2166 = vmatmul.mubr.f32.gmra.mrb[0].mxu0 %v1744
            %v2167 = vpop.f32.mrb[0].mxu0
            %v2168 = vadd.f32 0.0, %v2167
            %v2169 = vpop.f32.mrb[0].mxu0
            %v2170 = vadd.f32 0.0, %v2169
            %2171 = vdwg.mxu0
            %2172 = vmatprep.subr.mxu0 %v1499
            %2173 = vmatpush1.msra.mxu0 %v1498
            %2174 = vmatprep.subr.mxu0 %v1563
            %2175 = vmatpush1.msra.mxu0 %v1562
            %2176 = vmatprep.subr.mxu0 %v1627
            %2177 = vmatpush1.msra.mxu0 %v1626
            %2178 = vmatprep.subr.mxu0 %v1691
            %2179 = vmatpush1.msra.mxu0 %v1690
            %2180 = vmatprep.subr.mxu0 0.0
            %2181 = vmatpush1.msra.mxu0 0.0
            %2182 = vmatprep.subr.mxu0 0.0
            %2183 = vmatpush1.msra.mxu0 0.0
            %2184 = vmatprep.subr.mxu0 0.0
            %2185 = vmatpush1.msra.mxu0 0.0
            %2186 = vmatprep.subr.mxu0 0.0
            %2187 = vmatpush1.msra.mxu0 0.0
            %2188 = vmatprep.subr.mxu0 0.0
            %2189 = vmatpush1.msra.mxu0 0.0
            %2190 = vmatprep.subr.mxu0 0.0
            %2191 = vmatpush1.msra.mxu0 0.0
            %2192 = vmatprep.subr.mxu0 0.0
            %2193 = vmatpush1.msra.mxu0 0.0
            %2194 = vmatprep.subr.mxu0 0.0
            %2195 = vmatpush1.msra.mxu0 0.0
            %2196 = vmatprep.subr.mxu0 0.0
            %2197 = vmatpush1.msra.mxu0 0.0
            %2198 = vmatprep.subr.mxu0 0.0
            %2199 = vmatpush1.msra.mxu0 0.0
            %2200 = vmatprep.subr.mxu0 0.0
            %2201 = vmatpush1.msra.mxu0 0.0
            %2202 = vmatprep.subr.mxu0 0.0
            %2203 = vmatpush1.msra.mxu0 0.0
            %2204 = vmatprep.subr.mxu0 0.0
            %2205 = vmatpush1.msra.mxu0 0.0
            %2206 = vmatprep.subr.mxu0 0.0
            %2207 = vmatpush1.msra.mxu0 0.0
            %2208 = vmatprep.subr.mxu0 0.0
            %2209 = vmatpush1.msra.mxu0 0.0
            %2210 = vmatprep.subr.mxu0 0.0
            %2211 = vmatpush1.msra.mxu0 0.0
            %2212 = vmatprep.subr.mxu0 0.0
            %2213 = vmatpush1.msra.mxu0 0.0
            %2214 = vmatprep.subr.mxu0 0.0
            %2215 = vmatpush1.msra.mxu0 0.0
            %2216 = vmatprep.subr.mxu0 0.0
            %2217 = vmatpush1.msra.mxu0 0.0
            %2218 = vmatprep.subr.mxu0 0.0
            %2219 = vmatpush1.msra.mxu0 0.0
            %2220 = vmatprep.subr.mxu0 0.0
            %2221 = vmatpush1.msra.mxu0 0.0
            %2222 = vmatprep.subr.mxu0 0.0
            %2223 = vmatpush1.msra.mxu0 0.0
            %2224 = vmatprep.subr.mxu0 0.0
            %2225 = vmatpush1.msra.mxu0 0.0
            %2226 = vmatprep.subr.mxu0 0.0
            %2227 = vmatpush1.msra.mxu0 0.0
            %2228 = vmatprep.subr.mxu0 0.0
            %2229 = vmatpush1.msra.mxu0 0.0
            %2230 = vmatprep.subr.mxu0 0.0
            %2231 = vmatpush1.msra.mxu0 0.0
            %2232 = vmatprep.subr.mxu0 0.0
            %2233 = vmatpush1.msra.mxu0 0.0
            %2234 = vmatprep.subr.mxu0 0.0
            %2235 = vmatpush1.msra.mxu0 0.0
            %2236 = vmatprep.mubr.f32.mxu0 0.0
            %2237 = vmatmul.mubr.f32.gmra.mrb[0].mxu0 %v1744
            %v2238 = vpop.f32.mrb[0].mxu0
            %v2239 = vadd.f32 0.0, %v2238
            %v2240 = vpop.f32.mrb[0].mxu0
            %v2241 = vadd.f32 0.0, %v2240
            %2242 = vdwg.mxu0
            %2243 = vmatprep.subr.mxu0 %v1501
            %2244 = vmatpush1.msra.mxu0 %v1500
            %2245 = vmatprep.subr.mxu0 %v1565
            %2246 = vmatpush1.msra.mxu0 %v1564
            %2247 = vmatprep.subr.mxu0 %v1629
            %2248 = vmatpush1.msra.mxu0 %v1628
            %2249 = vmatprep.subr.mxu0 %v1693
            %2250 = vmatpush1.msra.mxu0 %v1692
            %2251 = vmatprep.subr.mxu0 0.0
            %2252 = vmatpush1.msra.mxu0 0.0
            %2253 = vmatprep.subr.mxu0 0.0
            %2254 = vmatpush1.msra.mxu0 0.0
            %2255 = vmatprep.subr.mxu0 0.0
            %2256 = vmatpush1.msra.mxu0 0.0
            %2257 = vmatprep.subr.mxu0 0.0
            %2258 = vmatpush1.msra.mxu0 0.0
            %2259 = vmatprep.subr.mxu0 0.0
            %2260 = vmatpush1.msra.mxu0 0.0
            %2261 = vmatprep.subr.mxu0 0.0
            %2262 = vmatpush1.msra.mxu0 0.0
            %2263 = vmatprep.subr.mxu0 0.0
            %2264 = vmatpush1.msra.mxu0 0.0
            %2265 = vmatprep.subr.mxu0 0.0
            %2266 = vmatpush1.msra.mxu0 0.0
            %2267 = vmatprep.subr.mxu0 0.0
            %2268 = vmatpush1.msra.mxu0 0.0
            %2269 = vmatprep.subr.mxu0 0.0
            %2270 = vmatpush1.msra.mxu0 0.0
            %2271 = vmatprep.subr.mxu0 0.0
            %2272 = vmatpush1.msra.mxu0 0.0
            %2273 = vmatprep.subr.mxu0 0.0
            %2274 = vmatpush1.msra.mxu0 0.0
            %2275 = vmatprep.subr.mxu0 0.0
            %2276 = vmatpush1.msra.mxu0 0.0
            %2277 = vmatprep.subr.mxu0 0.0
            %2278 = vmatpush1.msra.mxu0 0.0
            %2279 = vmatprep.subr.mxu0 0.0
            %2280 = vmatpush1.msra.mxu0 0.0
            %2281 = vmatprep.subr.mxu0 0.0
            %2282 = vmatpush1.msra.mxu0 0.0
            %2283 = vmatprep.subr.mxu0 0.0
            %2284 = vmatpush1.msra.mxu0 0.0
            %2285 = vmatprep.subr.mxu0 0.0
            %2286 = vmatpush1.msra.mxu0 0.0
            %2287 = vmatprep.subr.mxu0 0.0
            %2288 = vmatpush1.msra.mxu0 0.0
            %2289 = vmatprep.subr.mxu0 0.0
            %2290 = vmatpush1.msra.mxu0 0.0
            %2291 = vmatprep.subr.mxu0 0.0
            %2292 = vmatpush1.msra.mxu0 0.0
            %2293 = vmatprep.subr.mxu0 0.0
            %2294 = vmatpush1.msra.mxu0 0.0
            %2295 = vmatprep.subr.mxu0 0.0
            %2296 = vmatpush1.msra.mxu0 0.0
            %2297 = vmatprep.subr.mxu0 0.0
            %2298 = vmatpush1.msra.mxu0 0.0
            %2299 = vmatprep.subr.mxu0 0.0
            %2300 = vmatpush1.msra.mxu0 0.0
            %2301 = vmatprep.subr.mxu0 0.0
            %2302 = vmatpush1.msra.mxu0 0.0
            %2303 = vmatprep.subr.mxu0 0.0
            %2304 = vmatpush1.msra.mxu0 0.0
            %2305 = vmatprep.subr.mxu0 0.0
            %2306 = vmatpush1.msra.mxu0 0.0
            %2307 = vmatprep.mubr.f32.mxu0 0.0
            %2308 = vmatmul.mubr.f32.gmra.mrb[0].mxu0 %v1744
            %v2309 = vpop.f32.mrb[0].mxu0
            %v2310 = vadd.f32 0.0, %v2309
            %v2311 = vpop.f32.mrb[0].mxu0
            %v2312 = vadd.f32 0.0, %v2311
            %2313 = vdwg.mxu0
            %2314 = vmatprep.subr.mxu0 %v1503
            %2315 = vmatpush1.msra.mxu0 %v1502
            %2316 = vmatprep.subr.mxu0 %v1567
            %2317 = vmatpush1.msra.mxu0 %v1566
            %2318 = vmatprep.subr.mxu0 %v1631
            %2319 = vmatpush1.msra.mxu0 %v1630
            %2320 = vmatprep.subr.mxu0 %v1695
            %2321 = vmatpush1.msra.mxu0 %v1694
            %2322 = vmatprep.subr.mxu0 0.0
            %2323 = vmatpush1.msra.mxu0 0.0
            %2324 = vmatprep.subr.mxu0 0.0
            %2325 = vmatpush1.msra.mxu0 0.0
            %2326 = vmatprep.subr.mxu0 0.0
            %2327 = vmatpush1.msra.mxu0 0.0
            %2328 = vmatprep.subr.mxu0 0.0
            %2329 = vmatpush1.msra.mxu0 0.0
            %2330 = vmatprep.subr.mxu0 0.0
            %2331 = vmatpush1.msra.mxu0 0.0
            %2332 = vmatprep.subr.mxu0 0.0
            %2333 = vmatpush1.msra.mxu0 0.0
            %2334 = vmatprep.subr.mxu0 0.0
            %2335 = vmatpush1.msra.mxu0 0.0
            %2336 = vmatprep.subr.mxu0 0.0
            %2337 = vmatpush1.msra.mxu0 0.0
            %2338 = vmatprep.subr.mxu0 0.0
            %2339 = vmatpush1.msra.mxu0 0.0
            %2340 = vmatprep.subr.mxu0 0.0
            %2341 = vmatpush1.msra.mxu0 0.0
            %2342 = vmatprep.subr.mxu0 0.0
            %2343 = vmatpush1.msra.mxu0 0.0
            %2344 = vmatprep.subr.mxu0 0.0
            %2345 = vmatpush1.msra.mxu0 0.0
            %2346 = vmatprep.subr.mxu0 0.0
            %2347 = vmatpush1.msra.mxu0 0.0
            %2348 = vmatprep.subr.mxu0 0.0
            %2349 = vmatpush1.msra.mxu0 0.0
            %2350 = vmatprep.subr.mxu0 0.0
            %2351 = vmatpush1.msra.mxu0 0.0
            %2352 = vmatprep.subr.mxu0 0.0
            %2353 = vmatpush1.msra.mxu0 0.0
            %2354 = vmatprep.subr.mxu0 0.0
            %2355 = vmatpush1.msra.mxu0 0.0
            %2356 = vmatprep.subr.mxu0 0.0
            %2357 = vmatpush1.msra.mxu0 0.0
            %2358 = vmatprep.subr.mxu0 0.0
            %2359 = vmatpush1.msra.mxu0 0.0
            %2360 = vmatprep.subr.mxu0 0.0
            %2361 = vmatpush1.msra.mxu0 0.0
            %2362 = vmatprep.subr.mxu0 0.0
            %2363 = vmatpush1.msra.mxu0 0.0
            %2364 = vmatprep.subr.mxu0 0.0
            %2365 = vmatpush1.msra.mxu0 0.0
            %2366 = vmatprep.subr.mxu0 0.0
            %2367 = vmatpush1.msra.mxu0 0.0
            %2368 = vmatprep.subr.mxu0 0.0
            %2369 = vmatpush1.msra.mxu0 0.0
            %2370 = vmatprep.subr.mxu0 0.0
            %2371 = vmatpush1.msra.mxu0 0.0
            %2372 = vmatprep.subr.mxu0 0.0
            %2373 = vmatpush1.msra.mxu0 0.0
            %2374 = vmatprep.subr.mxu0 0.0
            %2375 = vmatpush1.msra.mxu0 0.0
            %2376 = vmatprep.subr.mxu0 0.0
            %2377 = vmatpush1.msra.mxu0 0.0
            %2378 = vmatprep.mubr.f32.mxu0 0.0
            %2379 = vmatmul.mubr.f32.gmra.mrb[0].mxu0 %v1744
            %v2380 = vpop.f32.mrb[0].mxu0
            %v2381 = vadd.f32 0.0, %v2380
            %v2382 = vpop.f32.mrb[0].mxu0
            %v2383 = vadd.f32 0.0, %v2382
            %2384 = vdwg.mxu0
            %2385 = vmatprep.subr.mxu0 %v1505
            %2386 = vmatpush1.msra.mxu0 %v1504
            %2387 = vmatprep.subr.mxu0 %v1569
            %2388 = vmatpush1.msra.mxu0 %v1568
            %2389 = vmatprep.subr.mxu0 %v1633
            %2390 = vmatpush1.msra.mxu0 %v1632
            %2391 = vmatprep.subr.mxu0 %v1697
            %2392 = vmatpush1.msra.mxu0 %v1696
            %2393 = vmatprep.subr.mxu0 0.0
            %2394 = vmatpush1.msra.mxu0 0.0
            %2395 = vmatprep.subr.mxu0 0.0
            %2396 = vmatpush1.msra.mxu0 0.0
            %2397 = vmatprep.subr.mxu0 0.0
            %2398 = vmatpush1.msra.mxu0 0.0
            %2399 = vmatprep.subr.mxu0 0.0
            %2400 = vmatpush1.msra.mxu0 0.0
            %2401 = vmatprep.subr.mxu0 0.0
            %2402 = vmatpush1.msra.mxu0 0.0
            %2403 = vmatprep.subr.mxu0 0.0
            %2404 = vmatpush1.msra.mxu0 0.0
            %2405 = vmatprep.subr.mxu0 0.0
            %2406 = vmatpush1.msra.mxu0 0.0
            %2407 = vmatprep.subr.mxu0 0.0
            %2408 = vmatpush1.msra.mxu0 0.0
            %2409 = vmatprep.subr.mxu0 0.0
            %2410 = vmatpush1.msra.mxu0 0.0
            %2411 = vmatprep.subr.mxu0 0.0
            %2412 = vmatpush1.msra.mxu0 0.0
            %2413 = vmatprep.subr.mxu0 0.0
            %2414 = vmatpush1.msra.mxu0 0.0
            %2415 = vmatprep.subr.mxu0 0.0
            %2416 = vmatpush1.msra.mxu0 0.0
            %2417 = vmatprep.subr.mxu0 0.0
            %2418 = vmatpush1.msra.mxu0 0.0
            %2419 = vmatprep.subr.mxu0 0.0
            %2420 = vmatpush1.msra.mxu0 0.0
            %2421 = vmatprep.subr.mxu0 0.0
            %2422 = vmatpush1.msra.mxu0 0.0
            %2423 = vmatprep.subr.mxu0 0.0
            %2424 = vmatpush1.msra.mxu0 0.0
            %2425 = vmatprep.subr.mxu0 0.0
            %2426 = vmatpush1.msra.mxu0 0.0
            %2427 = vmatprep.subr.mxu0 0.0
            %2428 = vmatpush1.msra.mxu0 0.0
            %2429 = vmatprep.subr.mxu0 0.0
            %2430 = vmatpush1.msra.mxu0 0.0
            %2431 = vmatprep.subr.mxu0 0.0
            %2432 = vmatpush1.msra.mxu0 0.0
            %2433 = vmatprep.subr.mxu0 0.0
            %2434 = vmatpush1.msra.mxu0 0.0
            %2435 = vmatprep.subr.mxu0 0.0
            %2436 = vmatpush1.msra.mxu0 0.0
            %2437 = vmatprep.subr.mxu0 0.0
            %2438 = vmatpush1.msra.mxu0 0.0
            %2439 = vmatprep.subr.mxu0 0.0
            %2440 = vmatpush1.msra.mxu0 0.0
            %2441 = vmatprep.subr.mxu0 0.0
            %2442 = vmatpush1.msra.mxu0 0.0
            %2443 = vmatprep.subr.mxu0 0.0
            %2444 = vmatpush1.msra.mxu0 0.0
            %2445 = vmatprep.subr.mxu0 0.0
            %2446 = vmatpush1.msra.mxu0 0.0
            %2447 = vmatprep.subr.mxu0 0.0
            %2448 = vmatpush1.msra.mxu0 0.0
            %2449 = vmatprep.mubr.f32.mxu0 0.0
            %2450 = vmatmul.mubr.f32.gmra.mrb[0].mxu0 %v1744
            %v2451 = vpop.f32.mrb[0].mxu0
            %v2452 = vadd.f32 0.0, %v2451
            %v2453 = vpop.f32.mrb[0].mxu0
            %v2454 = vadd.f32 0.0, %v2453
            %2455 = vdwg.mxu0
            %2456 = vmatprep.subr.mxu0 %v1507
            %2457 = vmatpush1.msra.mxu0 %v1506
            %2458 = vmatprep.subr.mxu0 %v1571
            %2459 = vmatpush1.msra.mxu0 %v1570
            %2460 = vmatprep.subr.mxu0 %v1635
            %2461 = vmatpush1.msra.mxu0 %v1634
            %2462 = vmatprep.subr.mxu0 %v1699
            %2463 = vmatpush1.msra.mxu0 %v1698
            %2464 = vmatprep.subr.mxu0 0.0
            %2465 = vmatpush1.msra.mxu0 0.0
            %2466 = vmatprep.subr.mxu0 0.0
            %2467 = vmatpush1.msra.mxu0 0.0
            %2468 = vmatprep.subr.mxu0 0.0
            %2469 = vmatpush1.msra.mxu0 0.0
            %2470 = vmatprep.subr.mxu0 0.0
            %2471 = vmatpush1.msra.mxu0 0.0
            %2472 = vmatprep.subr.mxu0 0.0
            %2473 = vmatpush1.msra.mxu0 0.0
            %2474 = vmatprep.subr.mxu0 0.0
            %2475 = vmatpush1.msra.mxu0 0.0
            %2476 = vmatprep.subr.mxu0 0.0
            %2477 = vmatpush1.msra.mxu0 0.0
            %2478 = vmatprep.subr.mxu0 0.0
            %2479 = vmatpush1.msra.mxu0 0.0
            %2480 = vmatprep.subr.mxu0 0.0
            %2481 = vmatpush1.msra.mxu0 0.0
            %2482 = vmatprep.subr.mxu0 0.0
            %2483 = vmatpush1.msra.mxu0 0.0
            %2484 = vmatprep.subr.mxu0 0.0
            %2485 = vmatpush1.msra.mxu0 0.0
            %2486 = vmatprep.subr.mxu0 0.0
            %2487 = vmatpush1.msra.mxu0 0.0
            %2488 = vmatprep.subr.mxu0 0.0
            %2489 = vmatpush1.msra.mxu0 0.0
            %2490 = vmatprep.subr.mxu0 0.0
            %2491 = vmatpush1.msra.mxu0 0.0
            %2492 = vmatprep.subr.mxu0 0.0
            %2493 = vmatpush1.msra.mxu0 0.0
            %2494 = vmatprep.subr.mxu0 0.0
            %2495 = vmatpush1.msra.mxu0 0.0
            %2496 = vmatprep.subr.mxu0 0.0
            %2497 = vmatpush1.msra.mxu0 0.0
            %2498 = vmatprep.subr.mxu0 0.0
            %2499 = vmatpush1.msra.mxu0 0.0
            %2500 = vmatprep.subr.mxu0 0.0
            %2501 = vmatpush1.msra.mxu0 0.0
            %2502 = vmatprep.subr.mxu0 0.0
            %2503 = vmatpush1.msra.mxu0 0.0
            %2504 = vmatprep.subr.mxu0 0.0
            %2505 = vmatpush1.msra.mxu0 0.0
            %2506 = vmatprep.subr.mxu0 0.0
            %2507 = vmatpush1.msra.mxu0 0.0
            %2508 = vmatprep.subr.mxu0 0.0
            %2509 = vmatpush1.msra.mxu0 0.0
            %2510 = vmatprep.subr.mxu0 0.0
            %2511 = vmatpush1.msra.mxu0 0.0
            %2512 = vmatprep.subr.mxu0 0.0
            %2513 = vmatpush1.msra.mxu0 0.0
            %2514 = vmatprep.subr.mxu0 0.0
            %2515 = vmatpush1.msra.mxu0 0.0
            %2516 = vmatprep.subr.mxu0 0.0
            %2517 = vmatpush1.msra.mxu0 0.0
            %2518 = vmatprep.subr.mxu0 0.0
            %2519 = vmatpush1.msra.mxu0 0.0
            %2520 = vmatprep.mubr.f32.mxu0 0.0
            %2521 = vmatmul.mubr.f32.gmra.mrb[0].mxu0 %v1744
            %v2522 = vpop.f32.mrb[0].mxu0
            %v2523 = vadd.f32 0.0, %v2522
            %v2524 = vpop.f32.mrb[0].mxu0
            %v2525 = vadd.f32 0.0, %v2524
            %2526 = vdwg.mxu0
            %2527 = vmatprep.subr.mxu0 %v1509
            %2528 = vmatpush1.msra.mxu0 %v1508
            %2529 = vmatprep.subr.mxu0 %v1573
            %2530 = vmatpush1.msra.mxu0 %v1572
            %2531 = vmatprep.subr.mxu0 %v1637
            %2532 = vmatpush1.msra.mxu0 %v1636
            %2533 = vmatprep.subr.mxu0 %v1701
            %2534 = vmatpush1.msra.mxu0 %v1700
            %2535 = vmatprep.subr.mxu0 0.0
            %2536 = vmatpush1.msra.mxu0 0.0
            %2537 = vmatprep.subr.mxu0 0.0
            %2538 = vmatpush1.msra.mxu0 0.0
            %2539 = vmatprep.subr.mxu0 0.0
            %2540 = vmatpush1.msra.mxu0 0.0
            %2541 = vmatprep.subr.mxu0 0.0
            %2542 = vmatpush1.msra.mxu0 0.0
            %2543 = vmatprep.subr.mxu0 0.0
            %2544 = vmatpush1.msra.mxu0 0.0
            %2545 = vmatprep.subr.mxu0 0.0
            %2546 = vmatpush1.msra.mxu0 0.0
            %2547 = vmatprep.subr.mxu0 0.0
            %2548 = vmatpush1.msra.mxu0 0.0
            %2549 = vmatprep.subr.mxu0 0.0
            %2550 = vmatpush1.msra.mxu0 0.0
            %2551 = vmatprep.subr.mxu0 0.0
            %2552 = vmatpush1.msra.mxu0 0.0
            %2553 = vmatprep.subr.mxu0 0.0
            %2554 = vmatpush1.msra.mxu0 0.0
            %2555 = vmatprep.subr.mxu0 0.0
            %2556 = vmatpush1.msra.mxu0 0.0
            %2557 = vmatprep.subr.mxu0 0.0
            %2558 = vmatpush1.msra.mxu0 0.0
            %2559 = vmatprep.subr.mxu0 0.0
            %2560 = vmatpush1.msra.mxu0 0.0
            %2561 = vmatprep.subr.mxu0 0.0
            %2562 = vmatpush1.msra.mxu0 0.0
            %2563 = vmatprep.subr.mxu0 0.0
            %2564 = vmatpush1.msra.mxu0 0.0
            %2565 = vmatprep.subr.mxu0 0.0
            %2566 = vmatpush1.msra.mxu0 0.0
            %2567 = vmatprep.subr.mxu0 0.0
            %2568 = vmatpush1.msra.mxu0 0.0
            %2569 = vmatprep.subr.mxu0 0.0
            %2570 = vmatpush1.msra.mxu0 0.0
            %2571 = vmatprep.subr.mxu0 0.0
            %2572 = vmatpush1.msra.mxu0 0.0
            %2573 = vmatprep.subr.mxu0 0.0
            %2574 = vmatpush1.msra.mxu0 0.0
            %2575 = vmatprep.subr.mxu0 0.0
            %2576 = vmatpush1.msra.mxu0 0.0
            %2577 = vmatprep.subr.mxu0 0.0
            %2578 = vmatpush1.msra.mxu0 0.0
            %2579 = vmatprep.subr.mxu0 0.0
            %2580 = vmatpush1.msra.mxu0 0.0
            %2581 = vmatprep.subr.mxu0 0.0
            %2582 = vmatpush1.msra.mxu0 0.0
            %2583 = vmatprep.subr.mxu0 0.0
            %2584 = vmatpush1.msra.mxu0 0.0
            %2585 = vmatprep.subr.mxu0 0.0
            %2586 = vmatpush1.msra.mxu0 0.0
            %2587 = vmatprep.subr.mxu0 0.0
            %2588 = vmatpush1.msra.mxu0 0.0
            %2589 = vmatprep.subr.mxu0 0.0
            %2590 = vmatpush1.msra.mxu0 0.0
            %2591 = vmatprep.mubr.f32.mxu0 0.0
            %2592 = vmatmul.mubr.f32.gmra.mrb[0].mxu0 %v1744
            %v2593 = vpop.f32.mrb[0].mxu0
            %v2594 = vadd.f32 0.0, %v2593
            %v2595 = vpop.f32.mrb[0].mxu0
            %v2596 = vadd.f32 0.0, %v2595
            %2597 = vdwg.mxu0
            %2598 = vmatprep.subr.mxu0 %v1511
            %2599 = vmatpush1.msra.mxu0 %v1510
            %2600 = vmatprep.subr.mxu0 %v1575
            %2601 = vmatpush1.msra.mxu0 %v1574
            %2602 = vmatprep.subr.mxu0 %v1639
            %2603 = vmatpush1.msra.mxu0 %v1638
            %2604 = vmatprep.subr.mxu0 %v1703
            %2605 = vmatpush1.msra.mxu0 %v1702
            %2606 = vmatprep.subr.mxu0 0.0
            %2607 = vmatpush1.msra.mxu0 0.0
            %2608 = vmatprep.subr.mxu0 0.0
            %2609 = vmatpush1.msra.mxu0 0.0
            %2610 = vmatprep.subr.mxu0 0.0
            %2611 = vmatpush1.msra.mxu0 0.0
            %2612 = vmatprep.subr.mxu0 0.0
            %2613 = vmatpush1.msra.mxu0 0.0
            %2614 = vmatprep.subr.mxu0 0.0
            %2615 = vmatpush1.msra.mxu0 0.0
            %2616 = vmatprep.subr.mxu0 0.0
            %2617 = vmatpush1.msra.mxu0 0.0
            %2618 = vmatprep.subr.mxu0 0.0
            %2619 = vmatpush1.msra.mxu0 0.0
            %2620 = vmatprep.subr.mxu0 0.0
            %2621 = vmatpush1.msra.mxu0 0.0
            %2622 = vmatprep.subr.mxu0 0.0
            %2623 = vmatpush1.msra.mxu0 0.0
            %2624 = vmatprep.subr.mxu0 0.0
            %2625 = vmatpush1.msra.mxu0 0.0
            %2626 = vmatprep.subr.mxu0 0.0
            %2627 = vmatpush1.msra.mxu0 0.0
            %2628 = vmatprep.subr.mxu0 0.0
            %2629 = vmatpush1.msra.mxu0 0.0
            %2630 = vmatprep.subr.mxu0 0.0
            %2631 = vmatpush1.msra.mxu0 0.0
            %2632 = vmatprep.subr.mxu0 0.0
            %2633 = vmatpush1.msra.mxu0 0.0
            %2634 = vmatprep.subr.mxu0 0.0
            %2635 = vmatpush1.msra.mxu0 0.0
            %2636 = vmatprep.subr.mxu0 0.0
            %2637 = vmatpush1.msra.mxu0 0.0
            %2638 = vmatprep.subr.mxu0 0.0
            %2639 = vmatpush1.msra.mxu0 0.0
            %2640 = vmatprep.subr.mxu0 0.0
            %2641 = vmatpush1.msra.mxu0 0.0
            %2642 = vmatprep.subr.mxu0 0.0
            %2643 = vmatpush1.msra.mxu0 0.0
            %2644 = vmatprep.subr.mxu0 0.0
            %2645 = vmatpush1.msra.mxu0 0.0
            %2646 = vmatprep.subr.mxu0 0.0
            %2647 = vmatpush1.msra.mxu0 0.0
            %2648 = vmatprep.subr.mxu0 0.0
            %2649 = vmatpush1.msra.mxu0 0.0
            %2650 = vmatprep.subr.mxu0 0.0
            %2651 = vmatpush1.msra.mxu0 0.0
            %2652 = vmatprep.subr.mxu0 0.0
            %2653 = vmatpush1.msra.mxu0 0.0
            %2654 = vmatprep.subr.mxu0 0.0
            %2655 = vmatpush1.msra.mxu0 0.0
            %2656 = vmatprep.subr.mxu0 0.0
            %2657 = vmatpush1.msra.mxu0 0.0
            %2658 = vmatprep.subr.mxu0 0.0
            %2659 = vmatpush1.msra.mxu0 0.0
            %2660 = vmatprep.subr.mxu0 0.0
            %2661 = vmatpush1.msra.mxu0 0.0
            %2662 = vmatprep.mubr.f32.mxu0 0.0
            %2663 = vmatmul.mubr.f32.gmra.mrb[0].mxu0 %v1744
            %v2664 = vpop.f32.mrb[0].mxu0
            %v2665 = vadd.f32 0.0, %v2664
            %v2666 = vpop.f32.mrb[0].mxu0
            %v2667 = vadd.f32 0.0, %v2666
            %2668 = vdwg.mxu0
            %2669 = vmatprep.subr.mxu0 %v1513
            %2670 = vmatpush1.msra.mxu0 %v1512
            %2671 = vmatprep.subr.mxu0 %v1577
            %2672 = vmatpush1.msra.mxu0 %v1576
            %2673 = vmatprep.subr.mxu0 %v1641
            %2674 = vmatpush1.msra.mxu0 %v1640
            %2675 = vmatprep.subr.mxu0 %v1705
            %2676 = vmatpush1.msra.mxu0 %v1704
            %2677 = vmatprep.subr.mxu0 0.0
            %2678 = vmatpush1.msra.mxu0 0.0
            %2679 = vmatprep.subr.mxu0 0.0
            %2680 = vmatpush1.msra.mxu0 0.0
            %2681 = vmatprep.subr.mxu0 0.0
            %2682 = vmatpush1.msra.mxu0 0.0
            %2683 = vmatprep.subr.mxu0 0.0
            %2684 = vmatpush1.msra.mxu0 0.0
            %2685 = vmatprep.subr.mxu0 0.0
            %2686 = vmatpush1.msra.mxu0 0.0
            %2687 = vmatprep.subr.mxu0 0.0
            %2688 = vmatpush1.msra.mxu0 0.0
            %2689 = vmatprep.subr.mxu0 0.0
            %2690 = vmatpush1.msra.mxu0 0.0
            %2691 = vmatprep.subr.mxu0 0.0
            %2692 = vmatpush1.msra.mxu0 0.0
            %2693 = vmatprep.subr.mxu0 0.0
            %2694 = vmatpush1.msra.mxu0 0.0
            %2695 = vmatprep.subr.mxu0 0.0
            %2696 = vmatpush1.msra.mxu0 0.0
            %2697 = vmatprep.subr.mxu0 0.0
            %2698 = vmatpush1.msra.mxu0 0.0
            %2699 = vmatprep.subr.mxu0 0.0
            %2700 = vmatpush1.msra.mxu0 0.0
            %2701 = vmatprep.subr.mxu0 0.0
            %2702 = vmatpush1.msra.mxu0 0.0
            %2703 = vmatprep.subr.mxu0 0.0
            %2704 = vmatpush1.msra.mxu0 0.0
            %2705 = vmatprep.subr.mxu0 0.0
            %2706 = vmatpush1.msra.mxu0 0.0
            %2707 = vmatprep.subr.mxu0 0.0
            %2708 = vmatpush1.msra.mxu0 0.0
            %2709 = vmatprep.subr.mxu0 0.0
            %2710 = vmatpush1.msra.mxu0 0.0
            %2711 = vmatprep.subr.mxu0 0.0
            %2712 = vmatpush1.msra.mxu0 0.0
            %2713 = vmatprep.subr.mxu0 0.0
            %2714 = vmatpush1.msra.mxu0 0.0
            %2715 = vmatprep.subr.mxu0 0.0
            %2716 = vmatpush1.msra.mxu0 0.0
            %2717 = vmatprep.subr.mxu0 0.0
            %2718 = vmatpush1.msra.mxu0 0.0
            %2719 = vmatprep.subr.mxu0 0.0
            %2720 = vmatpush1.msra.mxu0 0.0
            %2721 = vmatprep.subr.mxu0 0.0
            %2722 = vmatpush1.msra.mxu0 0.0
            %2723 = vmatprep.subr.mxu0 0.0
            %2724 = vmatpush1.msra.mxu0 0.0
            %2725 = vmatprep.subr.mxu0 0.0
            %2726 = vmatpush1.msra.mxu0 0.0
            %2727 = vmatprep.subr.mxu0 0.0
            %2728 = vmatpush1.msra.mxu0 0.0
            %2729 = vmatprep.subr.mxu0 0.0
            %2730 = vmatpush1.msra.mxu0 0.0
            %2731 = vmatprep.subr.mxu0 0.0
            %2732 = vmatpush1.msra.mxu0 0.0
            %2733 = vmatprep.mubr.f32.mxu0 0.0
            %2734 = vmatmul.mubr.f32.gmra.mrb[0].mxu0 %v1744
            %v2735 = vpop.f32.mrb[0].mxu0
            %v2736 = vadd.f32 0.0, %v2735
            %v2737 = vpop.f32.mrb[0].mxu0
            %v2738 = vadd.f32 0.0, %v2737
            %2739 = vdwg.mxu0
            %2740 = vmatprep.subr.mxu0 %v1515
            %2741 = vmatpush1.msra.mxu0 %v1514
            %2742 = vmatprep.subr.mxu0 %v1579
            %2743 = vmatpush1.msra.mxu0 %v1578
            %2744 = vmatprep.subr.mxu0 %v1643
            %2745 = vmatpush1.msra.mxu0 %v1642
            %2746 = vmatprep.subr.mxu0 %v1707
            %2747 = vmatpush1.msra.mxu0 %v1706
            %2748 = vmatprep.subr.mxu0 0.0
            %2749 = vmatpush1.msra.mxu0 0.0
            %2750 = vmatprep.subr.mxu0 0.0
            %2751 = vmatpush1.msra.mxu0 0.0
            %2752 = vmatprep.subr.mxu0 0.0
            %2753 = vmatpush1.msra.mxu0 0.0
            %2754 = vmatprep.subr.mxu0 0.0
            %2755 = vmatpush1.msra.mxu0 0.0
            %2756 = vmatprep.subr.mxu0 0.0
            %2757 = vmatpush1.msra.mxu0 0.0
            %2758 = vmatprep.subr.mxu0 0.0
            %2759 = vmatpush1.msra.mxu0 0.0
            %2760 = vmatprep.subr.mxu0 0.0
            %2761 = vmatpush1.msra.mxu0 0.0
            %2762 = vmatprep.subr.mxu0 0.0
            %2763 = vmatpush1.msra.mxu0 0.0
            %2764 = vmatprep.subr.mxu0 0.0
            %2765 = vmatpush1.msra.mxu0 0.0
            %2766 = vmatprep.subr.mxu0 0.0
            %2767 = vmatpush1.msra.mxu0 0.0
            %2768 = vmatprep.subr.mxu0 0.0
            %2769 = vmatpush1.msra.mxu0 0.0
            %2770 = vmatprep.subr.mxu0 0.0
            %2771 = vmatpush1.msra.mxu0 0.0
            %2772 = vmatprep.subr.mxu0 0.0
            %2773 = vmatpush1.msra.mxu0 0.0
            %2774 = vmatprep.subr.mxu0 0.0
            %2775 = vmatpush1.msra.mxu0 0.0
            %2776 = vmatprep.subr.mxu0 0.0
            %2777 = vmatpush1.msra.mxu0 0.0
            %2778 = vmatprep.subr.mxu0 0.0
            %2779 = vmatpush1.msra.mxu0 0.0
            %2780 = vmatprep.subr.mxu0 0.0
            %2781 = vmatpush1.msra.mxu0 0.0
            %2782 = vmatprep.subr.mxu0 0.0
            %2783 = vmatpush1.msra.mxu0 0.0
            %2784 = vmatprep.subr.mxu0 0.0
            %2785 = vmatpush1.msra.mxu0 0.0
            %2786 = vmatprep.subr.mxu0 0.0
            %2787 = vmatpush1.msra.mxu0 0.0
            %2788 = vmatprep.subr.mxu0 0.0
            %2789 = vmatpush1.msra.mxu0 0.0
            %2790 = vmatprep.subr.mxu0 0.0
            %2791 = vmatpush1.msra.mxu0 0.0
            %2792 = vmatprep.subr.mxu0 0.0
            %2793 = vmatpush1.msra.mxu0 0.0
            %2794 = vmatprep.subr.mxu0 0.0
            %2795 = vmatpush1.msra.mxu0 0.0
            %2796 = vmatprep.subr.mxu0 0.0
            %2797 = vmatpush1.msra.mxu0 0.0
            %2798 = vmatprep.subr.mxu0 0.0
            %2799 = vmatpush1.msra.mxu0 0.0
            %2800 = vmatprep.subr.mxu0 0.0
            %2801 = vmatpush1.msra.mxu0 0.0
            %2802 = vmatprep.subr.mxu0 0.0
            %2803 = vmatpush1.msra.mxu0 0.0
            %2804 = vmatprep.mubr.f32.mxu0 0.0
            %2805 = vmatmul.mubr.f32.gmra.mrb[0].mxu0 %v1744
            %v2806 = vpop.f32.mrb[0].mxu0
            %v2807 = vadd.f32 0.0, %v2806
            %v2808 = vpop.f32.mrb[0].mxu0
            %v2809 = vadd.f32 0.0, %v2808
            %2810 = vdwg.mxu0
            %2811 = vmatprep.subr.mxu0 %v1517
            %2812 = vmatpush1.msra.mxu0 %v1516
            %2813 = vmatprep.subr.mxu0 %v1581
            %2814 = vmatpush1.msra.mxu0 %v1580
            %2815 = vmatprep.subr.mxu0 %v1645
            %2816 = vmatpush1.msra.mxu0 %v1644
            %2817 = vmatprep.subr.mxu0 %v1709
            %2818 = vmatpush1.msra.mxu0 %v1708
            %2819 = vmatprep.subr.mxu0 0.0
            %2820 = vmatpush1.msra.mxu0 0.0
            %2821 = vmatprep.subr.mxu0 0.0
            %2822 = vmatpush1.msra.mxu0 0.0
            %2823 = vmatprep.subr.mxu0 0.0
            %2824 = vmatpush1.msra.mxu0 0.0
            %2825 = vmatprep.subr.mxu0 0.0
            %2826 = vmatpush1.msra.mxu0 0.0
            %2827 = vmatprep.subr.mxu0 0.0
            %2828 = vmatpush1.msra.mxu0 0.0
            %2829 = vmatprep.subr.mxu0 0.0
            %2830 = vmatpush1.msra.mxu0 0.0
            %2831 = vmatprep.subr.mxu0 0.0
            %2832 = vmatpush1.msra.mxu0 0.0
            %2833 = vmatprep.subr.mxu0 0.0
            %2834 = vmatpush1.msra.mxu0 0.0
            %2835 = vmatprep.subr.mxu0 0.0
            %2836 = vmatpush1.msra.mxu0 0.0
            %2837 = vmatprep.subr.mxu0 0.0
            %2838 = vmatpush1.msra.mxu0 0.0
            %2839 = vmatprep.subr.mxu0 0.0
            %2840 = vmatpush1.msra.mxu0 0.0
            %2841 = vmatprep.subr.mxu0 0.0
            %2842 = vmatpush1.msra.mxu0 0.0
            %2843 = vmatprep.subr.mxu0 0.0
            %2844 = vmatpush1.msra.mxu0 0.0
            %2845 = vmatprep.subr.mxu0 0.0
            %2846 = vmatpush1.msra.mxu0 0.0
            %2847 = vmatprep.subr.mxu0 0.0
            %2848 = vmatpush1.msra.mxu0 0.0
            %2849 = vmatprep.subr.mxu0 0.0
            %2850 = vmatpush1.msra.mxu0 0.0
            %2851 = vmatprep.subr.mxu0 0.0
            %2852 = vmatpush1.msra.mxu0 0.0
            %2853 = vmatprep.subr.mxu0 0.0
            %2854 = vmatpush1.msra.mxu0 0.0
            %2855 = vmatprep.subr.mxu0 0.0
            %2856 = vmatpush1.msra.mxu0 0.0
            %2857 = vmatprep.subr.mxu0 0.0
            %2858 = vmatpush1.msra.mxu0 0.0
            %2859 = vmatprep.subr.mxu0 0.0
            %2860 = vmatpush1.msra.mxu0 0.0
            %2861 = vmatprep.subr.mxu0 0.0
            %2862 = vmatpush1.msra.mxu0 0.0
            %2863 = vmatprep.subr.mxu0 0.0
            %2864 = vmatpush1.msra.mxu0 0.0
            %2865 = vmatprep.subr.mxu0 0.0
            %2866 = vmatpush1.msra.mxu0 0.0
            %2867 = vmatprep.subr.mxu0 0.0
            %2868 = vmatpush1.msra.mxu0 0.0
            %2869 = vmatprep.subr.mxu0 0.0
            %2870 = vmatpush1.msra.mxu0 0.0
            %2871 = vmatprep.subr.mxu0 0.0
            %2872 = vmatpush1.msra.mxu0 0.0
            %2873 = vmatprep.subr.mxu0 0.0
            %2874 = vmatpush1.msra.mxu0 0.0
            %2875 = vmatprep.mubr.f32.mxu0 0.0
            %2876 = vmatmul.mubr.f32.gmra.mrb[0].mxu0 %v1744
            %v2877 = vpop.f32.mrb[0].mxu0
            %v2878 = vadd.f32 0.0, %v2877
            %v2879 = vpop.f32.mrb[0].mxu0
            %v2880 = vadd.f32 0.0, %v2879
            %2881 = vdwg.mxu0
            %2882 = vmatprep.subr.mxu0 %v1519
            %2883 = vmatpush1.msra.mxu0 %v1518
            %2884 = vmatprep.subr.mxu0 %v1583
            %2885 = vmatpush1.msra.mxu0 %v1582
            %2886 = vmatprep.subr.mxu0 %v1647
            %2887 = vmatpush1.msra.mxu0 %v1646
            %2888 = vmatprep.subr.mxu0 %v1711
            %2889 = vmatpush1.msra.mxu0 %v1710
            %2890 = vmatprep.subr.mxu0 0.0
            %2891 = vmatpush1.msra.mxu0 0.0
            %2892 = vmatprep.subr.mxu0 0.0
            %2893 = vmatpush1.msra.mxu0 0.0
            %2894 = vmatprep.subr.mxu0 0.0
            %2895 = vmatpush1.msra.mxu0 0.0
            %2896 = vmatprep.subr.mxu0 0.0
            %2897 = vmatpush1.msra.mxu0 0.0
            %2898 = vmatprep.subr.mxu0 0.0
            %2899 = vmatpush1.msra.mxu0 0.0
            %2900 = vmatprep.subr.mxu0 0.0
            %2901 = vmatpush1.msra.mxu0 0.0
            %2902 = vmatprep.subr.mxu0 0.0
            %2903 = vmatpush1.msra.mxu0 0.0
            %2904 = vmatprep.subr.mxu0 0.0
            %2905 = vmatpush1.msra.mxu0 0.0
            %2906 = vmatprep.subr.mxu0 0.0
            %2907 = vmatpush1.msra.mxu0 0.0
            %2908 = vmatprep.subr.mxu0 0.0
            %2909 = vmatpush1.msra.mxu0 0.0
            %2910 = vmatprep.subr.mxu0 0.0
            %2911 = vmatpush1.msra.mxu0 0.0
            %2912 = vmatprep.subr.mxu0 0.0
            %2913 = vmatpush1.msra.mxu0 0.0
            %2914 = vmatprep.subr.mxu0 0.0
            %2915 = vmatpush1.msra.mxu0 0.0
            %2916 = vmatprep.subr.mxu0 0.0
            %2917 = vmatpush1.msra.mxu0 0.0
            %2918 = vmatprep.subr.mxu0 0.0
            %2919 = vmatpush1.msra.mxu0 0.0
            %2920 = vmatprep.subr.mxu0 0.0
            %2921 = vmatpush1.msra.mxu0 0.0
            %2922 = vmatprep.subr.mxu0 0.0
            %2923 = vmatpush1.msra.mxu0 0.0
            %2924 = vmatprep.subr.mxu0 0.0
            %2925 = vmatpush1.msra.mxu0 0.0
            %2926 = vmatprep.subr.mxu0 0.0
            %2927 = vmatpush1.msra.mxu0 0.0
            %2928 = vmatprep.subr.mxu0 0.0
            %2929 = vmatpush1.msra.mxu0 0.0
            %2930 = vmatprep.subr.mxu0 0.0
            %2931 = vmatpush1.msra.mxu0 0.0
            %2932 = vmatprep.subr.mxu0 0.0
            %2933 = vmatpush1.msra.mxu0 0.0
            %2934 = vmatprep.subr.mxu0 0.0
            %2935 = vmatpush1.msra.mxu0 0.0
            %2936 = vmatprep.subr.mxu0 0.0
            %2937 = vmatpush1.msra.mxu0 0.0
            %2938 = vmatprep.subr.mxu0 0.0
            %2939 = vmatpush1.msra.mxu0 0.0
            %2940 = vmatprep.subr.mxu0 0.0
            %2941 = vmatpush1.msra.mxu0 0.0
            %2942 = vmatprep.subr.mxu0 0.0
            %2943 = vmatpush1.msra.mxu0 0.0
            %2944 = vmatprep.subr.mxu0 0.0
            %2945 = vmatpush1.msra.mxu0 0.0
            %2946 = vmatprep.mubr.f32.mxu0 0.0
            %2947 = vmatmul.mubr.f32.gmra.mrb[0].mxu0 %v1744
            %v2948 = vpop.f32.mrb[0].mxu0
            %v2949 = vadd.f32 0.0, %v2948
            %v2950 = vpop.f32.mrb[0].mxu0
            %v2951 = vadd.f32 0.0, %v2950
            %2952 = vdwg.mxu0
            %2953 = vmatprep.subr.mxu0 %v1521
            %2954 = vmatpush1.msra.mxu0 %v1520
            %2955 = vmatprep.subr.mxu0 %v1585
            %2956 = vmatpush1.msra.mxu0 %v1584
            %2957 = vmatprep.subr.mxu0 %v1649
            %2958 = vmatpush1.msra.mxu0 %v1648
            %2959 = vmatprep.subr.mxu0 %v1713
            %2960 = vmatpush1.msra.mxu0 %v1712
            %2961 = vmatprep.subr.mxu0 0.0
            %2962 = vmatpush1.msra.mxu0 0.0
            %2963 = vmatprep.subr.mxu0 0.0
            %2964 = vmatpush1.msra.mxu0 0.0
            %2965 = vmatprep.subr.mxu0 0.0
            %2966 = vmatpush1.msra.mxu0 0.0
            %2967 = vmatprep.subr.mxu0 0.0
            %2968 = vmatpush1.msra.mxu0 0.0
            %2969 = vmatprep.subr.mxu0 0.0
            %2970 = vmatpush1.msra.mxu0 0.0
            %2971 = vmatprep.subr.mxu0 0.0
            %2972 = vmatpush1.msra.mxu0 0.0
            %2973 = vmatprep.subr.mxu0 0.0
            %2974 = vmatpush1.msra.mxu0 0.0
            %2975 = vmatprep.subr.mxu0 0.0
            %2976 = vmatpush1.msra.mxu0 0.0
            %2977 = vmatprep.subr.mxu0 0.0
            %2978 = vmatpush1.msra.mxu0 0.0
            %2979 = vmatprep.subr.mxu0 0.0
            %2980 = vmatpush1.msra.mxu0 0.0
            %2981 = vmatprep.subr.mxu0 0.0
            %2982 = vmatpush1.msra.mxu0 0.0
            %2983 = vmatprep.subr.mxu0 0.0
            %2984 = vmatpush1.msra.mxu0 0.0
            %2985 = vmatprep.subr.mxu0 0.0
            %2986 = vmatpush1.msra.mxu0 0.0
            %2987 = vmatprep.subr.mxu0 0.0
            %2988 = vmatpush1.msra.mxu0 0.0
            %2989 = vmatprep.subr.mxu0 0.0
            %2990 = vmatpush1.msra.mxu0 0.0
            %2991 = vmatprep.subr.mxu0 0.0
            %2992 = vmatpush1.msra.mxu0 0.0
            %2993 = vmatprep.subr.mxu0 0.0
            %2994 = vmatpush1.msra.mxu0 0.0
            %2995 = vmatprep.subr.mxu0 0.0
            %2996 = vmatpush1.msra.mxu0 0.0
            %2997 = vmatprep.subr.mxu0 0.0
            %2998 = vmatpush1.msra.mxu0 0.0
            %2999 = vmatprep.subr.mxu0 0.0
            %3000 = vmatpush1.msra.mxu0 0.0
            %3001 = vmatprep.subr.mxu0 0.0
            %3002 = vmatpush1.msra.mxu0 0.0
            %3003 = vmatprep.subr.mxu0 0.0
            %3004 = vmatpush1.msra.mxu0 0.0
            %3005 = vmatprep.subr.mxu0 0.0
            %3006 = vmatpush1.msra.mxu0 0.0
            %3007 = vmatprep.subr.mxu0 0.0
            %3008 = vmatpush1.msra.mxu0 0.0
            %3009 = vmatprep.subr.mxu0 0.0
            %3010 = vmatpush1.msra.mxu0 0.0
            %3011 = vmatprep.subr.mxu0 0.0
            %3012 = vmatpush1.msra.mxu0 0.0
            %3013 = vmatprep.subr.mxu0 0.0
            %3014 = vmatpush1.msra.mxu0 0.0
            %3015 = vmatprep.subr.mxu0 0.0
            %3016 = vmatpush1.msra.mxu0 0.0
            %3017 = vmatprep.mubr.f32.mxu0 0.0
            %3018 = vmatmul.mubr.f32.gmra.mrb[0].mxu0 %v1744
            %v3019 = vpop.f32.mrb[0].mxu0
            %v3020 = vadd.f32 0.0, %v3019
            %v3021 = vpop.f32.mrb[0].mxu0
            %v3022 = vadd.f32 0.0, %v3021
            %3023 = vdwg.mxu0
            %3024 = vmatprep.subr.mxu0 %v1523
            %3025 = vmatpush1.msra.mxu0 %v1522
            %3026 = vmatprep.subr.mxu0 %v1587
            %3027 = vmatpush1.msra.mxu0 %v1586
            %3028 = vmatprep.subr.mxu0 %v1651
            %3029 = vmatpush1.msra.mxu0 %v1650
            %3030 = vmatprep.subr.mxu0 %v1715
            %3031 = vmatpush1.msra.mxu0 %v1714
            %3032 = vmatprep.subr.mxu0 0.0
            %3033 = vmatpush1.msra.mxu0 0.0
            %3034 = vmatprep.subr.mxu0 0.0
            %3035 = vmatpush1.msra.mxu0 0.0
            %3036 = vmatprep.subr.mxu0 0.0
            %3037 = vmatpush1.msra.mxu0 0.0
            %3038 = vmatprep.subr.mxu0 0.0
            %3039 = vmatpush1.msra.mxu0 0.0
            %3040 = vmatprep.subr.mxu0 0.0
            %3041 = vmatpush1.msra.mxu0 0.0
            %3042 = vmatprep.subr.mxu0 0.0
            %3043 = vmatpush1.msra.mxu0 0.0
            %3044 = vmatprep.subr.mxu0 0.0
            %3045 = vmatpush1.msra.mxu0 0.0
            %3046 = vmatprep.subr.mxu0 0.0
            %3047 = vmatpush1.msra.mxu0 0.0
            %3048 = vmatprep.subr.mxu0 0.0
            %3049 = vmatpush1.msra.mxu0 0.0
            %3050 = vmatprep.subr.mxu0 0.0
            %3051 = vmatpush1.msra.mxu0 0.0
            %3052 = vmatprep.subr.mxu0 0.0
            %3053 = vmatpush1.msra.mxu0 0.0
            %3054 = vmatprep.subr.mxu0 0.0
            %3055 = vmatpush1.msra.mxu0 0.0
            %3056 = vmatprep.subr.mxu0 0.0
            %3057 = vmatpush1.msra.mxu0 0.0
            %3058 = vmatprep.subr.mxu0 0.0
            %3059 = vmatpush1.msra.mxu0 0.0
            %3060 = vmatprep.subr.mxu0 0.0
            %3061 = vmatpush1.msra.mxu0 0.0
            %3062 = vmatprep.subr.mxu0 0.0
            %3063 = vmatpush1.msra.mxu0 0.0
            %3064 = vmatprep.subr.mxu0 0.0
            %3065 = vmatpush1.msra.mxu0 0.0
            %3066 = vmatprep.subr.mxu0 0.0
            %3067 = vmatpush1.msra.mxu0 0.0
            %3068 = vmatprep.subr.mxu0 0.0
            %3069 = vmatpush1.msra.mxu0 0.0
            %3070 = vmatprep.subr.mxu0 0.0
            %3071 = vmatpush1.msra.mxu0 0.0
            %3072 = vmatprep.subr.mxu0 0.0
            %3073 = vmatpush1.msra.mxu0 0.0
            %3074 = vmatprep.subr.mxu0 0.0
            %3075 = vmatpush1.msra.mxu0 0.0
            %3076 = vmatprep.subr.mxu0 0.0
            %3077 = vmatpush1.msra.mxu0 0.0
            %3078 = vmatprep.subr.mxu0 0.0
            %3079 = vmatpush1.msra.mxu0 0.0
            %3080 = vmatprep.subr.mxu0 0.0
            %3081 = vmatpush1.msra.mxu0 0.0
            %3082 = vmatprep.subr.mxu0 0.0
            %3083 = vmatpush1.msra.mxu0 0.0
            %3084 = vmatprep.subr.mxu0 0.0
            %3085 = vmatpush1.msra.mxu0 0.0
            %3086 = vmatprep.subr.mxu0 0.0
            %3087 = vmatpush1.msra.mxu0 0.0
            %3088 = vmatprep.mubr.f32.mxu0 0.0
            %3089 = vmatmul.mubr.f32.gmra.mrb[0].mxu0 %v1744
            %v3090 = vpop.f32.mrb[0].mxu0
            %v3091 = vadd.f32 0.0, %v3090
            %v3092 = vpop.f32.mrb[0].mxu0
            %v3093 = vadd.f32 0.0, %v3092
            %3094 = vdwg.mxu0
            %3095 = vmatprep.subr.mxu0 %v1525
            %3096 = vmatpush1.msra.mxu0 %v1524
            %3097 = vmatprep.subr.mxu0 %v1589
            %3098 = vmatpush1.msra.mxu0 %v1588
            %3099 = vmatprep.subr.mxu0 %v1653
            %3100 = vmatpush1.msra.mxu0 %v1652
            %3101 = vmatprep.subr.mxu0 %v1717
            %3102 = vmatpush1.msra.mxu0 %v1716
            %3103 = vmatprep.subr.mxu0 0.0
            %3104 = vmatpush1.msra.mxu0 0.0
            %3105 = vmatprep.subr.mxu0 0.0
            %3106 = vmatpush1.msra.mxu0 0.0
            %3107 = vmatprep.subr.mxu0 0.0
            %3108 = vmatpush1.msra.mxu0 0.0
            %3109 = vmatprep.subr.mxu0 0.0
            %3110 = vmatpush1.msra.mxu0 0.0
            %3111 = vmatprep.subr.mxu0 0.0
            %3112 = vmatpush1.msra.mxu0 0.0
            %3113 = vmatprep.subr.mxu0 0.0
            %3114 = vmatpush1.msra.mxu0 0.0
            %3115 = vmatprep.subr.mxu0 0.0
            %3116 = vmatpush1.msra.mxu0 0.0
            %3117 = vmatprep.subr.mxu0 0.0
            %3118 = vmatpush1.msra.mxu0 0.0
            %3119 = vmatprep.subr.mxu0 0.0
            %3120 = vmatpush1.msra.mxu0 0.0
            %3121 = vmatprep.subr.mxu0 0.0
            %3122 = vmatpush1.msra.mxu0 0.0
            %3123 = vmatprep.subr.mxu0 0.0
            %3124 = vmatpush1.msra.mxu0 0.0
            %3125 = vmatprep.subr.mxu0 0.0
            %3126 = vmatpush1.msra.mxu0 0.0
            %3127 = vmatprep.subr.mxu0 0.0
            %3128 = vmatpush1.msra.mxu0 0.0
            %3129 = vmatprep.subr.mxu0 0.0
            %3130 = vmatpush1.msra.mxu0 0.0
            %3131 = vmatprep.subr.mxu0 0.0
            %3132 = vmatpush1.msra.mxu0 0.0
            %3133 = vmatprep.subr.mxu0 0.0
            %3134 = vmatpush1.msra.mxu0 0.0
            %3135 = vmatprep.subr.mxu0 0.0
            %3136 = vmatpush1.msra.mxu0 0.0
            %3137 = vmatprep.subr.mxu0 0.0
            %3138 = vmatpush1.msra.mxu0 0.0
            %3139 = vmatprep.subr.mxu0 0.0
            %3140 = vmatpush1.msra.mxu0 0.0
            %3141 = vmatprep.subr.mxu0 0.0
            %3142 = vmatpush1.msra.mxu0 0.0
            %3143 = vmatprep.subr.mxu0 0.0
            %3144 = vmatpush1.msra.mxu0 0.0
            %3145 = vmatprep.subr.mxu0 0.0
            %3146 = vmatpush1.msra.mxu0 0.0
            %3147 = vmatprep.subr.mxu0 0.0
            %3148 = vmatpush1.msra.mxu0 0.0
            %3149 = vmatprep.subr.mxu0 0.0
            %3150 = vmatpush1.msra.mxu0 0.0
            %3151 = vmatprep.subr.mxu0 0.0
            %3152 = vmatpush1.msra.mxu0 0.0
            %3153 = vmatprep.subr.mxu0 0.0
            %3154 = vmatpush1.msra.mxu0 0.0
            %3155 = vmatprep.subr.mxu0 0.0
            %3156 = vmatpush1.msra.mxu0 0.0
            %3157 = vmatprep.subr.mxu0 0.0
            %3158 = vmatpush1.msra.mxu0 0.0
            %3159 = vmatprep.mubr.f32.mxu0 0.0
            %3160 = vmatmul.mubr.f32.gmra.mrb[0].mxu0 %v1744
            %v3161 = vpop.f32.mrb[0].mxu0
            %v3162 = vadd.f32 0.0, %v3161
            %v3163 = vpop.f32.mrb[0].mxu0
            %v3164 = vadd.f32 0.0, %v3163
            %3165 = vdwg.mxu0
            %3166 = vmatprep.subr.mxu0 %v1527
            %3167 = vmatpush1.msra.mxu0 %v1526
            %3168 = vmatprep.subr.mxu0 %v1591
            %3169 = vmatpush1.msra.mxu0 %v1590
            %3170 = vmatprep.subr.mxu0 %v1655
            %3171 = vmatpush1.msra.mxu0 %v1654
            %3172 = vmatprep.subr.mxu0 %v1719
            %3173 = vmatpush1.msra.mxu0 %v1718
            %3174 = vmatprep.subr.mxu0 0.0
            %3175 = vmatpush1.msra.mxu0 0.0
            %3176 = vmatprep.subr.mxu0 0.0
            %3177 = vmatpush1.msra.mxu0 0.0
            %3178 = vmatprep.subr.mxu0 0.0
            %3179 = vmatpush1.msra.mxu0 0.0
            %3180 = vmatprep.subr.mxu0 0.0
            %3181 = vmatpush1.msra.mxu0 0.0
            %3182 = vmatprep.subr.mxu0 0.0
            %3183 = vmatpush1.msra.mxu0 0.0
            %3184 = vmatprep.subr.mxu0 0.0
            %3185 = vmatpush1.msra.mxu0 0.0
            %3186 = vmatprep.subr.mxu0 0.0
            %3187 = vmatpush1.msra.mxu0 0.0
            %3188 = vmatprep.subr.mxu0 0.0
            %3189 = vmatpush1.msra.mxu0 0.0
            %3190 = vmatprep.subr.mxu0 0.0
            %3191 = vmatpush1.msra.mxu0 0.0
            %3192 = vmatprep.subr.mxu0 0.0
            %3193 = vmatpush1.msra.mxu0 0.0
            %3194 = vmatprep.subr.mxu0 0.0
            %3195 = vmatpush1.msra.mxu0 0.0
            %3196 = vmatprep.subr.mxu0 0.0
            %3197 = vmatpush1.msra.mxu0 0.0
            %3198 = vmatprep.subr.mxu0 0.0
            %3199 = vmatpush1.msra.mxu0 0.0
            %3200 = vmatprep.subr.mxu0 0.0
            %3201 = vmatpush1.msra.mxu0 0.0
            %3202 = vmatprep.subr.mxu0 0.0
            %3203 = vmatpush1.msra.mxu0 0.0
            %3204 = vmatprep.subr.mxu0 0.0
            %3205 = vmatpush1.msra.mxu0 0.0
            %3206 = vmatprep.subr.mxu0 0.0
            %3207 = vmatpush1.msra.mxu0 0.0
            %3208 = vmatprep.subr.mxu0 0.0
            %3209 = vmatpush1.msra.mxu0 0.0
            %3210 = vmatprep.subr.mxu0 0.0
            %3211 = vmatpush1.msra.mxu0 0.0
            %3212 = vmatprep.subr.mxu0 0.0
            %3213 = vmatpush1.msra.mxu0 0.0
            %3214 = vmatprep.subr.mxu0 0.0
            %3215 = vmatpush1.msra.mxu0 0.0
            %3216 = vmatprep.subr.mxu0 0.0
            %3217 = vmatpush1.msra.mxu0 0.0
            %3218 = vmatprep.subr.mxu0 0.0
            %3219 = vmatpush1.msra.mxu0 0.0
            %3220 = vmatprep.subr.mxu0 0.0
            %3221 = vmatpush1.msra.mxu0 0.0
            %3222 = vmatprep.subr.mxu0 0.0
            %3223 = vmatpush1.msra.mxu0 0.0
            %3224 = vmatprep.subr.mxu0 0.0
            %3225 = vmatpush1.msra.mxu0 0.0
            %3226 = vmatprep.subr.mxu0 0.0
            %3227 = vmatpush1.msra.mxu0 0.0
            %3228 = vmatprep.subr.mxu0 0.0
            %3229 = vmatpush1.msra.mxu0 0.0
            %3230 = vmatprep.mubr.f32.mxu0 0.0
            %3231 = vmatmul.mubr.f32.gmra.mrb[0].mxu0 %v1744
            %v3232 = vpop.f32.mrb[0].mxu0
            %v3233 = vadd.f32 0.0, %v3232
            %v3234 = vpop.f32.mrb[0].mxu0
            %v3235 = vadd.f32 0.0, %v3234
            %3236 = vdwg.mxu0
            %3237 = vmatprep.subr.mxu0 %v1529
            %3238 = vmatpush1.msra.mxu0 %v1528
            %3239 = vmatprep.subr.mxu0 %v1593
            %3240 = vmatpush1.msra.mxu0 %v1592
            %3241 = vmatprep.subr.mxu0 %v1657
            %3242 = vmatpush1.msra.mxu0 %v1656
            %3243 = vmatprep.subr.mxu0 %v1721
            %3244 = vmatpush1.msra.mxu0 %v1720
            %3245 = vmatprep.subr.mxu0 0.0
            %3246 = vmatpush1.msra.mxu0 0.0
            %3247 = vmatprep.subr.mxu0 0.0
            %3248 = vmatpush1.msra.mxu0 0.0
            %3249 = vmatprep.subr.mxu0 0.0
            %3250 = vmatpush1.msra.mxu0 0.0
            %3251 = vmatprep.subr.mxu0 0.0
            %3252 = vmatpush1.msra.mxu0 0.0
            %3253 = vmatprep.subr.mxu0 0.0
            %3254 = vmatpush1.msra.mxu0 0.0
            %3255 = vmatprep.subr.mxu0 0.0
            %3256 = vmatpush1.msra.mxu0 0.0
            %3257 = vmatprep.subr.mxu0 0.0
            %3258 = vmatpush1.msra.mxu0 0.0
            %3259 = vmatprep.subr.mxu0 0.0
            %3260 = vmatpush1.msra.mxu0 0.0
            %3261 = vmatprep.subr.mxu0 0.0
            %3262 = vmatpush1.msra.mxu0 0.0
            %3263 = vmatprep.subr.mxu0 0.0
            %3264 = vmatpush1.msra.mxu0 0.0
            %3265 = vmatprep.subr.mxu0 0.0
            %3266 = vmatpush1.msra.mxu0 0.0
            %3267 = vmatprep.subr.mxu0 0.0
            %3268 = vmatpush1.msra.mxu0 0.0
            %3269 = vmatprep.subr.mxu0 0.0
            %3270 = vmatpush1.msra.mxu0 0.0
            %3271 = vmatprep.subr.mxu0 0.0
            %3272 = vmatpush1.msra.mxu0 0.0
            %3273 = vmatprep.subr.mxu0 0.0
            %3274 = vmatpush1.msra.mxu0 0.0
            %3275 = vmatprep.subr.mxu0 0.0
            %3276 = vmatpush1.msra.mxu0 0.0
            %3277 = vmatprep.subr.mxu0 0.0
            %3278 = vmatpush1.msra.mxu0 0.0
            %3279 = vmatprep.subr.mxu0 0.0
            %3280 = vmatpush1.msra.mxu0 0.0
            %3281 = vmatprep.subr.mxu0 0.0
            %3282 = vmatpush1.msra.mxu0 0.0
            %3283 = vmatprep.subr.mxu0 0.0
            %3284 = vmatpush1.msra.mxu0 0.0
            %3285 = vmatprep.subr.mxu0 0.0
            %3286 = vmatpush1.msra.mxu0 0.0
            %3287 = vmatprep.subr.mxu0 0.0
            %3288 = vmatpush1.msra.mxu0 0.0
            %3289 = vmatprep.subr.mxu0 0.0
            %3290 = vmatpush1.msra.mxu0 0.0
            %3291 = vmatprep.subr.mxu0 0.0
            %3292 = vmatpush1.msra.mxu0 0.0
            %3293 = vmatprep.subr.mxu0 0.0
            %3294 = vmatpush1.msra.mxu0 0.0
            %3295 = vmatprep.subr.mxu0 0.0
            %3296 = vmatpush1.msra.mxu0 0.0
            %3297 = vmatprep.subr.mxu0 0.0
            %3298 = vmatpush1.msra.mxu0 0.0
            %3299 = vmatprep.subr.mxu0 0.0
            %3300 = vmatpush1.msra.mxu0 0.0
            %3301 = vmatprep.mubr.f32.mxu0 0.0
            %3302 = vmatmul.mubr.f32.gmra.mrb[0].mxu0 %v1744
            %v3303 = vpop.f32.mrb[0].mxu0
            %v3304 = vadd.f32 0.0, %v3303
            %v3305 = vpop.f32.mrb[0].mxu0
            %v3306 = vadd.f32 0.0, %v3305
            %3307 = vdwg.mxu0
            %3308 = vmatprep.subr.mxu0 %v1531
            %3309 = vmatpush1.msra.mxu0 %v1530
            %3310 = vmatprep.subr.mxu0 %v1595
            %3311 = vmatpush1.msra.mxu0 %v1594
            %3312 = vmatprep.subr.mxu0 %v1659
            %3313 = vmatpush1.msra.mxu0 %v1658
            %3314 = vmatprep.subr.mxu0 %v1723
            %3315 = vmatpush1.msra.mxu0 %v1722
            %3316 = vmatprep.subr.mxu0 0.0
            %3317 = vmatpush1.msra.mxu0 0.0
            %3318 = vmatprep.subr.mxu0 0.0
            %3319 = vmatpush1.msra.mxu0 0.0
            %3320 = vmatprep.subr.mxu0 0.0
            %3321 = vmatpush1.msra.mxu0 0.0
            %3322 = vmatprep.subr.mxu0 0.0
            %3323 = vmatpush1.msra.mxu0 0.0
            %3324 = vmatprep.subr.mxu0 0.0
            %3325 = vmatpush1.msra.mxu0 0.0
            %3326 = vmatprep.subr.mxu0 0.0
            %3327 = vmatpush1.msra.mxu0 0.0
            %3328 = vmatprep.subr.mxu0 0.0
            %3329 = vmatpush1.msra.mxu0 0.0
            %3330 = vmatprep.subr.mxu0 0.0
            %3331 = vmatpush1.msra.mxu0 0.0
            %3332 = vmatprep.subr.mxu0 0.0
            %3333 = vmatpush1.msra.mxu0 0.0
            %3334 = vmatprep.subr.mxu0 0.0
            %3335 = vmatpush1.msra.mxu0 0.0
            %3336 = vmatprep.subr.mxu0 0.0
            %3337 = vmatpush1.msra.mxu0 0.0
            %3338 = vmatprep.subr.mxu0 0.0
            %3339 = vmatpush1.msra.mxu0 0.0
            %3340 = vmatprep.subr.mxu0 0.0
            %3341 = vmatpush1.msra.mxu0 0.0
            %3342 = vmatprep.subr.mxu0 0.0
            %3343 = vmatpush1.msra.mxu0 0.0
            %3344 = vmatprep.subr.mxu0 0.0
            %3345 = vmatpush1.msra.mxu0 0.0
            %3346 = vmatprep.subr.mxu0 0.0
            %3347 = vmatpush1.msra.mxu0 0.0
            %3348 = vmatprep.subr.mxu0 0.0
            %3349 = vmatpush1.msra.mxu0 0.0
            %3350 = vmatprep.subr.mxu0 0.0
            %3351 = vmatpush1.msra.mxu0 0.0
            %3352 = vmatprep.subr.mxu0 0.0
            %3353 = vmatpush1.msra.mxu0 0.0
            %3354 = vmatprep.subr.mxu0 0.0
            %3355 = vmatpush1.msra.mxu0 0.0
            %3356 = vmatprep.subr.mxu0 0.0
            %3357 = vmatpush1.msra.mxu0 0.0
            %3358 = vmatprep.subr.mxu0 0.0
            %3359 = vmatpush1.msra.mxu0 0.0
            %3360 = vmatprep.subr.mxu0 0.0
            %3361 = vmatpush1.msra.mxu0 0.0
            %3362 = vmatprep.subr.mxu0 0.0
            %3363 = vmatpush1.msra.mxu0 0.0
            %3364 = vmatprep.subr.mxu0 0.0
            %3365 = vmatpush1.msra.mxu0 0.0
            %3366 = vmatprep.subr.mxu0 0.0
            %3367 = vmatpush1.msra.mxu0 0.0
            %3368 = vmatprep.subr.mxu0 0.0
            %3369 = vmatpush1.msra.mxu0 0.0
            %3370 = vmatprep.subr.mxu0 0.0
            %3371 = vmatpush1.msra.mxu0 0.0
            %3372 = vmatprep.mubr.f32.mxu0 0.0
            %3373 = vmatmul.mubr.f32.gmra.mrb[0].mxu0 %v1744
            %v3374 = vpop.f32.mrb[0].mxu0
            %v3375 = vadd.f32 0.0, %v3374
            %v3376 = vpop.f32.mrb[0].mxu0
            %v3377 = vadd.f32 0.0, %v3376
            %3378 = vdwg.mxu0
            %3379 = vmatprep.subr.mxu0 %v1533
            %3380 = vmatpush1.msra.mxu0 %v1532
            %3381 = vmatprep.subr.mxu0 %v1597
            %3382 = vmatpush1.msra.mxu0 %v1596
            %3383 = vmatprep.subr.mxu0 %v1661
            %3384 = vmatpush1.msra.mxu0 %v1660
            %3385 = vmatprep.subr.mxu0 %v1725
            %3386 = vmatpush1.msra.mxu0 %v1724
            %3387 = vmatprep.subr.mxu0 0.0
            %3388 = vmatpush1.msra.mxu0 0.0
            %3389 = vmatprep.subr.mxu0 0.0
            %3390 = vmatpush1.msra.mxu0 0.0
            %3391 = vmatprep.subr.mxu0 0.0
            %3392 = vmatpush1.msra.mxu0 0.0
            %3393 = vmatprep.subr.mxu0 0.0
            %3394 = vmatpush1.msra.mxu0 0.0
            %3395 = vmatprep.subr.mxu0 0.0
            %3396 = vmatpush1.msra.mxu0 0.0
            %3397 = vmatprep.subr.mxu0 0.0
            %3398 = vmatpush1.msra.mxu0 0.0
            %3399 = vmatprep.subr.mxu0 0.0
            %3400 = vmatpush1.msra.mxu0 0.0
            %3401 = vmatprep.subr.mxu0 0.0
            %3402 = vmatpush1.msra.mxu0 0.0
            %3403 = vmatprep.subr.mxu0 0.0
            %3404 = vmatpush1.msra.mxu0 0.0
            %3405 = vmatprep.subr.mxu0 0.0
            %3406 = vmatpush1.msra.mxu0 0.0
            %3407 = vmatprep.subr.mxu0 0.0
            %3408 = vmatpush1.msra.mxu0 0.0
            %3409 = vmatprep.subr.mxu0 0.0
            %3410 = vmatpush1.msra.mxu0 0.0
            %3411 = vmatprep.subr.mxu0 0.0
            %3412 = vmatpush1.msra.mxu0 0.0
            %3413 = vmatprep.subr.mxu0 0.0
            %3414 = vmatpush1.msra.mxu0 0.0
            %3415 = vmatprep.subr.mxu0 0.0
            %3416 = vmatpush1.msra.mxu0 0.0
            %3417 = vmatprep.subr.mxu0 0.0
            %3418 = vmatpush1.msra.mxu0 0.0
            %3419 = vmatprep.subr.mxu0 0.0
            %3420 = vmatpush1.msra.mxu0 0.0
            %3421 = vmatprep.subr.mxu0 0.0
            %3422 = vmatpush1.msra.mxu0 0.0
            %3423 = vmatprep.subr.mxu0 0.0
            %3424 = vmatpush1.msra.mxu0 0.0
            %3425 = vmatprep.subr.mxu0 0.0
            %3426 = vmatpush1.msra.mxu0 0.0
            %3427 = vmatprep.subr.mxu0 0.0
            %3428 = vmatpush1.msra.mxu0 0.0
            %3429 = vmatprep.subr.mxu0 0.0
            %3430 = vmatpush1.msra.mxu0 0.0
            %3431 = vmatprep.subr.mxu0 0.0
            %3432 = vmatpush1.msra.mxu0 0.0
            %3433 = vmatprep.subr.mxu0 0.0
            %3434 = vmatpush1.msra.mxu0 0.0
            %3435 = vmatprep.subr.mxu0 0.0
            %3436 = vmatpush1.msra.mxu0 0.0
            %3437 = vmatprep.subr.mxu0 0.0
            %3438 = vmatpush1.msra.mxu0 0.0
            %3439 = vmatprep.subr.mxu0 0.0
            %3440 = vmatpush1.msra.mxu0 0.0
            %3441 = vmatprep.subr.mxu0 0.0
            %3442 = vmatpush1.msra.mxu0 0.0
            %3443 = vmatprep.mubr.f32.mxu0 0.0
            %3444 = vmatmul.mubr.f32.gmra.mrb[0].mxu0 %v1744
            %v3445 = vpop.f32.mrb[0].mxu0
            %v3446 = vadd.f32 0.0, %v3445
            %v3447 = vpop.f32.mrb[0].mxu0
            %v3448 = vadd.f32 0.0, %v3447
            %3449 = vdwg.mxu0
            %3450 = vmatprep.subr.mxu0 %v1535
            %3451 = vmatpush1.msra.mxu0 %v1534
            %3452 = vmatprep.subr.mxu0 %v1599
            %3453 = vmatpush1.msra.mxu0 %v1598
            %3454 = vmatprep.subr.mxu0 %v1663
            %3455 = vmatpush1.msra.mxu0 %v1662
            %3456 = vmatprep.subr.mxu0 %v1727
            %3457 = vmatpush1.msra.mxu0 %v1726
            %3458 = vmatprep.subr.mxu0 0.0
            %3459 = vmatpush1.msra.mxu0 0.0
            %3460 = vmatprep.subr.mxu0 0.0
            %3461 = vmatpush1.msra.mxu0 0.0
            %3462 = vmatprep.subr.mxu0 0.0
            %3463 = vmatpush1.msra.mxu0 0.0
            %3464 = vmatprep.subr.mxu0 0.0
            %3465 = vmatpush1.msra.mxu0 0.0
            %3466 = vmatprep.subr.mxu0 0.0
            %3467 = vmatpush1.msra.mxu0 0.0
            %3468 = vmatprep.subr.mxu0 0.0
            %3469 = vmatpush1.msra.mxu0 0.0
            %3470 = vmatprep.subr.mxu0 0.0
            %3471 = vmatpush1.msra.mxu0 0.0
            %3472 = vmatprep.subr.mxu0 0.0
            %3473 = vmatpush1.msra.mxu0 0.0
            %3474 = vmatprep.subr.mxu0 0.0
            %3475 = vmatpush1.msra.mxu0 0.0
            %3476 = vmatprep.subr.mxu0 0.0
            %3477 = vmatpush1.msra.mxu0 0.0
            %3478 = vmatprep.subr.mxu0 0.0
            %3479 = vmatpush1.msra.mxu0 0.0
            %3480 = vmatprep.subr.mxu0 0.0
            %3481 = vmatpush1.msra.mxu0 0.0
            %3482 = vmatprep.subr.mxu0 0.0
            %3483 = vmatpush1.msra.mxu0 0.0
            %3484 = vmatprep.subr.mxu0 0.0
            %3485 = vmatpush1.msra.mxu0 0.0
            %3486 = vmatprep.subr.mxu0 0.0
            %3487 = vmatpush1.msra.mxu0 0.0
            %3488 = vmatprep.subr.mxu0 0.0
            %3489 = vmatpush1.msra.mxu0 0.0
            %3490 = vmatprep.subr.mxu0 0.0
            %3491 = vmatpush1.msra.mxu0 0.0
            %3492 = vmatprep.subr.mxu0 0.0
            %3493 = vmatpush1.msra.mxu0 0.0
            %3494 = vmatprep.subr.mxu0 0.0
            %3495 = vmatpush1.msra.mxu0 0.0
            %3496 = vmatprep.subr.mxu0 0.0
            %3497 = vmatpush1.msra.mxu0 0.0
            %3498 = vmatprep.subr.mxu0 0.0
            %3499 = vmatpush1.msra.mxu0 0.0
            %3500 = vmatprep.subr.mxu0 0.0
            %3501 = vmatpush1.msra.mxu0 0.0
            %3502 = vmatprep.subr.mxu0 0.0
            %3503 = vmatpush1.msra.mxu0 0.0
            %3504 = vmatprep.subr.mxu0 0.0
            %3505 = vmatpush1.msra.mxu0 0.0
            %3506 = vmatprep.subr.mxu0 0.0
            %3507 = vmatpush1.msra.mxu0 0.0
            %3508 = vmatprep.subr.mxu0 0.0
            %3509 = vmatpush1.msra.mxu0 0.0
            %3510 = vmatprep.subr.mxu0 0.0
            %3511 = vmatpush1.msra.mxu0 0.0
            %3512 = vmatprep.subr.mxu0 0.0
            %3513 = vmatpush1.msra.mxu0 0.0
            %3514 = vmatprep.mubr.f32.mxu0 0.0
            %3515 = vmatmul.mubr.f32.gmra.mrb[0].mxu0 %v1744
            %v3516 = vpop.f32.mrb[0].mxu0
            %v3517 = vadd.f32 0.0, %v3516
            %v3518 = vpop.f32.mrb[0].mxu0
            %v3519 = vadd.f32 0.0, %v3518
            %3520 = vdwg.mxu0
            %3521 = vmatprep.subr.mxu0 %v1537
            %3522 = vmatpush1.msra.mxu0 %v1536
            %3523 = vmatprep.subr.mxu0 %v1601
            %3524 = vmatpush1.msra.mxu0 %v1600
            %3525 = vmatprep.subr.mxu0 %v1665
            %3526 = vmatpush1.msra.mxu0 %v1664
            %3527 = vmatprep.subr.mxu0 %v1729
            %3528 = vmatpush1.msra.mxu0 %v1728
            %3529 = vmatprep.subr.mxu0 0.0
            %3530 = vmatpush1.msra.mxu0 0.0
            %3531 = vmatprep.subr.mxu0 0.0
            %3532 = vmatpush1.msra.mxu0 0.0
            %3533 = vmatprep.subr.mxu0 0.0
            %3534 = vmatpush1.msra.mxu0 0.0
            %3535 = vmatprep.subr.mxu0 0.0
            %3536 = vmatpush1.msra.mxu0 0.0
            %3537 = vmatprep.subr.mxu0 0.0
            %3538 = vmatpush1.msra.mxu0 0.0
            %3539 = vmatprep.subr.mxu0 0.0
            %3540 = vmatpush1.msra.mxu0 0.0
            %3541 = vmatprep.subr.mxu0 0.0
            %3542 = vmatpush1.msra.mxu0 0.0
            %3543 = vmatprep.subr.mxu0 0.0
            %3544 = vmatpush1.msra.mxu0 0.0
            %3545 = vmatprep.subr.mxu0 0.0
            %3546 = vmatpush1.msra.mxu0 0.0
            %3547 = vmatprep.subr.mxu0 0.0
            %3548 = vmatpush1.msra.mxu0 0.0
            %3549 = vmatprep.subr.mxu0 0.0
            %3550 = vmatpush1.msra.mxu0 0.0
            %3551 = vmatprep.subr.mxu0 0.0
            %3552 = vmatpush1.msra.mxu0 0.0
            %3553 = vmatprep.subr.mxu0 0.0
            %3554 = vmatpush1.msra.mxu0 0.0
            %3555 = vmatprep.subr.mxu0 0.0
            %3556 = vmatpush1.msra.mxu0 0.0
            %3557 = vmatprep.subr.mxu0 0.0
            %3558 = vmatpush1.msra.mxu0 0.0
            %3559 = vmatprep.subr.mxu0 0.0
            %3560 = vmatpush1.msra.mxu0 0.0
            %3561 = vmatprep.subr.mxu0 0.0
            %3562 = vmatpush1.msra.mxu0 0.0
            %3563 = vmatprep.subr.mxu0 0.0
            %3564 = vmatpush1.msra.mxu0 0.0
            %3565 = vmatprep.subr.mxu0 0.0
            %3566 = vmatpush1.msra.mxu0 0.0
            %3567 = vmatprep.subr.mxu0 0.0
            %3568 = vmatpush1.msra.mxu0 0.0
            %3569 = vmatprep.subr.mxu0 0.0
            %3570 = vmatpush1.msra.mxu0 0.0
            %3571 = vmatprep.subr.mxu0 0.0
            %3572 = vmatpush1.msra.mxu0 0.0
            %3573 = vmatprep.subr.mxu0 0.0
            %3574 = vmatpush1.msra.mxu0 0.0
            %3575 = vmatprep.subr.mxu0 0.0
            %3576 = vmatpush1.msra.mxu0 0.0
            %3577 = vmatprep.subr.mxu0 0.0
            %3578 = vmatpush1.msra.mxu0 0.0
            %3579 = vmatprep.subr.mxu0 0.0
            %3580 = vmatpush1.msra.mxu0 0.0
            %3581 = vmatprep.subr.mxu0 0.0
            %3582 = vmatpush1.msra.mxu0 0.0
            %3583 = vmatprep.subr.mxu0 0.0
            %3584 = vmatpush1.msra.mxu0 0.0
            %3585 = vmatprep.mubr.f32.mxu0 0.0
            %3586 = vmatmul.mubr.f32.gmra.mrb[0].mxu0 %v1744
            %v3587 = vpop.f32.mrb[0].mxu0
            %v3588 = vadd.f32 0.0, %v3587
            %v3589 = vpop.f32.mrb[0].mxu0
            %v3590 = vadd.f32 0.0, %v3589
            %3591 = vdwg.mxu0
            %3592 = vmatprep.subr.mxu0 %v1539
            %3593 = vmatpush1.msra.mxu0 %v1538
            %3594 = vmatprep.subr.mxu0 %v1603
            %3595 = vmatpush1.msra.mxu0 %v1602
            %3596 = vmatprep.subr.mxu0 %v1667
            %3597 = vmatpush1.msra.mxu0 %v1666
            %3598 = vmatprep.subr.mxu0 %v1731
            %3599 = vmatpush1.msra.mxu0 %v1730
            %3600 = vmatprep.subr.mxu0 0.0
            %3601 = vmatpush1.msra.mxu0 0.0
            %3602 = vmatprep.subr.mxu0 0.0
            %3603 = vmatpush1.msra.mxu0 0.0
            %3604 = vmatprep.subr.mxu0 0.0
            %3605 = vmatpush1.msra.mxu0 0.0
            %3606 = vmatprep.subr.mxu0 0.0
            %3607 = vmatpush1.msra.mxu0 0.0
            %3608 = vmatprep.subr.mxu0 0.0
            %3609 = vmatpush1.msra.mxu0 0.0
            %3610 = vmatprep.subr.mxu0 0.0
            %3611 = vmatpush1.msra.mxu0 0.0
            %3612 = vmatprep.subr.mxu0 0.0
            %3613 = vmatpush1.msra.mxu0 0.0
            %3614 = vmatprep.subr.mxu0 0.0
            %3615 = vmatpush1.msra.mxu0 0.0
            %3616 = vmatprep.subr.mxu0 0.0
            %3617 = vmatpush1.msra.mxu0 0.0
            %3618 = vmatprep.subr.mxu0 0.0
            %3619 = vmatpush1.msra.mxu0 0.0
            %3620 = vmatprep.subr.mxu0 0.0
            %3621 = vmatpush1.msra.mxu0 0.0
            %3622 = vmatprep.subr.mxu0 0.0
            %3623 = vmatpush1.msra.mxu0 0.0
            %3624 = vmatprep.subr.mxu0 0.0
            %3625 = vmatpush1.msra.mxu0 0.0
            %3626 = vmatprep.subr.mxu0 0.0
            %3627 = vmatpush1.msra.mxu0 0.0
            %3628 = vmatprep.subr.mxu0 0.0
            %3629 = vmatpush1.msra.mxu0 0.0
            %3630 = vmatprep.subr.mxu0 0.0
            %3631 = vmatpush1.msra.mxu0 0.0
            %3632 = vmatprep.subr.mxu0 0.0
            %3633 = vmatpush1.msra.mxu0 0.0
            %3634 = vmatprep.subr.mxu0 0.0
            %3635 = vmatpush1.msra.mxu0 0.0
            %3636 = vmatprep.subr.mxu0 0.0
            %3637 = vmatpush1.msra.mxu0 0.0
            %3638 = vmatprep.subr.mxu0 0.0
            %3639 = vmatpush1.msra.mxu0 0.0
            %3640 = vmatprep.subr.mxu0 0.0
            %3641 = vmatpush1.msra.mxu0 0.0
            %3642 = vmatprep.subr.mxu0 0.0
            %3643 = vmatpush1.msra.mxu0 0.0
            %3644 = vmatprep.subr.mxu0 0.0
            %3645 = vmatpush1.msra.mxu0 0.0
            %3646 = vmatprep.subr.mxu0 0.0
            %3647 = vmatpush1.msra.mxu0 0.0
            %3648 = vmatprep.subr.mxu0 0.0
            %3649 = vmatpush1.msra.mxu0 0.0
            %3650 = vmatprep.subr.mxu0 0.0
            %3651 = vmatpush1.msra.mxu0 0.0
            %3652 = vmatprep.subr.mxu0 0.0
            %3653 = vmatpush1.msra.mxu0 0.0
            %3654 = vmatprep.subr.mxu0 0.0
            %3655 = vmatpush1.msra.mxu0 0.0
            %3656 = vmatprep.mubr.f32.mxu0 0.0
            %3657 = vmatmul.mubr.f32.gmra.mrb[0].mxu0 %v1744
            %v3658 = vpop.f32.mrb[0].mxu0
            %v3659 = vadd.f32 0.0, %v3658
            %v3660 = vpop.f32.mrb[0].mxu0
            %v3661 = vadd.f32 0.0, %v3660
            %3662 = vdwg.mxu0
            %3663 = vmatprep.subr.mxu0 %v1541
            %3664 = vmatpush1.msra.mxu0 %v1540
            %3665 = vmatprep.subr.mxu0 %v1605
            %3666 = vmatpush1.msra.mxu0 %v1604
            %3667 = vmatprep.subr.mxu0 %v1669
            %3668 = vmatpush1.msra.mxu0 %v1668
            %3669 = vmatprep.subr.mxu0 %v1733
            %3670 = vmatpush1.msra.mxu0 %v1732
            %3671 = vmatprep.subr.mxu0 0.0
            %3672 = vmatpush1.msra.mxu0 0.0
            %3673 = vmatprep.subr.mxu0 0.0
            %3674 = vmatpush1.msra.mxu0 0.0
            %3675 = vmatprep.subr.mxu0 0.0
            %3676 = vmatpush1.msra.mxu0 0.0
            %3677 = vmatprep.subr.mxu0 0.0
            %3678 = vmatpush1.msra.mxu0 0.0
            %3679 = vmatprep.subr.mxu0 0.0
            %3680 = vmatpush1.msra.mxu0 0.0
            %3681 = vmatprep.subr.mxu0 0.0
            %3682 = vmatpush1.msra.mxu0 0.0
            %3683 = vmatprep.subr.mxu0 0.0
            %3684 = vmatpush1.msra.mxu0 0.0
            %3685 = vmatprep.subr.mxu0 0.0
            %3686 = vmatpush1.msra.mxu0 0.0
            %3687 = vmatprep.subr.mxu0 0.0
            %3688 = vmatpush1.msra.mxu0 0.0
            %3689 = vmatprep.subr.mxu0 0.0
            %3690 = vmatpush1.msra.mxu0 0.0
            %3691 = vmatprep.subr.mxu0 0.0
            %3692 = vmatpush1.msra.mxu0 0.0
            %3693 = vmatprep.subr.mxu0 0.0
            %3694 = vmatpush1.msra.mxu0 0.0
            %3695 = vmatprep.subr.mxu0 0.0
            %3696 = vmatpush1.msra.mxu0 0.0
            %3697 = vmatprep.subr.mxu0 0.0
            %3698 = vmatpush1.msra.mxu0 0.0
            %3699 = vmatprep.subr.mxu0 0.0
            %3700 = vmatpush1.msra.mxu0 0.0
            %3701 = vmatprep.subr.mxu0 0.0
            %3702 = vmatpush1.msra.mxu0 0.0
            %3703 = vmatprep.subr.mxu0 0.0
            %3704 = vmatpush1.msra.mxu0 0.0
            %3705 = vmatprep.subr.mxu0 0.0
            %3706 = vmatpush1.msra.mxu0 0.0
            %3707 = vmatprep.subr.mxu0 0.0
            %3708 = vmatpush1.msra.mxu0 0.0
            %3709 = vmatprep.subr.mxu0 0.0
            %3710 = vmatpush1.msra.mxu0 0.0
            %3711 = vmatprep.subr.mxu0 0.0
            %3712 = vmatpush1.msra.mxu0 0.0
            %3713 = vmatprep.subr.mxu0 0.0
            %3714 = vmatpush1.msra.mxu0 0.0
            %3715 = vmatprep.subr.mxu0 0.0
            %3716 = vmatpush1.msra.mxu0 0.0
            %3717 = vmatprep.subr.mxu0 0.0
            %3718 = vmatpush1.msra.mxu0 0.0
            %3719 = vmatprep.subr.mxu0 0.0
            %3720 = vmatpush1.msra.mxu0 0.0
            %3721 = vmatprep.subr.mxu0 0.0
            %3722 = vmatpush1.msra.mxu0 0.0
            %3723 = vmatprep.subr.mxu0 0.0
            %3724 = vmatpush1.msra.mxu0 0.0
            %3725 = vmatprep.subr.mxu0 0.0
            %3726 = vmatpush1.msra.mxu0 0.0
            %3727 = vmatprep.mubr.f32.mxu0 0.0
            %3728 = vmatmul.mubr.f32.gmra.mrb[0].mxu0 %v1744
            %v3729 = vpop.f32.mrb[0].mxu0
            %v3730 = vadd.f32 0.0, %v3729
            %v3731 = vpop.f32.mrb[0].mxu0
            %v3732 = vadd.f32 0.0, %v3731
            %3733 = vdwg.mxu0
            %3734 = vmatprep.subr.mxu0 %v1543
            %3735 = vmatpush1.msra.mxu0 %v1542
            %3736 = vmatprep.subr.mxu0 %v1607
            %3737 = vmatpush1.msra.mxu0 %v1606
            %3738 = vmatprep.subr.mxu0 %v1671
            %3739 = vmatpush1.msra.mxu0 %v1670
            %3740 = vmatprep.subr.mxu0 %v1735
            %3741 = vmatpush1.msra.mxu0 %v1734
            %3742 = vmatprep.subr.mxu0 0.0
            %3743 = vmatpush1.msra.mxu0 0.0
            %3744 = vmatprep.subr.mxu0 0.0
            %3745 = vmatpush1.msra.mxu0 0.0
            %3746 = vmatprep.subr.mxu0 0.0
            %3747 = vmatpush1.msra.mxu0 0.0
            %3748 = vmatprep.subr.mxu0 0.0
            %3749 = vmatpush1.msra.mxu0 0.0
            %3750 = vmatprep.subr.mxu0 0.0
            %3751 = vmatpush1.msra.mxu0 0.0
            %3752 = vmatprep.subr.mxu0 0.0
            %3753 = vmatpush1.msra.mxu0 0.0
            %3754 = vmatprep.subr.mxu0 0.0
            %3755 = vmatpush1.msra.mxu0 0.0
            %3756 = vmatprep.subr.mxu0 0.0
            %3757 = vmatpush1.msra.mxu0 0.0
            %3758 = vmatprep.subr.mxu0 0.0
            %3759 = vmatpush1.msra.mxu0 0.0
            %3760 = vmatprep.subr.mxu0 0.0
            %3761 = vmatpush1.msra.mxu0 0.0
            %3762 = vmatprep.subr.mxu0 0.0
            %3763 = vmatpush1.msra.mxu0 0.0
            %3764 = vmatprep.subr.mxu0 0.0
            %3765 = vmatpush1.msra.mxu0 0.0
            %3766 = vmatprep.subr.mxu0 0.0
            %3767 = vmatpush1.msra.mxu0 0.0
            %3768 = vmatprep.subr.mxu0 0.0
            %3769 = vmatpush1.msra.mxu0 0.0
            %3770 = vmatprep.subr.mxu0 0.0
            %3771 = vmatpush1.msra.mxu0 0.0
            %3772 = vmatprep.subr.mxu0 0.0
            %3773 = vmatpush1.msra.mxu0 0.0
            %3774 = vmatprep.subr.mxu0 0.0
            %3775 = vmatpush1.msra.mxu0 0.0
            %3776 = vmatprep.subr.mxu0 0.0
            %3777 = vmatpush1.msra.mxu0 0.0
            %3778 = vmatprep.subr.mxu0 0.0
            %3779 = vmatpush1.msra.mxu0 0.0
            %3780 = vmatprep.subr.mxu0 0.0
            %3781 = vmatpush1.msra.mxu0 0.0
            %3782 = vmatprep.subr.mxu0 0.0
            %3783 = vmatpush1.msra.mxu0 0.0
            %3784 = vmatprep.subr.mxu0 0.0
            %3785 = vmatpush1.msra.mxu0 0.0
            %3786 = vmatprep.subr.mxu0 0.0
            %3787 = vmatpush1.msra.mxu0 0.0
            %3788 = vmatprep.subr.mxu0 0.0
            %3789 = vmatpush1.msra.mxu0 0.0
            %3790 = vmatprep.subr.mxu0 0.0
            %3791 = vmatpush1.msra.mxu0 0.0
            %3792 = vmatprep.subr.mxu0 0.0
            %3793 = vmatpush1.msra.mxu0 0.0
            %3794 = vmatprep.subr.mxu0 0.0
            %3795 = vmatpush1.msra.mxu0 0.0
            %3796 = vmatprep.subr.mxu0 0.0
            %3797 = vmatpush1.msra.mxu0 0.0
            %3798 = vmatprep.mubr.f32.mxu0 0.0
            %3799 = vmatmul.mubr.f32.gmra.mrb[0].mxu0 %v1744
            %v3800 = vpop.f32.mrb[0].mxu0
            %v3801 = vadd.f32 0.0, %v3800
            %v3802 = vpop.f32.mrb[0].mxu0
            %v3803 = vadd.f32 0.0, %v3802
            %3804 = vdwg.mxu0
            %3805 = vmatprep.subr.mxu0 %v1545
            %3806 = vmatpush1.msra.mxu0 %v1544
            %3807 = vmatprep.subr.mxu0 %v1609
            %3808 = vmatpush1.msra.mxu0 %v1608
            %3809 = vmatprep.subr.mxu0 %v1673
            %3810 = vmatpush1.msra.mxu0 %v1672
            %3811 = vmatprep.subr.mxu0 %v1737
            %3812 = vmatpush1.msra.mxu0 %v1736
            %3813 = vmatprep.subr.mxu0 0.0
            %3814 = vmatpush1.msra.mxu0 0.0
            %3815 = vmatprep.subr.mxu0 0.0
            %3816 = vmatpush1.msra.mxu0 0.0
            %3817 = vmatprep.subr.mxu0 0.0
            %3818 = vmatpush1.msra.mxu0 0.0
            %3819 = vmatprep.subr.mxu0 0.0
            %3820 = vmatpush1.msra.mxu0 0.0
            %3821 = vmatprep.subr.mxu0 0.0
            %3822 = vmatpush1.msra.mxu0 0.0
            %3823 = vmatprep.subr.mxu0 0.0
            %3824 = vmatpush1.msra.mxu0 0.0
            %3825 = vmatprep.subr.mxu0 0.0
            %3826 = vmatpush1.msra.mxu0 0.0
            %3827 = vmatprep.subr.mxu0 0.0
            %3828 = vmatpush1.msra.mxu0 0.0
            %3829 = vmatprep.subr.mxu0 0.0
            %3830 = vmatpush1.msra.mxu0 0.0
            %3831 = vmatprep.subr.mxu0 0.0
            %3832 = vmatpush1.msra.mxu0 0.0
            %3833 = vmatprep.subr.mxu0 0.0
            %3834 = vmatpush1.msra.mxu0 0.0
            %3835 = vmatprep.subr.mxu0 0.0
            %3836 = vmatpush1.msra.mxu0 0.0
            %3837 = vmatprep.subr.mxu0 0.0
            %3838 = vmatpush1.msra.mxu0 0.0
            %3839 = vmatprep.subr.mxu0 0.0
            %3840 = vmatpush1.msra.mxu0 0.0
            %3841 = vmatprep.subr.mxu0 0.0
            %3842 = vmatpush1.msra.mxu0 0.0
            %3843 = vmatprep.subr.mxu0 0.0
            %3844 = vmatpush1.msra.mxu0 0.0
            %3845 = vmatprep.subr.mxu0 0.0
            %3846 = vmatpush1.msra.mxu0 0.0
            %3847 = vmatprep.subr.mxu0 0.0
            %3848 = vmatpush1.msra.mxu0 0.0
            %3849 = vmatprep.subr.mxu0 0.0
            %3850 = vmatpush1.msra.mxu0 0.0
            %3851 = vmatprep.subr.mxu0 0.0
            %3852 = vmatpush1.msra.mxu0 0.0
            %3853 = vmatprep.subr.mxu0 0.0
            %3854 = vmatpush1.msra.mxu0 0.0
            %3855 = vmatprep.subr.mxu0 0.0
            %3856 = vmatpush1.msra.mxu0 0.0
            %3857 = vmatprep.subr.mxu0 0.0
            %3858 = vmatpush1.msra.mxu0 0.0
            %3859 = vmatprep.subr.mxu0 0.0
            %3860 = vmatpush1.msra.mxu0 0.0
            %3861 = vmatprep.subr.mxu0 0.0
            %3862 = vmatpush1.msra.mxu0 0.0
            %3863 = vmatprep.subr.mxu0 0.0
            %3864 = vmatpush1.msra.mxu0 0.0
            %3865 = vmatprep.subr.mxu0 0.0
            %3866 = vmatpush1.msra.mxu0 0.0
            %3867 = vmatprep.subr.mxu0 0.0
            %3868 = vmatpush1.msra.mxu0 0.0
            %3869 = vmatprep.mubr.f32.mxu0 0.0
            %3870 = vmatmul.mubr.f32.gmra.mrb[0].mxu0 %v1744
            %v3871 = vpop.f32.mrb[0].mxu0
            %v3872 = vadd.f32 0.0, %v3871
            %v3873 = vpop.f32.mrb[0].mxu0
            %v3874 = vadd.f32 0.0, %v3873
            %3875 = vdwg.mxu0
            %3876 = vmatprep.subr.mxu0 %v1547
            %3877 = vmatpush1.msra.mxu0 %v1546
            %3878 = vmatprep.subr.mxu0 %v1611
            %3879 = vmatpush1.msra.mxu0 %v1610
            %3880 = vmatprep.subr.mxu0 %v1675
            %3881 = vmatpush1.msra.mxu0 %v1674
            %3882 = vmatprep.subr.mxu0 %v1739
            %3883 = vmatpush1.msra.mxu0 %v1738
            %3884 = vmatprep.subr.mxu0 0.0
            %3885 = vmatpush1.msra.mxu0 0.0
            %3886 = vmatprep.subr.mxu0 0.0
            %3887 = vmatpush1.msra.mxu0 0.0
            %3888 = vmatprep.subr.mxu0 0.0
            %3889 = vmatpush1.msra.mxu0 0.0
            %3890 = vmatprep.subr.mxu0 0.0
            %3891 = vmatpush1.msra.mxu0 0.0
            %3892 = vmatprep.subr.mxu0 0.0
            %3893 = vmatpush1.msra.mxu0 0.0
            %3894 = vmatprep.subr.mxu0 0.0
            %3895 = vmatpush1.msra.mxu0 0.0
            %3896 = vmatprep.subr.mxu0 0.0
            %3897 = vmatpush1.msra.mxu0 0.0
            %3898 = vmatprep.subr.mxu0 0.0
            %3899 = vmatpush1.msra.mxu0 0.0
            %3900 = vmatprep.subr.mxu0 0.0
            %3901 = vmatpush1.msra.mxu0 0.0
            %3902 = vmatprep.subr.mxu0 0.0
            %3903 = vmatpush1.msra.mxu0 0.0
            %3904 = vmatprep.subr.mxu0 0.0
            %3905 = vmatpush1.msra.mxu0 0.0
            %3906 = vmatprep.subr.mxu0 0.0
            %3907 = vmatpush1.msra.mxu0 0.0
            %3908 = vmatprep.subr.mxu0 0.0
            %3909 = vmatpush1.msra.mxu0 0.0
            %3910 = vmatprep.subr.mxu0 0.0
            %3911 = vmatpush1.msra.mxu0 0.0
            %3912 = vmatprep.subr.mxu0 0.0
            %3913 = vmatpush1.msra.mxu0 0.0
            %3914 = vmatprep.subr.mxu0 0.0
            %3915 = vmatpush1.msra.mxu0 0.0
            %3916 = vmatprep.subr.mxu0 0.0
            %3917 = vmatpush1.msra.mxu0 0.0
            %3918 = vmatprep.subr.mxu0 0.0
            %3919 = vmatpush1.msra.mxu0 0.0
            %3920 = vmatprep.subr.mxu0 0.0
            %3921 = vmatpush1.msra.mxu0 0.0
            %3922 = vmatprep.subr.mxu0 0.0
            %3923 = vmatpush1.msra.mxu0 0.0
            %3924 = vmatprep.subr.mxu0 0.0
            %3925 = vmatpush1.msra.mxu0 0.0
            %3926 = vmatprep.subr.mxu0 0.0
            %3927 = vmatpush1.msra.mxu0 0.0
            %3928 = vmatprep.subr.mxu0 0.0
            %3929 = vmatpush1.msra.mxu0 0.0
            %3930 = vmatprep.subr.mxu0 0.0
            %3931 = vmatpush1.msra.mxu0 0.0
            %3932 = vmatprep.subr.mxu0 0.0
            %3933 = vmatpush1.msra.mxu0 0.0
            %3934 = vmatprep.subr.mxu0 0.0
            %3935 = vmatpush1.msra.mxu0 0.0
            %3936 = vmatprep.subr.mxu0 0.0
            %3937 = vmatpush1.msra.mxu0 0.0
            %3938 = vmatprep.subr.mxu0 0.0
            %3939 = vmatpush1.msra.mxu0 0.0
            %3940 = vmatprep.mubr.f32.mxu0 0.0
            %3941 = vmatmul.mubr.f32.gmra.mrb[0].mxu0 %v1744
            %v3942 = vpop.f32.mrb[0].mxu0
            %v3943 = vadd.f32 0.0, %v3942
            %v3944 = vpop.f32.mrb[0].mxu0
            %v3945 = vadd.f32 0.0, %v3944
            %3946 = vdwg.mxu0
            %3947 = vmatprep.subr.mxu0 %v1549
            %3948 = vmatpush1.msra.mxu0 %v1548
            %3949 = vmatprep.subr.mxu0 %v1613
            %3950 = vmatpush1.msra.mxu0 %v1612
            %3951 = vmatprep.subr.mxu0 %v1677
            %3952 = vmatpush1.msra.mxu0 %v1676
            %3953 = vmatprep.subr.mxu0 %v1741
            %3954 = vmatpush1.msra.mxu0 %v1740
            %3955 = vmatprep.subr.mxu0 0.0
            %3956 = vmatpush1.msra.mxu0 0.0
            %3957 = vmatprep.subr.mxu0 0.0
            %3958 = vmatpush1.msra.mxu0 0.0
            %3959 = vmatprep.subr.mxu0 0.0
            %3960 = vmatpush1.msra.mxu0 0.0
            %3961 = vmatprep.subr.mxu0 0.0
            %3962 = vmatpush1.msra.mxu0 0.0
            %3963 = vmatprep.subr.mxu0 0.0
            %3964 = vmatpush1.msra.mxu0 0.0
            %3965 = vmatprep.subr.mxu0 0.0
            %3966 = vmatpush1.msra.mxu0 0.0
            %3967 = vmatprep.subr.mxu0 0.0
            %3968 = vmatpush1.msra.mxu0 0.0
            %3969 = vmatprep.subr.mxu0 0.0
            %3970 = vmatpush1.msra.mxu0 0.0
            %3971 = vmatprep.subr.mxu0 0.0
            %3972 = vmatpush1.msra.mxu0 0.0
            %3973 = vmatprep.subr.mxu0 0.0
            %3974 = vmatpush1.msra.mxu0 0.0
            %3975 = vmatprep.subr.mxu0 0.0
            %3976 = vmatpush1.msra.mxu0 0.0
            %3977 = vmatprep.subr.mxu0 0.0
            %3978 = vmatpush1.msra.mxu0 0.0
            %3979 = vmatprep.subr.mxu0 0.0
            %3980 = vmatpush1.msra.mxu0 0.0
            %3981 = vmatprep.subr.mxu0 0.0
            %3982 = vmatpush1.msra.mxu0 0.0
            %3983 = vmatprep.subr.mxu0 0.0
            %3984 = vmatpush1.msra.mxu0 0.0
            %3985 = vmatprep.subr.mxu0 0.0
            %3986 = vmatpush1.msra.mxu0 0.0
            %3987 = vmatprep.subr.mxu0 0.0
            %3988 = vmatpush1.msra.mxu0 0.0
            %3989 = vmatprep.subr.mxu0 0.0
            %3990 = vmatpush1.msra.mxu0 0.0
            %3991 = vmatprep.subr.mxu0 0.0
            %3992 = vmatpush1.msra.mxu0 0.0
            %3993 = vmatprep.subr.mxu0 0.0
            %3994 = vmatpush1.msra.mxu0 0.0
            %3995 = vmatprep.subr.mxu0 0.0
            %3996 = vmatpush1.msra.mxu0 0.0
            %3997 = vmatprep.subr.mxu0 0.0
            %3998 = vmatpush1.msra.mxu0 0.0
            %3999 = vmatprep.subr.mxu0 0.0
            %4000 = vmatpush1.msra.mxu0 0.0
            %4001 = vmatprep.subr.mxu0 0.0
            %4002 = vmatpush1.msra.mxu0 0.0
            %4003 = vmatprep.subr.mxu0 0.0
            %4004 = vmatpush1.msra.mxu0 0.0
            %4005 = vmatprep.subr.mxu0 0.0
            %4006 = vmatpush1.msra.mxu0 0.0
            %4007 = vmatprep.subr.mxu0 0.0
            %4008 = vmatpush1.msra.mxu0 0.0
            %4009 = vmatprep.subr.mxu0 0.0
            %4010 = vmatpush1.msra.mxu0 0.0
            %4011 = vmatprep.mubr.f32.mxu0 0.0
            %4012 = vmatmul.mubr.f32.gmra.mrb[0].mxu0 %v1744
            %v4013 = vpop.f32.mrb[0].mxu0
            %v4014 = vadd.f32 0.0, %v4013
            %v4015 = vpop.f32.mrb[0].mxu0
            %v4016 = vadd.f32 0.0, %v4015
            %4017 = vdwg.mxu0
            %v4018 = vcombine.low %v1813, %v1955
            %v4019 = vcombine.high %v1813, %v1955
            %v4021 = vunpack.c.l.s4 1983009808
            %v4022 = vunpack.c.0.s8 %v4021
            %v4023 = vlaneseq
            %v4024 = vshrl.u32 %v4023, 7
            %v4025 = vsub.s32 %v4022, %v4024
            %v4026 = vrot.slane %v4018, %v4025
            %v4028 = vunpack.c.l.s4 1983009808
            %v4029 = vunpack.c.0.s8 %v4028
            %v4030 = vlaneseq
            %v4031 = vshrl.u32 %v4030, 7
            %v4032 = vsub.s32 %v4029, %v4031
            %v4033 = vrot.slane %v4019, %v4032
            %v4034 = vcombine.low %v1884, %v2026
            %v4035 = vcombine.high %v1884, %v2026
            %v4037 = vunpack.c.l.s4 1983009808
            %v4038 = vunpack.c.0.s8 %v4037
            %v4039 = vlaneseq
            %v4040 = vshrl.u32 %v4039, 7
            %v4041 = vsub.s32 %v4038, %v4040
            %v4042 = vrot.slane %v4034, %v4041
            %v4044 = vunpack.c.l.s4 1983009808
            %v4045 = vunpack.c.0.s8 %v4044
            %v4046 = vlaneseq
            %v4047 = vshrl.u32 %v4046, 7
            %v4048 = vsub.s32 %v4045, %v4047
            %v4049 = vrot.slane %v4035, %v4048
            %v4050 = vcombine.low %v2097, %v2239
            %v4051 = vcombine.high %v2097, %v2239
            %v4053 = vunpack.c.l.s4 1983009808
            %v4054 = vunpack.c.0.s8 %v4053
            %v4055 = vlaneseq
            %v4056 = vshrl.u32 %v4055, 7
            %v4057 = vsub.s32 %v4054, %v4056
            %v4058 = vrot.slane %v4050, %v4057
            %v4060 = vunpack.c.l.s4 1983009808
            %v4061 = vunpack.c.0.s8 %v4060
            %v4062 = vlaneseq
            %v4063 = vshrl.u32 %v4062, 7
            %v4064 = vsub.s32 %v4061, %v4063
            %v4065 = vrot.slane %v4051, %v4064
            %v4066 = vcombine.low %v2168, %v2310
            %v4067 = vcombine.high %v2168, %v2310
            %v4069 = vunpack.c.l.s4 1983009808
            %v4070 = vunpack.c.0.s8 %v4069
            %v4071 = vlaneseq
            %v4072 = vshrl.u32 %v4071, 7
            %v4073 = vsub.s32 %v4070, %v4072
            %v4074 = vrot.slane %v4066, %v4073
            %v4076 = vunpack.c.l.s4 1983009808
            %v4077 = vunpack.c.0.s8 %v4076
            %v4078 = vlaneseq
            %v4079 = vshrl.u32 %v4078, 7
            %v4080 = vsub.s32 %v4077, %v4079
            %v4081 = vrot.slane %v4067, %v4080
            %v4082 = vcombine.low %v4026, %v4042
            %v4083 = vcombine.high %v4026, %v4042
            %v4085 = vunpack.c.l.s4 1934713408
            %v4086 = vunpack.c.0.s8 %v4085
            %v4087 = vlaneseq
            %v4088 = vshrl.u32 %v4087, 7
            %v4089 = vsub.s32 %v4086, %v4088
            %v4090 = vrot.slane %v4082, %v4089
            %v4092 = vunpack.c.l.s4 1934713408
            %v4093 = vunpack.c.0.s8 %v4092
            %v4094 = vlaneseq
            %v4095 = vshrl.u32 %v4094, 7
            %v4096 = vsub.s32 %v4093, %v4095
            %v4097 = vrot.slane %v4083, %v4096
            %v4098 = vcombine.low %v4033, %v4049
            %v4099 = vcombine.high %v4033, %v4049
            %v4101 = vunpack.c.l.s4 1934713408
            %v4102 = vunpack.c.0.s8 %v4101
            %v4103 = vlaneseq
            %v4104 = vshrl.u32 %v4103, 7
            %v4105 = vsub.s32 %v4102, %v4104
            %v4106 = vrot.slane %v4098, %v4105
            %v4108 = vunpack.c.l.s4 1934713408
            %v4109 = vunpack.c.0.s8 %v4108
            %v4110 = vlaneseq
            %v4111 = vshrl.u32 %v4110, 7
            %v4112 = vsub.s32 %v4109, %v4111
            %v4113 = vrot.slane %v4099, %v4112
            %v4114 = vcombine.low %v4058, %v4074
            %v4115 = vcombine.high %v4058, %v4074
            %v4117 = vunpack.c.l.s4 1934713408
            %v4118 = vunpack.c.0.s8 %v4117
            %v4119 = vlaneseq
            %v4120 = vshrl.u32 %v4119, 7
            %v4121 = vsub.s32 %v4118, %v4120
            %v4122 = vrot.slane %v4114, %v4121
            %v4124 = vunpack.c.l.s4 1934713408
            %v4125 = vunpack.c.0.s8 %v4124
            %v4126 = vlaneseq
            %v4127 = vshrl.u32 %v4126, 7
            %v4128 = vsub.s32 %v4125, %v4127
            %v4129 = vrot.slane %v4115, %v4128
            %v4130 = vcombine.low %v4065, %v4081
            %v4131 = vcombine.high %v4065, %v4081
            %v4133 = vunpack.c.l.s4 1934713408
            %v4134 = vunpack.c.0.s8 %v4133
            %v4135 = vlaneseq
            %v4136 = vshrl.u32 %v4135, 7
            %v4137 = vsub.s32 %v4134, %v4136
            %v4138 = vrot.slane %v4130, %v4137
            %v4140 = vunpack.c.l.s4 1934713408
            %v4141 = vunpack.c.0.s8 %v4140
            %v4142 = vlaneseq
            %v4143 = vshrl.u32 %v4142, 7
            %v4144 = vsub.s32 %v4141, %v4143
            %v4145 = vrot.slane %v4131, %v4144
            %v4146 = vcombine.low %v4090, %v4122
            %v4147 = vcombine.high %v4090, %v4122
            %v4148 = vcombine.low %v4097, %v4129
            %v4149 = vcombine.high %v4097, %v4129
            %v4150 = vcombine.low %v4106, %v4138
            %v4151 = vcombine.high %v4106, %v4138
            %v4152 = vcombine.low %v4113, %v4145
            %v4153 = vcombine.high %v4113, %v4145
            %v4154 = vcombine.low %v2381, %v2523
            %v4155 = vcombine.high %v2381, %v2523
            %v4157 = vunpack.c.l.s4 1983009808
            %v4158 = vunpack.c.0.s8 %v4157
            %v4159 = vlaneseq
            %v4160 = vshrl.u32 %v4159, 7
            %v4161 = vsub.s32 %v4158, %v4160
            %v4162 = vrot.slane %v4154, %v4161
            %v4164 = vunpack.c.l.s4 1983009808
            %v4165 = vunpack.c.0.s8 %v4164
            %v4166 = vlaneseq
            %v4167 = vshrl.u32 %v4166, 7
            %v4168 = vsub.s32 %v4165, %v4167
            %v4169 = vrot.slane %v4155, %v4168
            %v4170 = vcombine.low %v2452, %v2594
            %v4171 = vcombine.high %v2452, %v2594
            %v4173 = vunpack.c.l.s4 1983009808
            %v4174 = vunpack.c.0.s8 %v4173
            %v4175 = vlaneseq
            %v4176 = vshrl.u32 %v4175, 7
            %v4177 = vsub.s32 %v4174, %v4176
            %v4178 = vrot.slane %v4170, %v4177
            %v4180 = vunpack.c.l.s4 1983009808
            %v4181 = vunpack.c.0.s8 %v4180
            %v4182 = vlaneseq
            %v4183 = vshrl.u32 %v4182, 7
            %v4184 = vsub.s32 %v4181, %v4183
            %v4185 = vrot.slane %v4171, %v4184
            %v4186 = vcombine.low %v2665, %v2807
            %v4187 = vcombine.high %v2665, %v2807
            %v4189 = vunpack.c.l.s4 1983009808
            %v4190 = vunpack.c.0.s8 %v4189
            %v4191 = vlaneseq
            %v4192 = vshrl.u32 %v4191, 7
            %v4193 = vsub.s32 %v4190, %v4192
            %v4194 = vrot.slane %v4186, %v4193
            %v4196 = vunpack.c.l.s4 1983009808
            %v4197 = vunpack.c.0.s8 %v4196
            %v4198 = vlaneseq
            %v4199 = vshrl.u32 %v4198, 7
            %v4200 = vsub.s32 %v4197, %v4199
            %v4201 = vrot.slane %v4187, %v4200
            %v4202 = vcombine.low %v2736, %v2878
            %v4203 = vcombine.high %v2736, %v2878
            %v4205 = vunpack.c.l.s4 1983009808
            %v4206 = vunpack.c.0.s8 %v4205
            %v4207 = vlaneseq
            %v4208 = vshrl.u32 %v4207, 7
            %v4209 = vsub.s32 %v4206, %v4208
            %v4210 = vrot.slane %v4202, %v4209
            %v4212 = vunpack.c.l.s4 1983009808
            %v4213 = vunpack.c.0.s8 %v4212
            %v4214 = vlaneseq
            %v4215 = vshrl.u32 %v4214, 7
            %v4216 = vsub.s32 %v4213, %v4215
            %v4217 = vrot.slane %v4203, %v4216
            %v4218 = vcombine.low %v4162, %v4178
            %v4219 = vcombine.high %v4162, %v4178
            %v4221 = vunpack.c.l.s4 1934713408
            %v4222 = vunpack.c.0.s8 %v4221
            %v4223 = vlaneseq
            %v4224 = vshrl.u32 %v4223, 7
            %v4225 = vsub.s32 %v4222, %v4224
            %v4226 = vrot.slane %v4218, %v4225
            %v4228 = vunpack.c.l.s4 1934713408
            %v4229 = vunpack.c.0.s8 %v4228
            %v4230 = vlaneseq
            %v4231 = vshrl.u32 %v4230, 7
            %v4232 = vsub.s32 %v4229, %v4231
            %v4233 = vrot.slane %v4219, %v4232
            %v4234 = vcombine.low %v4169, %v4185
            %v4235 = vcombine.high %v4169, %v4185
            %v4237 = vunpack.c.l.s4 1934713408
            %v4238 = vunpack.c.0.s8 %v4237
            %v4239 = vlaneseq
            %v4240 = vshrl.u32 %v4239, 7
            %v4241 = vsub.s32 %v4238, %v4240
            %v4242 = vrot.slane %v4234, %v4241
            %v4244 = vunpack.c.l.s4 1934713408
            %v4245 = vunpack.c.0.s8 %v4244
            %v4246 = vlaneseq
            %v4247 = vshrl.u32 %v4246, 7
            %v4248 = vsub.s32 %v4245, %v4247
            %v4249 = vrot.slane %v4235, %v4248
            %v4250 = vcombine.low %v4194, %v4210
            %v4251 = vcombine.high %v4194, %v4210
            %v4253 = vunpack.c.l.s4 1934713408
            %v4254 = vunpack.c.0.s8 %v4253
            %v4255 = vlaneseq
            %v4256 = vshrl.u32 %v4255, 7
            %v4257 = vsub.s32 %v4254, %v4256
            %v4258 = vrot.slane %v4250, %v4257
            %v4260 = vunpack.c.l.s4 1934713408
            %v4261 = vunpack.c.0.s8 %v4260
            %v4262 = vlaneseq
            %v4263 = vshrl.u32 %v4262, 7
            %v4264 = vsub.s32 %v4261, %v4263
            %v4265 = vrot.slane %v4251, %v4264
            %v4266 = vcombine.low %v4201, %v4217
            %v4267 = vcombine.high %v4201, %v4217
            %v4269 = vunpack.c.l.s4 1934713408
            %v4270 = vunpack.c.0.s8 %v4269
            %v4271 = vlaneseq
            %v4272 = vshrl.u32 %v4271, 7
            %v4273 = vsub.s32 %v4270, %v4272
            %v4274 = vrot.slane %v4266, %v4273
            %v4276 = vunpack.c.l.s4 1934713408
            %v4277 = vunpack.c.0.s8 %v4276
            %v4278 = vlaneseq
            %v4279 = vshrl.u32 %v4278, 7
            %v4280 = vsub.s32 %v4277, %v4279
            %v4281 = vrot.slane %v4267, %v4280
            %v4282 = vcombine.low %v4226, %v4258
            %v4283 = vcombine.high %v4226, %v4258
            %v4284 = vcombine.low %v4233, %v4265
            %v4285 = vcombine.high %v4233, %v4265
            %v4286 = vcombine.low %v4242, %v4274
            %v4287 = vcombine.high %v4242, %v4274
            %v4288 = vcombine.low %v4249, %v4281
            %v4289 = vcombine.high %v4249, %v4281
            %v4290 = vcombine.low %v2949, %v3091
            %v4291 = vcombine.high %v2949, %v3091
            %v4293 = vunpack.c.l.s4 1983009808
            %v4294 = vunpack.c.0.s8 %v4293
            %v4295 = vlaneseq
            %v4296 = vshrl.u32 %v4295, 7
            %v4297 = vsub.s32 %v4294, %v4296
            %v4298 = vrot.slane %v4290, %v4297
            %v4300 = vunpack.c.l.s4 1983009808
            %v4301 = vunpack.c.0.s8 %v4300
            %v4302 = vlaneseq
            %v4303 = vshrl.u32 %v4302, 7
            %v4304 = vsub.s32 %v4301, %v4303
            %v4305 = vrot.slane %v4291, %v4304
            %v4306 = vcombine.low %v3020, %v3162
            %v4307 = vcombine.high %v3020, %v3162
            %v4309 = vunpack.c.l.s4 1983009808
            %v4310 = vunpack.c.0.s8 %v4309
            %v4311 = vlaneseq
            %v4312 = vshrl.u32 %v4311, 7
            %v4313 = vsub.s32 %v4310, %v4312
            %v4314 = vrot.slane %v4306, %v4313
            %v4316 = vunpack.c.l.s4 1983009808
            %v4317 = vunpack.c.0.s8 %v4316
            %v4318 = vlaneseq
            %v4319 = vshrl.u32 %v4318, 7
            %v4320 = vsub.s32 %v4317, %v4319
            %v4321 = vrot.slane %v4307, %v4320
            %v4322 = vcombine.low %v3233, %v3375
            %v4323 = vcombine.high %v3233, %v3375
            %v4325 = vunpack.c.l.s4 1983009808
            %v4326 = vunpack.c.0.s8 %v4325
            %v4327 = vlaneseq
            %v4328 = vshrl.u32 %v4327, 7
            %v4329 = vsub.s32 %v4326, %v4328
            %v4330 = vrot.slane %v4322, %v4329
            %v4332 = vunpack.c.l.s4 1983009808
            %v4333 = vunpack.c.0.s8 %v4332
            %v4334 = vlaneseq
            %v4335 = vshrl.u32 %v4334, 7
            %v4336 = vsub.s32 %v4333, %v4335
            %v4337 = vrot.slane %v4323, %v4336
            %v4338 = vcombine.low %v3304, %v3446
            %v4339 = vcombine.high %v3304, %v3446
            %v4341 = vunpack.c.l.s4 1983009808
            %v4342 = vunpack.c.0.s8 %v4341
            %v4343 = vlaneseq
            %v4344 = vshrl.u32 %v4343, 7
            %v4345 = vsub.s32 %v4342, %v4344
            %v4346 = vrot.slane %v4338, %v4345
            %v4348 = vunpack.c.l.s4 1983009808
            %v4349 = vunpack.c.0.s8 %v4348
            %v4350 = vlaneseq
            %v4351 = vshrl.u32 %v4350, 7
            %v4352 = vsub.s32 %v4349, %v4351
            %v4353 = vrot.slane %v4339, %v4352
            %v4354 = vcombine.low %v4298, %v4314
            %v4355 = vcombine.high %v4298, %v4314
            %v4357 = vunpack.c.l.s4 1934713408
            %v4358 = vunpack.c.0.s8 %v4357
            %v4359 = vlaneseq
            %v4360 = vshrl.u32 %v4359, 7
            %v4361 = vsub.s32 %v4358, %v4360
            %v4362 = vrot.slane %v4354, %v4361
            %v4364 = vunpack.c.l.s4 1934713408
            %v4365 = vunpack.c.0.s8 %v4364
            %v4366 = vlaneseq
            %v4367 = vshrl.u32 %v4366, 7
            %v4368 = vsub.s32 %v4365, %v4367
            %v4369 = vrot.slane %v4355, %v4368
            %v4370 = vcombine.low %v4305, %v4321
            %v4371 = vcombine.high %v4305, %v4321
            %v4373 = vunpack.c.l.s4 1934713408
            %v4374 = vunpack.c.0.s8 %v4373
            %v4375 = vlaneseq
            %v4376 = vshrl.u32 %v4375, 7
            %v4377 = vsub.s32 %v4374, %v4376
            %v4378 = vrot.slane %v4370, %v4377
            %v4380 = vunpack.c.l.s4 1934713408
            %v4381 = vunpack.c.0.s8 %v4380
            %v4382 = vlaneseq
            %v4383 = vshrl.u32 %v4382, 7
            %v4384 = vsub.s32 %v4381, %v4383
            %v4385 = vrot.slane %v4371, %v4384
            %v4386 = vcombine.low %v4330, %v4346
            %v4387 = vcombine.high %v4330, %v4346
            %v4389 = vunpack.c.l.s4 1934713408
            %v4390 = vunpack.c.0.s8 %v4389
            %v4391 = vlaneseq
            %v4392 = vshrl.u32 %v4391, 7
            %v4393 = vsub.s32 %v4390, %v4392
            %v4394 = vrot.slane %v4386, %v4393
            %v4396 = vunpack.c.l.s4 1934713408
            %v4397 = vunpack.c.0.s8 %v4396
            %v4398 = vlaneseq
            %v4399 = vshrl.u32 %v4398, 7
            %v4400 = vsub.s32 %v4397, %v4399
            %v4401 = vrot.slane %v4387, %v4400
            %v4402 = vcombine.low %v4337, %v4353
            %v4403 = vcombine.high %v4337, %v4353
            %v4405 = vunpack.c.l.s4 1934713408
            %v4406 = vunpack.c.0.s8 %v4405
            %v4407 = vlaneseq
            %v4408 = vshrl.u32 %v4407, 7
            %v4409 = vsub.s32 %v4406, %v4408
            %v4410 = vrot.slane %v4402, %v4409
            %v4412 = vunpack.c.l.s4 1934713408
            %v4413 = vunpack.c.0.s8 %v4412
            %v4414 = vlaneseq
            %v4415 = vshrl.u32 %v4414, 7
            %v4416 = vsub.s32 %v4413, %v4415
            %v4417 = vrot.slane %v4403, %v4416
            %v4418 = vcombine.low %v4362, %v4394
            %v4419 = vcombine.high %v4362, %v4394
            %v4420 = vcombine.low %v4369, %v4401
            %v4421 = vcombine.high %v4369, %v4401
            %v4422 = vcombine.low %v4378, %v4410
            %v4423 = vcombine.high %v4378, %v4410
            %v4424 = vcombine.low %v4385, %v4417
            %v4425 = vcombine.high %v4385, %v4417
            %v4426 = vcombine.low %v3517, %v3659
            %v4427 = vcombine.high %v3517, %v3659
            %v4429 = vunpack.c.l.s4 1983009808
            %v4430 = vunpack.c.0.s8 %v4429
            %v4431 = vlaneseq
            %v4432 = vshrl.u32 %v4431, 7
            %v4433 = vsub.s32 %v4430, %v4432
            %v4434 = vrot.slane %v4426, %v4433
            %v4436 = vunpack.c.l.s4 1983009808
            %v4437 = vunpack.c.0.s8 %v4436
            %v4438 = vlaneseq
            %v4439 = vshrl.u32 %v4438, 7
            %v4440 = vsub.s32 %v4437, %v4439
            %v4441 = vrot.slane %v4427, %v4440
            %v4442 = vcombine.low %v3588, %v3730
            %v4443 = vcombine.high %v3588, %v3730
            %v4445 = vunpack.c.l.s4 1983009808
            %v4446 = vunpack.c.0.s8 %v4445
            %v4447 = vlaneseq
            %v4448 = vshrl.u32 %v4447, 7
            %v4449 = vsub.s32 %v4446, %v4448
            %v4450 = vrot.slane %v4442, %v4449
            %v4452 = vunpack.c.l.s4 1983009808
            %v4453 = vunpack.c.0.s8 %v4452
            %v4454 = vlaneseq
            %v4455 = vshrl.u32 %v4454, 7
            %v4456 = vsub.s32 %v4453, %v4455
            %v4457 = vrot.slane %v4443, %v4456
            %v4458 = vcombine.low %v3801, %v3943
            %v4459 = vcombine.high %v3801, %v3943
            %v4461 = vunpack.c.l.s4 1983009808
            %v4462 = vunpack.c.0.s8 %v4461
            %v4463 = vlaneseq
            %v4464 = vshrl.u32 %v4463, 7
            %v4465 = vsub.s32 %v4462, %v4464
            %v4466 = vrot.slane %v4458, %v4465
            %v4468 = vunpack.c.l.s4 1983009808
            %v4469 = vunpack.c.0.s8 %v4468
            %v4470 = vlaneseq
            %v4471 = vshrl.u32 %v4470, 7
            %v4472 = vsub.s32 %v4469, %v4471
            %v4473 = vrot.slane %v4459, %v4472
            %v4474 = vcombine.low %v3872, %v4014
            %v4475 = vcombine.high %v3872, %v4014
            %v4477 = vunpack.c.l.s4 1983009808
            %v4478 = vunpack.c.0.s8 %v4477
            %v4479 = vlaneseq
            %v4480 = vshrl.u32 %v4479, 7
            %v4481 = vsub.s32 %v4478, %v4480
            %v4482 = vrot.slane %v4474, %v4481
            %v4484 = vunpack.c.l.s4 1983009808
            %v4485 = vunpack.c.0.s8 %v4484
            %v4486 = vlaneseq
            %v4487 = vshrl.u32 %v4486, 7
            %v4488 = vsub.s32 %v4485, %v4487
            %v4489 = vrot.slane %v4475, %v4488
            %v4490 = vcombine.low %v4434, %v4450
            %v4491 = vcombine.high %v4434, %v4450
            %v4493 = vunpack.c.l.s4 1934713408
            %v4494 = vunpack.c.0.s8 %v4493
            %v4495 = vlaneseq
            %v4496 = vshrl.u32 %v4495, 7
            %v4497 = vsub.s32 %v4494, %v4496
            %v4498 = vrot.slane %v4490, %v4497
            %v4500 = vunpack.c.l.s4 1934713408
            %v4501 = vunpack.c.0.s8 %v4500
            %v4502 = vlaneseq
            %v4503 = vshrl.u32 %v4502, 7
            %v4504 = vsub.s32 %v4501, %v4503
            %v4505 = vrot.slane %v4491, %v4504
            %v4506 = vcombine.low %v4441, %v4457
            %v4507 = vcombine.high %v4441, %v4457
            %v4509 = vunpack.c.l.s4 1934713408
            %v4510 = vunpack.c.0.s8 %v4509
            %v4511 = vlaneseq
            %v4512 = vshrl.u32 %v4511, 7
            %v4513 = vsub.s32 %v4510, %v4512
            %v4514 = vrot.slane %v4506, %v4513
            %v4516 = vunpack.c.l.s4 1934713408
            %v4517 = vunpack.c.0.s8 %v4516
            %v4518 = vlaneseq
            %v4519 = vshrl.u32 %v4518, 7
            %v4520 = vsub.s32 %v4517, %v4519
            %v4521 = vrot.slane %v4507, %v4520
            %v4522 = vcombine.low %v4466, %v4482
            %v4523 = vcombine.high %v4466, %v4482
            %v4525 = vunpack.c.l.s4 1934713408
            %v4526 = vunpack.c.0.s8 %v4525
            %v4527 = vlaneseq
            %v4528 = vshrl.u32 %v4527, 7
            %v4529 = vsub.s32 %v4526, %v4528
            %v4530 = vrot.slane %v4522, %v4529
            %v4532 = vunpack.c.l.s4 1934713408
            %v4533 = vunpack.c.0.s8 %v4532
            %v4534 = vlaneseq
            %v4535 = vshrl.u32 %v4534, 7
            %v4536 = vsub.s32 %v4533, %v4535
            %v4537 = vrot.slane %v4523, %v4536
            %v4538 = vcombine.low %v4473, %v4489
            %v4539 = vcombine.high %v4473, %v4489
            %v4541 = vunpack.c.l.s4 1934713408
            %v4542 = vunpack.c.0.s8 %v4541
            %v4543 = vlaneseq
            %v4544 = vshrl.u32 %v4543, 7
            %v4545 = vsub.s32 %v4542, %v4544
            %v4546 = vrot.slane %v4538, %v4545
            %v4548 = vunpack.c.l.s4 1934713408
            %v4549 = vunpack.c.0.s8 %v4548
            %v4550 = vlaneseq
            %v4551 = vshrl.u32 %v4550, 7
            %v4552 = vsub.s32 %v4549, %v4551
            %v4553 = vrot.slane %v4539, %v4552
            %v4554 = vcombine.low %v4498, %v4530
            %v4555 = vcombine.high %v4498, %v4530
            %v4556 = vcombine.low %v4505, %v4537
            %v4557 = vcombine.high %v4505, %v4537
            %v4558 = vcombine.low %v4514, %v4546
            %v4559 = vcombine.high %v4514, %v4546
            %v4560 = vcombine.low %v4521, %v4553
            %v4561 = vcombine.high %v4521, %v4553
            %v4562 = vcombine.low %v1815, %v1957
            %v4563 = vcombine.high %v1815, %v1957
            %v4565 = vunpack.c.l.s4 1983009808
            %v4566 = vunpack.c.0.s8 %v4565
            %v4567 = vlaneseq
            %v4568 = vshrl.u32 %v4567, 7
            %v4569 = vsub.s32 %v4566, %v4568
            %v4570 = vrot.slane %v4562, %v4569
            %v4572 = vunpack.c.l.s4 1983009808
            %v4573 = vunpack.c.0.s8 %v4572
            %v4574 = vlaneseq
            %v4575 = vshrl.u32 %v4574, 7
            %v4576 = vsub.s32 %v4573, %v4575
            %v4577 = vrot.slane %v4563, %v4576
            %v4578 = vcombine.low %v1886, %v2028
            %v4579 = vcombine.high %v1886, %v2028
            %v4581 = vunpack.c.l.s4 1983009808
            %v4582 = vunpack.c.0.s8 %v4581
            %v4583 = vlaneseq
            %v4584 = vshrl.u32 %v4583, 7
            %v4585 = vsub.s32 %v4582, %v4584
            %v4586 = vrot.slane %v4578, %v4585
            %v4588 = vunpack.c.l.s4 1983009808
            %v4589 = vunpack.c.0.s8 %v4588
            %v4590 = vlaneseq
            %v4591 = vshrl.u32 %v4590, 7
            %v4592 = vsub.s32 %v4589, %v4591
            %v4593 = vrot.slane %v4579, %v4592
            %v4594 = vcombine.low %v2099, %v2241
            %v4595 = vcombine.high %v2099, %v2241
            %v4597 = vunpack.c.l.s4 1983009808
            %v4598 = vunpack.c.0.s8 %v4597
            %v4599 = vlaneseq
            %v4600 = vshrl.u32 %v4599, 7
            %v4601 = vsub.s32 %v4598, %v4600
            %v4602 = vrot.slane %v4594, %v4601
            %v4604 = vunpack.c.l.s4 1983009808
            %v4605 = vunpack.c.0.s8 %v4604
            %v4606 = vlaneseq
            %v4607 = vshrl.u32 %v4606, 7
            %v4608 = vsub.s32 %v4605, %v4607
            %v4609 = vrot.slane %v4595, %v4608
            %v4610 = vcombine.low %v2170, %v2312
            %v4611 = vcombine.high %v2170, %v2312
            %v4613 = vunpack.c.l.s4 1983009808
            %v4614 = vunpack.c.0.s8 %v4613
            %v4615 = vlaneseq
            %v4616 = vshrl.u32 %v4615, 7
            %v4617 = vsub.s32 %v4614, %v4616
            %v4618 = vrot.slane %v4610, %v4617
            %v4620 = vunpack.c.l.s4 1983009808
            %v4621 = vunpack.c.0.s8 %v4620
            %v4622 = vlaneseq
            %v4623 = vshrl.u32 %v4622, 7
            %v4624 = vsub.s32 %v4621, %v4623
            %v4625 = vrot.slane %v4611, %v4624
            %v4626 = vcombine.low %v4570, %v4586
            %v4627 = vcombine.high %v4570, %v4586
            %v4629 = vunpack.c.l.s4 1934713408
            %v4630 = vunpack.c.0.s8 %v4629
            %v4631 = vlaneseq
            %v4632 = vshrl.u32 %v4631, 7
            %v4633 = vsub.s32 %v4630, %v4632
            %v4634 = vrot.slane %v4626, %v4633
            %v4636 = vunpack.c.l.s4 1934713408
            %v4637 = vunpack.c.0.s8 %v4636
            %v4638 = vlaneseq
            %v4639 = vshrl.u32 %v4638, 7
            %v4640 = vsub.s32 %v4637, %v4639
            %v4641 = vrot.slane %v4627, %v4640
            %v4642 = vcombine.low %v4577, %v4593
            %v4643 = vcombine.high %v4577, %v4593
            %v4645 = vunpack.c.l.s4 1934713408
            %v4646 = vunpack.c.0.s8 %v4645
            %v4647 = vlaneseq
            %v4648 = vshrl.u32 %v4647, 7
            %v4649 = vsub.s32 %v4646, %v4648
            %v4650 = vrot.slane %v4642, %v4649
            %v4652 = vunpack.c.l.s4 1934713408
            %v4653 = vunpack.c.0.s8 %v4652
            %v4654 = vlaneseq
            %v4655 = vshrl.u32 %v4654, 7
            %v4656 = vsub.s32 %v4653, %v4655
            %v4657 = vrot.slane %v4643, %v4656
            %v4658 = vcombine.low %v4602, %v4618
            %v4659 = vcombine.high %v4602, %v4618
            %v4661 = vunpack.c.l.s4 1934713408
            %v4662 = vunpack.c.0.s8 %v4661
            %v4663 = vlaneseq
            %v4664 = vshrl.u32 %v4663, 7
            %v4665 = vsub.s32 %v4662, %v4664
            %v4666 = vrot.slane %v4658, %v4665
            %v4668 = vunpack.c.l.s4 1934713408
            %v4669 = vunpack.c.0.s8 %v4668
            %v4670 = vlaneseq
            %v4671 = vshrl.u32 %v4670, 7
            %v4672 = vsub.s32 %v4669, %v4671
            %v4673 = vrot.slane %v4659, %v4672
            %v4674 = vcombine.low %v4609, %v4625
            %v4675 = vcombine.high %v4609, %v4625
            %v4677 = vunpack.c.l.s4 1934713408
            %v4678 = vunpack.c.0.s8 %v4677
            %v4679 = vlaneseq
            %v4680 = vshrl.u32 %v4679, 7
            %v4681 = vsub.s32 %v4678, %v4680
            %v4682 = vrot.slane %v4674, %v4681
            %v4684 = vunpack.c.l.s4 1934713408
            %v4685 = vunpack.c.0.s8 %v4684
            %v4686 = vlaneseq
            %v4687 = vshrl.u32 %v4686, 7
            %v4688 = vsub.s32 %v4685, %v4687
            %v4689 = vrot.slane %v4675, %v4688
            %v4690 = vcombine.low %v4634, %v4666
            %v4691 = vcombine.high %v4634, %v4666
            %v4692 = vcombine.low %v4641, %v4673
            %v4693 = vcombine.high %v4641, %v4673
            %v4694 = vcombine.low %v4650, %v4682
            %v4695 = vcombine.high %v4650, %v4682
            %v4696 = vcombine.low %v4657, %v4689
            %v4697 = vcombine.high %v4657, %v4689
            %v4698 = vcombine.low %v2383, %v2525
            %v4699 = vcombine.high %v2383, %v2525
            %v4701 = vunpack.c.l.s4 1983009808
            %v4702 = vunpack.c.0.s8 %v4701
            %v4703 = vlaneseq
            %v4704 = vshrl.u32 %v4703, 7
            %v4705 = vsub.s32 %v4702, %v4704
            %v4706 = vrot.slane %v4698, %v4705
            %v4708 = vunpack.c.l.s4 1983009808
            %v4709 = vunpack.c.0.s8 %v4708
            %v4710 = vlaneseq
            %v4711 = vshrl.u32 %v4710, 7
            %v4712 = vsub.s32 %v4709, %v4711
            %v4713 = vrot.slane %v4699, %v4712
            %v4714 = vcombine.low %v2454, %v2596
            %v4715 = vcombine.high %v2454, %v2596
            %v4717 = vunpack.c.l.s4 1983009808
            %v4718 = vunpack.c.0.s8 %v4717
            %v4719 = vlaneseq
            %v4720 = vshrl.u32 %v4719, 7
            %v4721 = vsub.s32 %v4718, %v4720
            %v4722 = vrot.slane %v4714, %v4721
            %v4724 = vunpack.c.l.s4 1983009808
            %v4725 = vunpack.c.0.s8 %v4724
            %v4726 = vlaneseq
            %v4727 = vshrl.u32 %v4726, 7
            %v4728 = vsub.s32 %v4725, %v4727
            %v4729 = vrot.slane %v4715, %v4728
            %v4730 = vcombine.low %v2667, %v2809
            %v4731 = vcombine.high %v2667, %v2809
            %v4733 = vunpack.c.l.s4 1983009808
            %v4734 = vunpack.c.0.s8 %v4733
            %v4735 = vlaneseq
            %v4736 = vshrl.u32 %v4735, 7
            %v4737 = vsub.s32 %v4734, %v4736
            %v4738 = vrot.slane %v4730, %v4737
            %v4740 = vunpack.c.l.s4 1983009808
            %v4741 = vunpack.c.0.s8 %v4740
            %v4742 = vlaneseq
            %v4743 = vshrl.u32 %v4742, 7
            %v4744 = vsub.s32 %v4741, %v4743
            %v4745 = vrot.slane %v4731, %v4744
            %v4746 = vcombine.low %v2738, %v2880
            %v4747 = vcombine.high %v2738, %v2880
            %v4749 = vunpack.c.l.s4 1983009808
            %v4750 = vunpack.c.0.s8 %v4749
            %v4751 = vlaneseq
            %v4752 = vshrl.u32 %v4751, 7
            %v4753 = vsub.s32 %v4750, %v4752
            %v4754 = vrot.slane %v4746, %v4753
            %v4756 = vunpack.c.l.s4 1983009808
            %v4757 = vunpack.c.0.s8 %v4756
            %v4758 = vlaneseq
            %v4759 = vshrl.u32 %v4758, 7
            %v4760 = vsub.s32 %v4757, %v4759
            %v4761 = vrot.slane %v4747, %v4760
            %v4762 = vcombine.low %v4706, %v4722
            %v4763 = vcombine.high %v4706, %v4722
            %v4765 = vunpack.c.l.s4 1934713408
            %v4766 = vunpack.c.0.s8 %v4765
            %v4767 = vlaneseq
            %v4768 = vshrl.u32 %v4767, 7
            %v4769 = vsub.s32 %v4766, %v4768
            %v4770 = vrot.slane %v4762, %v4769
            %v4772 = vunpack.c.l.s4 1934713408
            %v4773 = vunpack.c.0.s8 %v4772
            %v4774 = vlaneseq
            %v4775 = vshrl.u32 %v4774, 7
            %v4776 = vsub.s32 %v4773, %v4775
            %v4777 = vrot.slane %v4763, %v4776
            %v4778 = vcombine.low %v4713, %v4729
            %v4779 = vcombine.high %v4713, %v4729
            %v4781 = vunpack.c.l.s4 1934713408
            %v4782 = vunpack.c.0.s8 %v4781
            %v4783 = vlaneseq
            %v4784 = vshrl.u32 %v4783, 7
            %v4785 = vsub.s32 %v4782, %v4784
            %v4786 = vrot.slane %v4778, %v4785
            %v4788 = vunpack.c.l.s4 1934713408
            %v4789 = vunpack.c.0.s8 %v4788
            %v4790 = vlaneseq
            %v4791 = vshrl.u32 %v4790, 7
            %v4792 = vsub.s32 %v4789, %v4791
            %v4793 = vrot.slane %v4779, %v4792
            %v4794 = vcombine.low %v4738, %v4754
            %v4795 = vcombine.high %v4738, %v4754
            %v4797 = vunpack.c.l.s4 1934713408
            %v4798 = vunpack.c.0.s8 %v4797
            %v4799 = vlaneseq
            %v4800 = vshrl.u32 %v4799, 7
            %v4801 = vsub.s32 %v4798, %v4800
            %v4802 = vrot.slane %v4794, %v4801
            %v4804 = vunpack.c.l.s4 1934713408
            %v4805 = vunpack.c.0.s8 %v4804
            %v4806 = vlaneseq
            %v4807 = vshrl.u32 %v4806, 7
            %v4808 = vsub.s32 %v4805, %v4807
            %v4809 = vrot.slane %v4795, %v4808
            %v4810 = vcombine.low %v4745, %v4761
            %v4811 = vcombine.high %v4745, %v4761
            %v4813 = vunpack.c.l.s4 1934713408
            %v4814 = vunpack.c.0.s8 %v4813
            %v4815 = vlaneseq
            %v4816 = vshrl.u32 %v4815, 7
            %v4817 = vsub.s32 %v4814, %v4816
            %v4818 = vrot.slane %v4810, %v4817
            %v4820 = vunpack.c.l.s4 1934713408
            %v4821 = vunpack.c.0.s8 %v4820
            %v4822 = vlaneseq
            %v4823 = vshrl.u32 %v4822, 7
            %v4824 = vsub.s32 %v4821, %v4823
            %v4825 = vrot.slane %v4811, %v4824
            %v4826 = vcombine.low %v4770, %v4802
            %v4827 = vcombine.high %v4770, %v4802
            %v4828 = vcombine.low %v4777, %v4809
            %v4829 = vcombine.high %v4777, %v4809
            %v4830 = vcombine.low %v4786, %v4818
            %v4831 = vcombine.high %v4786, %v4818
            %v4832 = vcombine.low %v4793, %v4825
            %v4833 = vcombine.high %v4793, %v4825
            %v4834 = vcombine.low %v2951, %v3093
            %v4835 = vcombine.high %v2951, %v3093
            %v4837 = vunpack.c.l.s4 1983009808
            %v4838 = vunpack.c.0.s8 %v4837
            %v4839 = vlaneseq
            %v4840 = vshrl.u32 %v4839, 7
            %v4841 = vsub.s32 %v4838, %v4840
            %v4842 = vrot.slane %v4834, %v4841
            %v4844 = vunpack.c.l.s4 1983009808
            %v4845 = vunpack.c.0.s8 %v4844
            %v4846 = vlaneseq
            %v4847 = vshrl.u32 %v4846, 7
            %v4848 = vsub.s32 %v4845, %v4847
            %v4849 = vrot.slane %v4835, %v4848
            %v4850 = vcombine.low %v3022, %v3164
            %v4851 = vcombine.high %v3022, %v3164
            %v4853 = vunpack.c.l.s4 1983009808
            %v4854 = vunpack.c.0.s8 %v4853
            %v4855 = vlaneseq
            %v4856 = vshrl.u32 %v4855, 7
            %v4857 = vsub.s32 %v4854, %v4856
            %v4858 = vrot.slane %v4850, %v4857
            %v4860 = vunpack.c.l.s4 1983009808
            %v4861 = vunpack.c.0.s8 %v4860
            %v4862 = vlaneseq
            %v4863 = vshrl.u32 %v4862, 7
            %v4864 = vsub.s32 %v4861, %v4863
            %v4865 = vrot.slane %v4851, %v4864
            %v4866 = vcombine.low %v3235, %v3377
            %v4867 = vcombine.high %v3235, %v3377
            %v4869 = vunpack.c.l.s4 1983009808
            %v4870 = vunpack.c.0.s8 %v4869
            %v4871 = vlaneseq
            %v4872 = vshrl.u32 %v4871, 7
            %v4873 = vsub.s32 %v4870, %v4872
            %v4874 = vrot.slane %v4866, %v4873
            %v4876 = vunpack.c.l.s4 1983009808
            %v4877 = vunpack.c.0.s8 %v4876
            %v4878 = vlaneseq
            %v4879 = vshrl.u32 %v4878, 7
            %v4880 = vsub.s32 %v4877, %v4879
            %v4881 = vrot.slane %v4867, %v4880
            %v4882 = vcombine.low %v3306, %v3448
            %v4883 = vcombine.high %v3306, %v3448
            %v4885 = vunpack.c.l.s4 1983009808
            %v4886 = vunpack.c.0.s8 %v4885
            %v4887 = vlaneseq
            %v4888 = vshrl.u32 %v4887, 7
            %v4889 = vsub.s32 %v4886, %v4888
            %v4890 = vrot.slane %v4882, %v4889
            %v4892 = vunpack.c.l.s4 1983009808
            %v4893 = vunpack.c.0.s8 %v4892
            %v4894 = vlaneseq
            %v4895 = vshrl.u32 %v4894, 7
            %v4896 = vsub.s32 %v4893, %v4895
            %v4897 = vrot.slane %v4883, %v4896
            %v4898 = vcombine.low %v4842, %v4858
            %v4899 = vcombine.high %v4842, %v4858
            %v4901 = vunpack.c.l.s4 1934713408
            %v4902 = vunpack.c.0.s8 %v4901
            %v4903 = vlaneseq
            %v4904 = vshrl.u32 %v4903, 7
            %v4905 = vsub.s32 %v4902, %v4904
            %v4906 = vrot.slane %v4898, %v4905
            %v4908 = vunpack.c.l.s4 1934713408
            %v4909 = vunpack.c.0.s8 %v4908
            %v4910 = vlaneseq
            %v4911 = vshrl.u32 %v4910, 7
            %v4912 = vsub.s32 %v4909, %v4911
            %v4913 = vrot.slane %v4899, %v4912
            %v4914 = vcombine.low %v4849, %v4865
            %v4915 = vcombine.high %v4849, %v4865
            %v4917 = vunpack.c.l.s4 1934713408
            %v4918 = vunpack.c.0.s8 %v4917
            %v4919 = vlaneseq
            %v4920 = vshrl.u32 %v4919, 7
            %v4921 = vsub.s32 %v4918, %v4920
            %v4922 = vrot.slane %v4914, %v4921
            %v4924 = vunpack.c.l.s4 1934713408
            %v4925 = vunpack.c.0.s8 %v4924
            %v4926 = vlaneseq
            %v4927 = vshrl.u32 %v4926, 7
            %v4928 = vsub.s32 %v4925, %v4927
            %v4929 = vrot.slane %v4915, %v4928
            %v4930 = vcombine.low %v4874, %v4890
            %v4931 = vcombine.high %v4874, %v4890
            %v4933 = vunpack.c.l.s4 1934713408
            %v4934 = vunpack.c.0.s8 %v4933
            %v4935 = vlaneseq
            %v4936 = vshrl.u32 %v4935, 7
            %v4937 = vsub.s32 %v4934, %v4936
            %v4938 = vrot.slane %v4930, %v4937
            %v4940 = vunpack.c.l.s4 1934713408
            %v4941 = vunpack.c.0.s8 %v4940
            %v4942 = vlaneseq
            %v4943 = vshrl.u32 %v4942, 7
            %v4944 = vsub.s32 %v4941, %v4943
            %v4945 = vrot.slane %v4931, %v4944
            %v4946 = vcombine.low %v4881, %v4897
            %v4947 = vcombine.high %v4881, %v4897
            %v4949 = vunpack.c.l.s4 1934713408
            %v4950 = vunpack.c.0.s8 %v4949
            %v4951 = vlaneseq
            %v4952 = vshrl.u32 %v4951, 7
            %v4953 = vsub.s32 %v4950, %v4952
            %v4954 = vrot.slane %v4946, %v4953
            %v4956 = vunpack.c.l.s4 1934713408
            %v4957 = vunpack.c.0.s8 %v4956
            %v4958 = vlaneseq
            %v4959 = vshrl.u32 %v4958, 7
            %v4960 = vsub.s32 %v4957, %v4959
            %v4961 = vrot.slane %v4947, %v4960
            %v4962 = vcombine.low %v4906, %v4938
            %v4963 = vcombine.high %v4906, %v4938
            %v4964 = vcombine.low %v4913, %v4945
            %v4965 = vcombine.high %v4913, %v4945
            %v4966 = vcombine.low %v4922, %v4954
            %v4967 = vcombine.high %v4922, %v4954
            %v4968 = vcombine.low %v4929, %v4961
            %v4969 = vcombine.high %v4929, %v4961
            %v4970 = vcombine.low %v3519, %v3661
            %v4971 = vcombine.high %v3519, %v3661
            %v4973 = vunpack.c.l.s4 1983009808
            %v4974 = vunpack.c.0.s8 %v4973
            %v4975 = vlaneseq
            %v4976 = vshrl.u32 %v4975, 7
            %v4977 = vsub.s32 %v4974, %v4976
            %v4978 = vrot.slane %v4970, %v4977
            %v4980 = vunpack.c.l.s4 1983009808
            %v4981 = vunpack.c.0.s8 %v4980
            %v4982 = vlaneseq
            %v4983 = vshrl.u32 %v4982, 7
            %v4984 = vsub.s32 %v4981, %v4983
            %v4985 = vrot.slane %v4971, %v4984
            %v4986 = vcombine.low %v3590, %v3732
            %v4987 = vcombine.high %v3590, %v3732
            %v4989 = vunpack.c.l.s4 1983009808
            %v4990 = vunpack.c.0.s8 %v4989
            %v4991 = vlaneseq
            %v4992 = vshrl.u32 %v4991, 7
            %v4993 = vsub.s32 %v4990, %v4992
            %v4994 = vrot.slane %v4986, %v4993
            %v4996 = vunpack.c.l.s4 1983009808
            %v4997 = vunpack.c.0.s8 %v4996
            %v4998 = vlaneseq
            %v4999 = vshrl.u32 %v4998, 7
            %v5000 = vsub.s32 %v4997, %v4999
            %v5001 = vrot.slane %v4987, %v5000
            %v5002 = vcombine.low %v3803, %v3945
            %v5003 = vcombine.high %v3803, %v3945
            %v5005 = vunpack.c.l.s4 1983009808
            %v5006 = vunpack.c.0.s8 %v5005
            %v5007 = vlaneseq
            %v5008 = vshrl.u32 %v5007, 7
            %v5009 = vsub.s32 %v5006, %v5008
            %v5010 = vrot.slane %v5002, %v5009
            %v5012 = vunpack.c.l.s4 1983009808
            %v5013 = vunpack.c.0.s8 %v5012
            %v5014 = vlaneseq
            %v5015 = vshrl.u32 %v5014, 7
            %v5016 = vsub.s32 %v5013, %v5015
            %v5017 = vrot.slane %v5003, %v5016
            %v5018 = vcombine.low %v3874, %v4016
            %v5019 = vcombine.high %v3874, %v4016
            %v5021 = vunpack.c.l.s4 1983009808
            %v5022 = vunpack.c.0.s8 %v5021
            %v5023 = vlaneseq
            %v5024 = vshrl.u32 %v5023, 7
            %v5025 = vsub.s32 %v5022, %v5024
            %v5026 = vrot.slane %v5018, %v5025
            %v5028 = vunpack.c.l.s4 1983009808
            %v5029 = vunpack.c.0.s8 %v5028
            %v5030 = vlaneseq
            %v5031 = vshrl.u32 %v5030, 7
            %v5032 = vsub.s32 %v5029, %v5031
            %v5033 = vrot.slane %v5019, %v5032
            %v5034 = vcombine.low %v4978, %v4994
            %v5035 = vcombine.high %v4978, %v4994
            %v5037 = vunpack.c.l.s4 1934713408
            %v5038 = vunpack.c.0.s8 %v5037
            %v5039 = vlaneseq
            %v5040 = vshrl.u32 %v5039, 7
            %v5041 = vsub.s32 %v5038, %v5040
            %v5042 = vrot.slane %v5034, %v5041
            %v5044 = vunpack.c.l.s4 1934713408
            %v5045 = vunpack.c.0.s8 %v5044
            %v5046 = vlaneseq
            %v5047 = vshrl.u32 %v5046, 7
            %v5048 = vsub.s32 %v5045, %v5047
            %v5049 = vrot.slane %v5035, %v5048
            %v5050 = vcombine.low %v4985, %v5001
            %v5051 = vcombine.high %v4985, %v5001
            %v5053 = vunpack.c.l.s4 1934713408
            %v5054 = vunpack.c.0.s8 %v5053
            %v5055 = vlaneseq
            %v5056 = vshrl.u32 %v5055, 7
            %v5057 = vsub.s32 %v5054, %v5056
            %v5058 = vrot.slane %v5050, %v5057
            %v5060 = vunpack.c.l.s4 1934713408
            %v5061 = vunpack.c.0.s8 %v5060
            %v5062 = vlaneseq
            %v5063 = vshrl.u32 %v5062, 7
            %v5064 = vsub.s32 %v5061, %v5063
            %v5065 = vrot.slane %v5051, %v5064
            %v5066 = vcombine.low %v5010, %v5026
            %v5067 = vcombine.high %v5010, %v5026
            %v5069 = vunpack.c.l.s4 1934713408
            %v5070 = vunpack.c.0.s8 %v5069
            %v5071 = vlaneseq
            %v5072 = vshrl.u32 %v5071, 7
            %v5073 = vsub.s32 %v5070, %v5072
            %v5074 = vrot.slane %v5066, %v5073
            %v5076 = vunpack.c.l.s4 1934713408
            %v5077 = vunpack.c.0.s8 %v5076
            %v5078 = vlaneseq
            %v5079 = vshrl.u32 %v5078, 7
            %v5080 = vsub.s32 %v5077, %v5079
            %v5081 = vrot.slane %v5067, %v5080
            %v5082 = vcombine.low %v5017, %v5033
            %v5083 = vcombine.high %v5017, %v5033
            %v5085 = vunpack.c.l.s4 1934713408
            %v5086 = vunpack.c.0.s8 %v5085
            %v5087 = vlaneseq
            %v5088 = vshrl.u32 %v5087, 7
            %v5089 = vsub.s32 %v5086, %v5088
            %v5090 = vrot.slane %v5082, %v5089
            %v5092 = vunpack.c.l.s4 1934713408
            %v5093 = vunpack.c.0.s8 %v5092
            %v5094 = vlaneseq
            %v5095 = vshrl.u32 %v5094, 7
            %v5096 = vsub.s32 %v5093, %v5095
            %v5097 = vrot.slane %v5083, %v5096
            %v5098 = vcombine.low %v5042, %v5074
            %v5099 = vcombine.high %v5042, %v5074
            %v5100 = vcombine.low %v5049, %v5081
            %v5101 = vcombine.high %v5049, %v5081
            %v5102 = vcombine.low %v5058, %v5090
            %v5103 = vcombine.high %v5058, %v5090
            %v5104 = vcombine.low %v5065, %v5097
            %v5105 = vcombine.high %v5065, %v5097
            %s5106 = sshra.s32 %s236, 3
            %s5107 = sand.u32 %s236, 7
            %s5108 = smul.u32 %s5106, 2
            %s5109 = smul.addr %s5108, 8
            %s5110 = scalar_lea.vmem [#allocation2], %s5109
            %5111 = vst [vmem:[%s5110] sm:$0xff] %v4146
            %5112 = vst [vmem:[%s5110 + $0x8] sm:$0xff] %v4690
            %5113 = vst [vmem:[%s5110 + $0x10] sm:$0xff] %v4282
            %5114 = vst [vmem:[%s5110 + $0x18] sm:$0xff] %v4826
            %5115 = vst [vmem:[%s5110 + $0x20] sm:$0xff] %v4418
            %5116 = vst [vmem:[%s5110 + $0x28] sm:$0xff] %v4962
            %5117 = vst [vmem:[%s5110 + $0x30] sm:$0xff] %v4554
            %5118 = vst [vmem:[%s5110 + $0x38] sm:$0xff] %v5098
            %5119 = vst [vmem:[%s5110 + $0x100] sm:$0xff] %v4147
            %5120 = vst [vmem:[%s5110 + $0x108] sm:$0xff] %v4691
            %5121 = vst [vmem:[%s5110 + $0x110] sm:$0xff] %v4283
            %5122 = vst [vmem:[%s5110 + $0x118] sm:$0xff] %v4827
            %5123 = vst [vmem:[%s5110 + $0x120] sm:$0xff] %v4419
            %5124 = vst [vmem:[%s5110 + $0x128] sm:$0xff] %v4963
            %5125 = vst [vmem:[%s5110 + $0x130] sm:$0xff] %v4555
            %5126 = vst [vmem:[%s5110 + $0x138] sm:$0xff] %v5099
            %5127 = vst [vmem:[%s5110 + $0x200] sm:$0xff] %v4148
            %5128 = vst [vmem:[%s5110 + $0x208] sm:$0xff] %v4692
            %5129 = vst [vmem:[%s5110 + $0x210] sm:$0xff] %v4284
            %5130 = vst [vmem:[%s5110 + $0x218] sm:$0xff] %v4828
            %5131 = vst [vmem:[%s5110 + $0x220] sm:$0xff] %v4420
            %5132 = vst [vmem:[%s5110 + $0x228] sm:$0xff] %v4964
            %5133 = vst [vmem:[%s5110 + $0x230] sm:$0xff] %v4556
            %5134 = vst [vmem:[%s5110 + $0x238] sm:$0xff] %v5100
            %5135 = vst [vmem:[%s5110 + $0x300] sm:$0xff] %v4149
            %5136 = vst [vmem:[%s5110 + $0x308] sm:$0xff] %v4693
            %5137 = vst [vmem:[%s5110 + $0x310] sm:$0xff] %v4285
            %5138 = vst [vmem:[%s5110 + $0x318] sm:$0xff] %v4829
            %5139 = vst [vmem:[%s5110 + $0x320] sm:$0xff] %v4421
            %5140 = vst [vmem:[%s5110 + $0x328] sm:$0xff] %v4965
            %5141 = vst [vmem:[%s5110 + $0x330] sm:$0xff] %v4557
            %5142 = vst [vmem:[%s5110 + $0x338] sm:$0xff] %v5101
            %5143 = vst [vmem:[%s5110 + $0x400] sm:$0xff] %v4150
            %5144 = vst [vmem:[%s5110 + $0x408] sm:$0xff] %v4694
            %5145 = vst [vmem:[%s5110 + $0x410] sm:$0xff] %v4286
            %5146 = vst [vmem:[%s5110 + $0x418] sm:$0xff] %v4830
            %5147 = vst [vmem:[%s5110 + $0x420] sm:$0xff] %v4422
            %5148 = vst [vmem:[%s5110 + $0x428] sm:$0xff] %v4966
            %5149 = vst [vmem:[%s5110 + $0x430] sm:$0xff] %v4558
            %5150 = vst [vmem:[%s5110 + $0x438] sm:$0xff] %v5102
            %5151 = vst [vmem:[%s5110 + $0x500] sm:$0xff] %v4151
            %5152 = vst [vmem:[%s5110 + $0x508] sm:$0xff] %v4695
            %5153 = vst [vmem:[%s5110 + $0x510] sm:$0xff] %v4287
            %5154 = vst [vmem:[%s5110 + $0x518] sm:$0xff] %v4831
            %5155 = vst [vmem:[%s5110 + $0x520] sm:$0xff] %v4423
            %5156 = vst [vmem:[%s5110 + $0x528] sm:$0xff] %v4967
            %5157 = vst [vmem:[%s5110 + $0x530] sm:$0xff] %v4559
            %5158 = vst [vmem:[%s5110 + $0x538] sm:$0xff] %v5103
            %5159 = vst [vmem:[%s5110 + $0x600] sm:$0xff] %v4152
            %5160 = vst [vmem:[%s5110 + $0x608] sm:$0xff] %v4696
            %5161 = vst [vmem:[%s5110 + $0x610] sm:$0xff] %v4288
            %5162 = vst [vmem:[%s5110 + $0x618] sm:$0xff] %v4832
            %5163 = vst [vmem:[%s5110 + $0x620] sm:$0xff] %v4424
            %5164 = vst [vmem:[%s5110 + $0x628] sm:$0xff] %v4968
            %5165 = vst [vmem:[%s5110 + $0x630] sm:$0xff] %v4560
            %5166 = vst [vmem:[%s5110 + $0x638] sm:$0xff] %v5104
            %5167 = vst [vmem:[%s5110 + $0x700] sm:$0xff] %v4153
            %5168 = vst [vmem:[%s5110 + $0x708] sm:$0xff] %v4697
            %5169 = vst [vmem:[%s5110 + $0x710] sm:$0xff] %v4289
            %5170 = vst [vmem:[%s5110 + $0x718] sm:$0xff] %v4833
            %5171 = vst [vmem:[%s5110 + $0x720] sm:$0xff] %v4425
            %5172 = vst [vmem:[%s5110 + $0x728] sm:$0xff] %v4969
            %5173 = vst [vmem:[%s5110 + $0x730] sm:$0xff] %v4561
            %5174 = vst [vmem:[%s5110 + $0x738] sm:$0xff] %v5105
          $region41: #{tpu_custom_call.1} parent=35 // loop_footer
            %s235 = sadd.s32 1, %s231
          $region42: #{tpu_custom_call.1} parent=35 // loop_footer_branch
            %230 = sbr.rel target = $region38
          $region43: #{tpu_custom_call.1} parent=35 // loop_exit
            _
        $region36: #{tpu_custom_call.1} parent=27 // pred_fallthru
          _
        %v5175 = vld [vmem:[%s198] sm:$0xff]
        %v5176 = vld [vmem:[%s198 + $0x8] sm:$0xff]
        %v5177 = vld [vmem:[%s198 + $0x10] sm:$0xff]
        %v5178 = vld [vmem:[%s198 + $0x18] sm:$0xff]
        %v5179 = vld [vmem:[%s198 + $0x20] sm:$0xff]
        %v5180 = vld [vmem:[%s198 + $0x28] sm:$0xff]
        %v5181 = vld [vmem:[%s198 + $0x30] sm:$0xff]
        %v5182 = vld [vmem:[%s198 + $0x38] sm:$0xff]
        %v5183 = vld [vmem:[%s198 + $0x40] sm:$0xff]
        %v5184 = vld [vmem:[%s198 + $0x48] sm:$0xff]
        %v5185 = vld [vmem:[%s198 + $0x50] sm:$0xff]
        %v5186 = vld [vmem:[%s198 + $0x58] sm:$0xff]
        %v5187 = vld [vmem:[%s198 + $0x60] sm:$0xff]
        %v5188 = vld [vmem:[%s198 + $0x68] sm:$0xff]
        %v5189 = vld [vmem:[%s198 + $0x70] sm:$0xff]
        %v5190 = vld [vmem:[%s198 + $0x78] sm:$0xff]
        %v5191 = vld [vmem:[%s198 + $0x80] sm:$0xff]
        %v5192 = vld [vmem:[%s198 + $0x88] sm:$0xff]
        %v5193 = vld [vmem:[%s198 + $0x90] sm:$0xff]
        %v5194 = vld [vmem:[%s198 + $0x98] sm:$0xff]
        %v5195 = vld [vmem:[%s198 + $0xa0] sm:$0xff]
        %v5196 = vld [vmem:[%s198 + $0xa8] sm:$0xff]
        %v5197 = vld [vmem:[%s198 + $0xb0] sm:$0xff]
        %v5198 = vld [vmem:[%s198 + $0xb8] sm:$0xff]
        %v5199 = vld [vmem:[%s198 + $0xc0] sm:$0xff]
        %v5200 = vld [vmem:[%s198 + $0xc8] sm:$0xff]
        %v5201 = vld [vmem:[%s198 + $0xd0] sm:$0xff]
        %v5202 = vld [vmem:[%s198 + $0xd8] sm:$0xff]
        %v5203 = vld [vmem:[%s198 + $0xe0] sm:$0xff]
        %v5204 = vld [vmem:[%s198 + $0xe8] sm:$0xff]
        %v5205 = vld [vmem:[%s198 + $0xf0] sm:$0xff]
        %v5206 = vld [vmem:[%s198 + $0xf8] sm:$0xff]
        %v5207 = vld [vmem:[%s198 + $0x100] sm:$0xff]
        %v5208 = vld [vmem:[%s198 + $0x108] sm:$0xff]
        %v5209 = vld [vmem:[%s198 + $0x110] sm:$0xff]
        %v5210 = vld [vmem:[%s198 + $0x118] sm:$0xff]
        %v5211 = vld [vmem:[%s198 + $0x120] sm:$0xff]
        %v5212 = vld [vmem:[%s198 + $0x128] sm:$0xff]
        %v5213 = vld [vmem:[%s198 + $0x130] sm:$0xff]
        %v5214 = vld [vmem:[%s198 + $0x138] sm:$0xff]
        %v5215 = vld [vmem:[%s198 + $0x140] sm:$0xff]
        %v5216 = vld [vmem:[%s198 + $0x148] sm:$0xff]
        %v5217 = vld [vmem:[%s198 + $0x150] sm:$0xff]
        %v5218 = vld [vmem:[%s198 + $0x158] sm:$0xff]
        %v5219 = vld [vmem:[%s198 + $0x160] sm:$0xff]
        %v5220 = vld [vmem:[%s198 + $0x168] sm:$0xff]
        %v5221 = vld [vmem:[%s198 + $0x170] sm:$0xff]
        %v5222 = vld [vmem:[%s198 + $0x178] sm:$0xff]
        %v5223 = vld [vmem:[%s198 + $0x180] sm:$0xff]
        %v5224 = vld [vmem:[%s198 + $0x188] sm:$0xff]
        %v5225 = vld [vmem:[%s198 + $0x190] sm:$0xff]
        %v5226 = vld [vmem:[%s198 + $0x198] sm:$0xff]
        %v5227 = vld [vmem:[%s198 + $0x1a0] sm:$0xff]
        %v5228 = vld [vmem:[%s198 + $0x1a8] sm:$0xff]
        %v5229 = vld [vmem:[%s198 + $0x1b0] sm:$0xff]
        %v5230 = vld [vmem:[%s198 + $0x1b8] sm:$0xff]
        %v5231 = vld [vmem:[%s198 + $0x1c0] sm:$0xff]
        %v5232 = vld [vmem:[%s198 + $0x1c8] sm:$0xff]
        %v5233 = vld [vmem:[%s198 + $0x1d0] sm:$0xff]
        %v5234 = vld [vmem:[%s198 + $0x1d8] sm:$0xff]
        %v5235 = vld [vmem:[%s198 + $0x1e0] sm:$0xff]
        %v5236 = vld [vmem:[%s198 + $0x1e8] sm:$0xff]
        %v5237 = vld [vmem:[%s198 + $0x1f0] sm:$0xff]
        %v5238 = vld [vmem:[%s198 + $0x1f8] sm:$0xff]
        %v5239 = vld [vmem:[%s198 + $0x200] sm:$0xff]
        %v5240 = vld [vmem:[%s198 + $0x208] sm:$0xff]
        %v5241 = vld [vmem:[%s198 + $0x210] sm:$0xff]
        %v5242 = vld [vmem:[%s198 + $0x218] sm:$0xff]
        %v5243 = vld [vmem:[%s198 + $0x220] sm:$0xff]
        %v5244 = vld [vmem:[%s198 + $0x228] sm:$0xff]
        %v5245 = vld [vmem:[%s198 + $0x230] sm:$0xff]
        %v5246 = vld [vmem:[%s198 + $0x238] sm:$0xff]
        %v5247 = vld [vmem:[%s198 + $0x240] sm:$0xff]
        %v5248 = vld [vmem:[%s198 + $0x248] sm:$0xff]
        %v5249 = vld [vmem:[%s198 + $0x250] sm:$0xff]
        %v5250 = vld [vmem:[%s198 + $0x258] sm:$0xff]
        %v5251 = vld [vmem:[%s198 + $0x260] sm:$0xff]
        %v5252 = vld [vmem:[%s198 + $0x268] sm:$0xff]
        %v5253 = vld [vmem:[%s198 + $0x270] sm:$0xff]
        %v5254 = vld [vmem:[%s198 + $0x278] sm:$0xff]
        %v5255 = vld [vmem:[%s198 + $0x280] sm:$0xff]
        %v5256 = vld [vmem:[%s198 + $0x288] sm:$0xff]
        %v5257 = vld [vmem:[%s198 + $0x290] sm:$0xff]
        %v5258 = vld [vmem:[%s198 + $0x298] sm:$0xff]
        %v5259 = vld [vmem:[%s198 + $0x2a0] sm:$0xff]
        %v5260 = vld [vmem:[%s198 + $0x2a8] sm:$0xff]
        %v5261 = vld [vmem:[%s198 + $0x2b0] sm:$0xff]
        %v5262 = vld [vmem:[%s198 + $0x2b8] sm:$0xff]
        %v5263 = vld [vmem:[%s198 + $0x2c0] sm:$0xff]
        %v5264 = vld [vmem:[%s198 + $0x2c8] sm:$0xff]
        %v5265 = vld [vmem:[%s198 + $0x2d0] sm:$0xff]
        %v5266 = vld [vmem:[%s198 + $0x2d8] sm:$0xff]
        %v5267 = vld [vmem:[%s198 + $0x2e0] sm:$0xff]
        %v5268 = vld [vmem:[%s198 + $0x2e8] sm:$0xff]
        %v5269 = vld [vmem:[%s198 + $0x2f0] sm:$0xff]
        %v5270 = vld [vmem:[%s198 + $0x2f8] sm:$0xff]
        %v5271 = vld [vmem:[%s198 + $0x300] sm:$0xff]
        %v5272 = vld [vmem:[%s198 + $0x308] sm:$0xff]
        %v5273 = vld [vmem:[%s198 + $0x310] sm:$0xff]
        %v5274 = vld [vmem:[%s198 + $0x318] sm:$0xff]
        %v5275 = vld [vmem:[%s198 + $0x320] sm:$0xff]
        %v5276 = vld [vmem:[%s198 + $0x328] sm:$0xff]
        %v5277 = vld [vmem:[%s198 + $0x330] sm:$0xff]
        %v5278 = vld [vmem:[%s198 + $0x338] sm:$0xff]
        %v5279 = vld [vmem:[%s198 + $0x340] sm:$0xff]
        %v5280 = vld [vmem:[%s198 + $0x348] sm:$0xff]
        %v5281 = vld [vmem:[%s198 + $0x350] sm:$0xff]
        %v5282 = vld [vmem:[%s198 + $0x358] sm:$0xff]
        %v5283 = vld [vmem:[%s198 + $0x360] sm:$0xff]
        %v5284 = vld [vmem:[%s198 + $0x368] sm:$0xff]
        %v5285 = vld [vmem:[%s198 + $0x370] sm:$0xff]
        %v5286 = vld [vmem:[%s198 + $0x378] sm:$0xff]
        %v5287 = vld [vmem:[%s198 + $0x380] sm:$0xff]
        %v5288 = vld [vmem:[%s198 + $0x388] sm:$0xff]
        %v5289 = vld [vmem:[%s198 + $0x390] sm:$0xff]
        %v5290 = vld [vmem:[%s198 + $0x398] sm:$0xff]
        %v5291 = vld [vmem:[%s198 + $0x3a0] sm:$0xff]
        %v5292 = vld [vmem:[%s198 + $0x3a8] sm:$0xff]
        %v5293 = vld [vmem:[%s198 + $0x3b0] sm:$0xff]
        %v5294 = vld [vmem:[%s198 + $0x3b8] sm:$0xff]
        %v5295 = vld [vmem:[%s198 + $0x3c0] sm:$0xff]
        %v5296 = vld [vmem:[%s198 + $0x3c8] sm:$0xff]
        %v5297 = vld [vmem:[%s198 + $0x3d0] sm:$0xff]
        %v5298 = vld [vmem:[%s198 + $0x3d8] sm:$0xff]
        %v5299 = vld [vmem:[%s198 + $0x3e0] sm:$0xff]
        %v5300 = vld [vmem:[%s198 + $0x3e8] sm:$0xff]
        %v5301 = vld [vmem:[%s198 + $0x3f0] sm:$0xff]
        %v5302 = vld [vmem:[%s198 + $0x3f8] sm:$0xff]
        %v5303 = vld [vmem:[%s198 + $0x400] sm:$0xff]
        %v5304 = vld [vmem:[%s198 + $0x408] sm:$0xff]
        %v5305 = vld [vmem:[%s198 + $0x410] sm:$0xff]
        %v5306 = vld [vmem:[%s198 + $0x418] sm:$0xff]
        %v5307 = vld [vmem:[%s198 + $0x420] sm:$0xff]
        %v5308 = vld [vmem:[%s198 + $0x428] sm:$0xff]
        %v5309 = vld [vmem:[%s198 + $0x430] sm:$0xff]
        %v5310 = vld [vmem:[%s198 + $0x438] sm:$0xff]
        %v5311 = vld [vmem:[%s198 + $0x440] sm:$0xff]
        %v5312 = vld [vmem:[%s198 + $0x448] sm:$0xff]
        %v5313 = vld [vmem:[%s198 + $0x450] sm:$0xff]
        %v5314 = vld [vmem:[%s198 + $0x458] sm:$0xff]
        %v5315 = vld [vmem:[%s198 + $0x460] sm:$0xff]
        %v5316 = vld [vmem:[%s198 + $0x468] sm:$0xff]
        %v5317 = vld [vmem:[%s198 + $0x470] sm:$0xff]
        %v5318 = vld [vmem:[%s198 + $0x478] sm:$0xff]
        %v5319 = vld [vmem:[%s198 + $0x480] sm:$0xff]
        %v5320 = vld [vmem:[%s198 + $0x488] sm:$0xff]
        %v5321 = vld [vmem:[%s198 + $0x490] sm:$0xff]
        %v5322 = vld [vmem:[%s198 + $0x498] sm:$0xff]
        %v5323 = vld [vmem:[%s198 + $0x4a0] sm:$0xff]
        %v5324 = vld [vmem:[%s198 + $0x4a8] sm:$0xff]
        %v5325 = vld [vmem:[%s198 + $0x4b0] sm:$0xff]
        %v5326 = vld [vmem:[%s198 + $0x4b8] sm:$0xff]
        %v5327 = vld [vmem:[%s198 + $0x4c0] sm:$0xff]
        %v5328 = vld [vmem:[%s198 + $0x4c8] sm:$0xff]
        %v5329 = vld [vmem:[%s198 + $0x4d0] sm:$0xff]
        %v5330 = vld [vmem:[%s198 + $0x4d8] sm:$0xff]
        %v5331 = vld [vmem:[%s198 + $0x4e0] sm:$0xff]
        %v5332 = vld [vmem:[%s198 + $0x4e8] sm:$0xff]
        %v5333 = vld [vmem:[%s198 + $0x4f0] sm:$0xff]
        %v5334 = vld [vmem:[%s198 + $0x4f8] sm:$0xff]
        %v5335 = vld [vmem:[%s198 + $0x500] sm:$0xff]
        %v5336 = vld [vmem:[%s198 + $0x508] sm:$0xff]
        %v5337 = vld [vmem:[%s198 + $0x510] sm:$0xff]
        %v5338 = vld [vmem:[%s198 + $0x518] sm:$0xff]
        %v5339 = vld [vmem:[%s198 + $0x520] sm:$0xff]
        %v5340 = vld [vmem:[%s198 + $0x528] sm:$0xff]
        %v5341 = vld [vmem:[%s198 + $0x530] sm:$0xff]
        %v5342 = vld [vmem:[%s198 + $0x538] sm:$0xff]
        %v5343 = vld [vmem:[%s198 + $0x540] sm:$0xff]
        %v5344 = vld [vmem:[%s198 + $0x548] sm:$0xff]
        %v5345 = vld [vmem:[%s198 + $0x550] sm:$0xff]
        %v5346 = vld [vmem:[%s198 + $0x558] sm:$0xff]
        %v5347 = vld [vmem:[%s198 + $0x560] sm:$0xff]
        %v5348 = vld [vmem:[%s198 + $0x568] sm:$0xff]
        %v5349 = vld [vmem:[%s198 + $0x570] sm:$0xff]
        %v5350 = vld [vmem:[%s198 + $0x578] sm:$0xff]
        %v5351 = vld [vmem:[%s198 + $0x580] sm:$0xff]
        %v5352 = vld [vmem:[%s198 + $0x588] sm:$0xff]
        %v5353 = vld [vmem:[%s198 + $0x590] sm:$0xff]
        %v5354 = vld [vmem:[%s198 + $0x598] sm:$0xff]
        %v5355 = vld [vmem:[%s198 + $0x5a0] sm:$0xff]
        %v5356 = vld [vmem:[%s198 + $0x5a8] sm:$0xff]
        %v5357 = vld [vmem:[%s198 + $0x5b0] sm:$0xff]
        %v5358 = vld [vmem:[%s198 + $0x5b8] sm:$0xff]
        %v5359 = vld [vmem:[%s198 + $0x5c0] sm:$0xff]
        %v5360 = vld [vmem:[%s198 + $0x5c8] sm:$0xff]
        %v5361 = vld [vmem:[%s198 + $0x5d0] sm:$0xff]
        %v5362 = vld [vmem:[%s198 + $0x5d8] sm:$0xff]
        %v5363 = vld [vmem:[%s198 + $0x5e0] sm:$0xff]
        %v5364 = vld [vmem:[%s198 + $0x5e8] sm:$0xff]
        %v5365 = vld [vmem:[%s198 + $0x5f0] sm:$0xff]
        %v5366 = vld [vmem:[%s198 + $0x5f8] sm:$0xff]
        %v5367 = vld [vmem:[%s198 + $0x600] sm:$0xff]
        %v5368 = vld [vmem:[%s198 + $0x608] sm:$0xff]
        %v5369 = vld [vmem:[%s198 + $0x610] sm:$0xff]
        %v5370 = vld [vmem:[%s198 + $0x618] sm:$0xff]
        %v5371 = vld [vmem:[%s198 + $0x620] sm:$0xff]
        %v5372 = vld [vmem:[%s198 + $0x628] sm:$0xff]
        %v5373 = vld [vmem:[%s198 + $0x630] sm:$0xff]
        %v5374 = vld [vmem:[%s198 + $0x638] sm:$0xff]
        %v5375 = vld [vmem:[%s198 + $0x640] sm:$0xff]
        %v5376 = vld [vmem:[%s198 + $0x648] sm:$0xff]
        %v5377 = vld [vmem:[%s198 + $0x650] sm:$0xff]
        %v5378 = vld [vmem:[%s198 + $0x658] sm:$0xff]
        %v5379 = vld [vmem:[%s198 + $0x660] sm:$0xff]
        %v5380 = vld [vmem:[%s198 + $0x668] sm:$0xff]
        %v5381 = vld [vmem:[%s198 + $0x670] sm:$0xff]
        %v5382 = vld [vmem:[%s198 + $0x678] sm:$0xff]
        %v5383 = vld [vmem:[%s198 + $0x680] sm:$0xff]
        %v5384 = vld [vmem:[%s198 + $0x688] sm:$0xff]
        %v5385 = vld [vmem:[%s198 + $0x690] sm:$0xff]
        %v5386 = vld [vmem:[%s198 + $0x698] sm:$0xff]
        %v5387 = vld [vmem:[%s198 + $0x6a0] sm:$0xff]
        %v5388 = vld [vmem:[%s198 + $0x6a8] sm:$0xff]
        %v5389 = vld [vmem:[%s198 + $0x6b0] sm:$0xff]
        %v5390 = vld [vmem:[%s198 + $0x6b8] sm:$0xff]
        %v5391 = vld [vmem:[%s198 + $0x6c0] sm:$0xff]
        %v5392 = vld [vmem:[%s198 + $0x6c8] sm:$0xff]
        %v5393 = vld [vmem:[%s198 + $0x6d0] sm:$0xff]
        %v5394 = vld [vmem:[%s198 + $0x6d8] sm:$0xff]
        %v5395 = vld [vmem:[%s198 + $0x6e0] sm:$0xff]
        %v5396 = vld [vmem:[%s198 + $0x6e8] sm:$0xff]
        %v5397 = vld [vmem:[%s198 + $0x6f0] sm:$0xff]
        %v5398 = vld [vmem:[%s198 + $0x6f8] sm:$0xff]
        %v5399 = vld [vmem:[%s198 + $0x700] sm:$0xff]
        %v5400 = vld [vmem:[%s198 + $0x708] sm:$0xff]
        %v5401 = vld [vmem:[%s198 + $0x710] sm:$0xff]
        %v5402 = vld [vmem:[%s198 + $0x718] sm:$0xff]
        %v5403 = vld [vmem:[%s198 + $0x720] sm:$0xff]
        %v5404 = vld [vmem:[%s198 + $0x728] sm:$0xff]
        %v5405 = vld [vmem:[%s198 + $0x730] sm:$0xff]
        %v5406 = vld [vmem:[%s198 + $0x738] sm:$0xff]
        %v5407 = vld [vmem:[%s198 + $0x740] sm:$0xff]
        %v5408 = vld [vmem:[%s198 + $0x748] sm:$0xff]
        %v5409 = vld [vmem:[%s198 + $0x750] sm:$0xff]
        %v5410 = vld [vmem:[%s198 + $0x758] sm:$0xff]
        %v5411 = vld [vmem:[%s198 + $0x760] sm:$0xff]
        %v5412 = vld [vmem:[%s198 + $0x768] sm:$0xff]
        %v5413 = vld [vmem:[%s198 + $0x770] sm:$0xff]
        %v5414 = vld [vmem:[%s198 + $0x778] sm:$0xff]
        %v5415 = vld [vmem:[%s198 + $0x780] sm:$0xff]
        %v5416 = vld [vmem:[%s198 + $0x788] sm:$0xff]
        %v5417 = vld [vmem:[%s198 + $0x790] sm:$0xff]
        %v5418 = vld [vmem:[%s198 + $0x798] sm:$0xff]
        %v5419 = vld [vmem:[%s198 + $0x7a0] sm:$0xff]
        %v5420 = vld [vmem:[%s198 + $0x7a8] sm:$0xff]
        %v5421 = vld [vmem:[%s198 + $0x7b0] sm:$0xff]
        %v5422 = vld [vmem:[%s198 + $0x7b8] sm:$0xff]
        %v5423 = vld [vmem:[%s198 + $0x7c0] sm:$0xff]
        %v5424 = vld [vmem:[%s198 + $0x7c8] sm:$0xff]
        %v5425 = vld [vmem:[%s198 + $0x7d0] sm:$0xff]
        %v5426 = vld [vmem:[%s198 + $0x7d8] sm:$0xff]
        %v5427 = vld [vmem:[%s198 + $0x7e0] sm:$0xff]
        %v5428 = vld [vmem:[%s198 + $0x7e8] sm:$0xff]
        %v5429 = vld [vmem:[%s198 + $0x7f0] sm:$0xff]
        %v5430 = vld [vmem:[%s198 + $0x7f8] sm:$0xff]
        %v5431 = vld [vmem:[#allocation2] sm:$0xff]
        %v5432 = vld [vmem:[#allocation2 + $0x8] sm:$0xff]
        %v5433 = vld [vmem:[#allocation2 + $0x10] sm:$0xff]
        %v5434 = vld [vmem:[#allocation2 + $0x18] sm:$0xff]
        %v5435 = vld [vmem:[#allocation2 + $0x20] sm:$0xff]
        %v5436 = vld [vmem:[#allocation2 + $0x28] sm:$0xff]
        %v5437 = vld [vmem:[#allocation2 + $0x30] sm:$0xff]
        %v5438 = vld [vmem:[#allocation2 + $0x38] sm:$0xff]
        %v5439 = vld [vmem:[#allocation2 + $0x40] sm:$0xff]
        %v5440 = vld [vmem:[#allocation2 + $0x48] sm:$0xff]
        %v5441 = vld [vmem:[#allocation2 + $0x50] sm:$0xff]
        %v5442 = vld [vmem:[#allocation2 + $0x58] sm:$0xff]
        %v5443 = vld [vmem:[#allocation2 + $0x60] sm:$0xff]
        %v5444 = vld [vmem:[#allocation2 + $0x68] sm:$0xff]
        %v5445 = vld [vmem:[#allocation2 + $0x70] sm:$0xff]
        %v5446 = vld [vmem:[#allocation2 + $0x78] sm:$0xff]
        %v5447 = vld [vmem:[#allocation2 + $0x80] sm:$0xff]
        %v5448 = vld [vmem:[#allocation2 + $0x88] sm:$0xff]
        %v5449 = vld [vmem:[#allocation2 + $0x90] sm:$0xff]
        %v5450 = vld [vmem:[#allocation2 + $0x98] sm:$0xff]
        %v5451 = vld [vmem:[#allocation2 + $0xa0] sm:$0xff]
        %v5452 = vld [vmem:[#allocation2 + $0xa8] sm:$0xff]
        %v5453 = vld [vmem:[#allocation2 + $0xb0] sm:$0xff]
        %v5454 = vld [vmem:[#allocation2 + $0xb8] sm:$0xff]
        %v5455 = vld [vmem:[#allocation2 + $0xc0] sm:$0xff]
        %v5456 = vld [vmem:[#allocation2 + $0xc8] sm:$0xff]
        %v5457 = vld [vmem:[#allocation2 + $0xd0] sm:$0xff]
        %v5458 = vld [vmem:[#allocation2 + $0xd8] sm:$0xff]
        %v5459 = vld [vmem:[#allocation2 + $0xe0] sm:$0xff]
        %v5460 = vld [vmem:[#allocation2 + $0xe8] sm:$0xff]
        %v5461 = vld [vmem:[#allocation2 + $0xf0] sm:$0xff]
        %v5462 = vld [vmem:[#allocation2 + $0xf8] sm:$0xff]
        %v5463 = vld [vmem:[#allocation2 + $0x100] sm:$0xff]
        %v5464 = vld [vmem:[#allocation2 + $0x108] sm:$0xff]
        %v5465 = vld [vmem:[#allocation2 + $0x110] sm:$0xff]
        %v5466 = vld [vmem:[#allocation2 + $0x118] sm:$0xff]
        %v5467 = vld [vmem:[#allocation2 + $0x120] sm:$0xff]
        %v5468 = vld [vmem:[#allocation2 + $0x128] sm:$0xff]
        %v5469 = vld [vmem:[#allocation2 + $0x130] sm:$0xff]
        %v5470 = vld [vmem:[#allocation2 + $0x138] sm:$0xff]
        %v5471 = vld [vmem:[#allocation2 + $0x140] sm:$0xff]
        %v5472 = vld [vmem:[#allocation2 + $0x148] sm:$0xff]
        %v5473 = vld [vmem:[#allocation2 + $0x150] sm:$0xff]
        %v5474 = vld [vmem:[#allocation2 + $0x158] sm:$0xff]
        %v5475 = vld [vmem:[#allocation2 + $0x160] sm:$0xff]
        %v5476 = vld [vmem:[#allocation2 + $0x168] sm:$0xff]
        %v5477 = vld [vmem:[#allocation2 + $0x170] sm:$0xff]
        %v5478 = vld [vmem:[#allocation2 + $0x178] sm:$0xff]
        %v5479 = vld [vmem:[#allocation2 + $0x180] sm:$0xff]
        %v5480 = vld [vmem:[#allocation2 + $0x188] sm:$0xff]
        %v5481 = vld [vmem:[#allocation2 + $0x190] sm:$0xff]
        %v5482 = vld [vmem:[#allocation2 + $0x198] sm:$0xff]
        %v5483 = vld [vmem:[#allocation2 + $0x1a0] sm:$0xff]
        %v5484 = vld [vmem:[#allocation2 + $0x1a8] sm:$0xff]
        %v5485 = vld [vmem:[#allocation2 + $0x1b0] sm:$0xff]
        %v5486 = vld [vmem:[#allocation2 + $0x1b8] sm:$0xff]
        %v5487 = vld [vmem:[#allocation2 + $0x1c0] sm:$0xff]
        %v5488 = vld [vmem:[#allocation2 + $0x1c8] sm:$0xff]
        %v5489 = vld [vmem:[#allocation2 + $0x1d0] sm:$0xff]
        %v5490 = vld [vmem:[#allocation2 + $0x1d8] sm:$0xff]
        %v5491 = vld [vmem:[#allocation2 + $0x1e0] sm:$0xff]
        %v5492 = vld [vmem:[#allocation2 + $0x1e8] sm:$0xff]
        %v5493 = vld [vmem:[#allocation2 + $0x1f0] sm:$0xff]
        %v5494 = vld [vmem:[#allocation2 + $0x1f8] sm:$0xff]
        %v5495 = vld [vmem:[#allocation2 + $0x200] sm:$0xff]
        %v5496 = vld [vmem:[#allocation2 + $0x208] sm:$0xff]
        %v5497 = vld [vmem:[#allocation2 + $0x210] sm:$0xff]
        %v5498 = vld [vmem:[#allocation2 + $0x218] sm:$0xff]
        %v5499 = vld [vmem:[#allocation2 + $0x220] sm:$0xff]
        %v5500 = vld [vmem:[#allocation2 + $0x228] sm:$0xff]
        %v5501 = vld [vmem:[#allocation2 + $0x230] sm:$0xff]
        %v5502 = vld [vmem:[#allocation2 + $0x238] sm:$0xff]
        %v5503 = vld [vmem:[#allocation2 + $0x240] sm:$0xff]
        %v5504 = vld [vmem:[#allocation2 + $0x248] sm:$0xff]
        %v5505 = vld [vmem:[#allocation2 + $0x250] sm:$0xff]
        %v5506 = vld [vmem:[#allocation2 + $0x258] sm:$0xff]
        %v5507 = vld [vmem:[#allocation2 + $0x260] sm:$0xff]
        %v5508 = vld [vmem:[#allocation2 + $0x268] sm:$0xff]
        %v5509 = vld [vmem:[#allocation2 + $0x270] sm:$0xff]
        %v5510 = vld [vmem:[#allocation2 + $0x278] sm:$0xff]
        %v5511 = vld [vmem:[#allocation2 + $0x280] sm:$0xff]
        %v5512 = vld [vmem:[#allocation2 + $0x288] sm:$0xff]
        %v5513 = vld [vmem:[#allocation2 + $0x290] sm:$0xff]
        %v5514 = vld [vmem:[#allocation2 + $0x298] sm:$0xff]
        %v5515 = vld [vmem:[#allocation2 + $0x2a0] sm:$0xff]
        %v5516 = vld [vmem:[#allocation2 + $0x2a8] sm:$0xff]
        %v5517 = vld [vmem:[#allocation2 + $0x2b0] sm:$0xff]
        %v5518 = vld [vmem:[#allocation2 + $0x2b8] sm:$0xff]
        %v5519 = vld [vmem:[#allocation2 + $0x2c0] sm:$0xff]
        %v5520 = vld [vmem:[#allocation2 + $0x2c8] sm:$0xff]
        %v5521 = vld [vmem:[#allocation2 + $0x2d0] sm:$0xff]
        %v5522 = vld [vmem:[#allocation2 + $0x2d8] sm:$0xff]
        %v5523 = vld [vmem:[#allocation2 + $0x2e0] sm:$0xff]
        %v5524 = vld [vmem:[#allocation2 + $0x2e8] sm:$0xff]
        %v5525 = vld [vmem:[#allocation2 + $0x2f0] sm:$0xff]
        %v5526 = vld [vmem:[#allocation2 + $0x2f8] sm:$0xff]
        %v5527 = vld [vmem:[#allocation2 + $0x300] sm:$0xff]
        %v5528 = vld [vmem:[#allocation2 + $0x308] sm:$0xff]
        %v5529 = vld [vmem:[#allocation2 + $0x310] sm:$0xff]
        %v5530 = vld [vmem:[#allocation2 + $0x318] sm:$0xff]
        %v5531 = vld [vmem:[#allocation2 + $0x320] sm:$0xff]
        %v5532 = vld [vmem:[#allocation2 + $0x328] sm:$0xff]
        %v5533 = vld [vmem:[#allocation2 + $0x330] sm:$0xff]
        %v5534 = vld [vmem:[#allocation2 + $0x338] sm:$0xff]
        %v5535 = vld [vmem:[#allocation2 + $0x340] sm:$0xff]
        %v5536 = vld [vmem:[#allocation2 + $0x348] sm:$0xff]
        %v5537 = vld [vmem:[#allocation2 + $0x350] sm:$0xff]
        %v5538 = vld [vmem:[#allocation2 + $0x358] sm:$0xff]
        %v5539 = vld [vmem:[#allocation2 + $0x360] sm:$0xff]
        %v5540 = vld [vmem:[#allocation2 + $0x368] sm:$0xff]
        %v5541 = vld [vmem:[#allocation2 + $0x370] sm:$0xff]
        %v5542 = vld [vmem:[#allocation2 + $0x378] sm:$0xff]
        %v5543 = vld [vmem:[#allocation2 + $0x380] sm:$0xff]
        %v5544 = vld [vmem:[#allocation2 + $0x388] sm:$0xff]
        %v5545 = vld [vmem:[#allocation2 + $0x390] sm:$0xff]
        %v5546 = vld [vmem:[#allocation2 + $0x398] sm:$0xff]
        %v5547 = vld [vmem:[#allocation2 + $0x3a0] sm:$0xff]
        %v5548 = vld [vmem:[#allocation2 + $0x3a8] sm:$0xff]
        %v5549 = vld [vmem:[#allocation2 + $0x3b0] sm:$0xff]
        %v5550 = vld [vmem:[#allocation2 + $0x3b8] sm:$0xff]
        %v5551 = vld [vmem:[#allocation2 + $0x3c0] sm:$0xff]
        %v5552 = vld [vmem:[#allocation2 + $0x3c8] sm:$0xff]
        %v5553 = vld [vmem:[#allocation2 + $0x3d0] sm:$0xff]
        %v5554 = vld [vmem:[#allocation2 + $0x3d8] sm:$0xff]
        %v5555 = vld [vmem:[#allocation2 + $0x3e0] sm:$0xff]
        %v5556 = vld [vmem:[#allocation2 + $0x3e8] sm:$0xff]
        %v5557 = vld [vmem:[#allocation2 + $0x3f0] sm:$0xff]
        %v5558 = vld [vmem:[#allocation2 + $0x3f8] sm:$0xff]
        %v5559 = vld [vmem:[#allocation2 + $0x400] sm:$0xff]
        %v5560 = vld [vmem:[#allocation2 + $0x408] sm:$0xff]
        %v5561 = vld [vmem:[#allocation2 + $0x410] sm:$0xff]
        %v5562 = vld [vmem:[#allocation2 + $0x418] sm:$0xff]
        %v5563 = vld [vmem:[#allocation2 + $0x420] sm:$0xff]
        %v5564 = vld [vmem:[#allocation2 + $0x428] sm:$0xff]
        %v5565 = vld [vmem:[#allocation2 + $0x430] sm:$0xff]
        %v5566 = vld [vmem:[#allocation2 + $0x438] sm:$0xff]
        %v5567 = vld [vmem:[#allocation2 + $0x440] sm:$0xff]
        %v5568 = vld [vmem:[#allocation2 + $0x448] sm:$0xff]
        %v5569 = vld [vmem:[#allocation2 + $0x450] sm:$0xff]
        %v5570 = vld [vmem:[#allocation2 + $0x458] sm:$0xff]
        %v5571 = vld [vmem:[#allocation2 + $0x460] sm:$0xff]
        %v5572 = vld [vmem:[#allocation2 + $0x468] sm:$0xff]
        %v5573 = vld [vmem:[#allocation2 + $0x470] sm:$0xff]
        %v5574 = vld [vmem:[#allocation2 + $0x478] sm:$0xff]
        %v5575 = vld [vmem:[#allocation2 + $0x480] sm:$0xff]
        %v5576 = vld [vmem:[#allocation2 + $0x488] sm:$0xff]
        %v5577 = vld [vmem:[#allocation2 + $0x490] sm:$0xff]
        %v5578 = vld [vmem:[#allocation2 + $0x498] sm:$0xff]
        %v5579 = vld [vmem:[#allocation2 + $0x4a0] sm:$0xff]
        %v5580 = vld [vmem:[#allocation2 + $0x4a8] sm:$0xff]
        %v5581 = vld [vmem:[#allocation2 + $0x4b0] sm:$0xff]
        %v5582 = vld [vmem:[#allocation2 + $0x4b8] sm:$0xff]
        %v5583 = vld [vmem:[#allocation2 + $0x4c0] sm:$0xff]
        %v5584 = vld [vmem:[#allocation2 + $0x4c8] sm:$0xff]
        %v5585 = vld [vmem:[#allocation2 + $0x4d0] sm:$0xff]
        %v5586 = vld [vmem:[#allocation2 + $0x4d8] sm:$0xff]
        %v5587 = vld [vmem:[#allocation2 + $0x4e0] sm:$0xff]
        %v5588 = vld [vmem:[#allocation2 + $0x4e8] sm:$0xff]
        %v5589 = vld [vmem:[#allocation2 + $0x4f0] sm:$0xff]
        %v5590 = vld [vmem:[#allocation2 + $0x4f8] sm:$0xff]
        %v5591 = vld [vmem:[#allocation2 + $0x500] sm:$0xff]
        %v5592 = vld [vmem:[#allocation2 + $0x508] sm:$0xff]
        %v5593 = vld [vmem:[#allocation2 + $0x510] sm:$0xff]
        %v5594 = vld [vmem:[#allocation2 + $0x518] sm:$0xff]
        %v5595 = vld [vmem:[#allocation2 + $0x520] sm:$0xff]
        %v5596 = vld [vmem:[#allocation2 + $0x528] sm:$0xff]
        %v5597 = vld [vmem:[#allocation2 + $0x530] sm:$0xff]
        %v5598 = vld [vmem:[#allocation2 + $0x538] sm:$0xff]
        %v5599 = vld [vmem:[#allocation2 + $0x540] sm:$0xff]
        %v5600 = vld [vmem:[#allocation2 + $0x548] sm:$0xff]
        %v5601 = vld [vmem:[#allocation2 + $0x550] sm:$0xff]
        %v5602 = vld [vmem:[#allocation2 + $0x558] sm:$0xff]
        %v5603 = vld [vmem:[#allocation2 + $0x560] sm:$0xff]
        %v5604 = vld [vmem:[#allocation2 + $0x568] sm:$0xff]
        %v5605 = vld [vmem:[#allocation2 + $0x570] sm:$0xff]
        %v5606 = vld [vmem:[#allocation2 + $0x578] sm:$0xff]
        %v5607 = vld [vmem:[#allocation2 + $0x580] sm:$0xff]
        %v5608 = vld [vmem:[#allocation2 + $0x588] sm:$0xff]
        %v5609 = vld [vmem:[#allocation2 + $0x590] sm:$0xff]
        %v5610 = vld [vmem:[#allocation2 + $0x598] sm:$0xff]
        %v5611 = vld [vmem:[#allocation2 + $0x5a0] sm:$0xff]
        %v5612 = vld [vmem:[#allocation2 + $0x5a8] sm:$0xff]
        %v5613 = vld [vmem:[#allocation2 + $0x5b0] sm:$0xff]
        %v5614 = vld [vmem:[#allocation2 + $0x5b8] sm:$0xff]
        %v5615 = vld [vmem:[#allocation2 + $0x5c0] sm:$0xff]
        %v5616 = vld [vmem:[#allocation2 + $0x5c8] sm:$0xff]
        %v5617 = vld [vmem:[#allocation2 + $0x5d0] sm:$0xff]
        %v5618 = vld [vmem:[#allocation2 + $0x5d8] sm:$0xff]
        %v5619 = vld [vmem:[#allocation2 + $0x5e0] sm:$0xff]
        %v5620 = vld [vmem:[#allocation2 + $0x5e8] sm:$0xff]
        %v5621 = vld [vmem:[#allocation2 + $0x5f0] sm:$0xff]
        %v5622 = vld [vmem:[#allocation2 + $0x5f8] sm:$0xff]
        %v5623 = vld [vmem:[#allocation2 + $0x600] sm:$0xff]
        %v5624 = vld [vmem:[#allocation2 + $0x608] sm:$0xff]
        %v5625 = vld [vmem:[#allocation2 + $0x610] sm:$0xff]
        %v5626 = vld [vmem:[#allocation2 + $0x618] sm:$0xff]
        %v5627 = vld [vmem:[#allocation2 + $0x620] sm:$0xff]
        %v5628 = vld [vmem:[#allocation2 + $0x628] sm:$0xff]
        %v5629 = vld [vmem:[#allocation2 + $0x630] sm:$0xff]
        %v5630 = vld [vmem:[#allocation2 + $0x638] sm:$0xff]
        %v5631 = vld [vmem:[#allocation2 + $0x640] sm:$0xff]
        %v5632 = vld [vmem:[#allocation2 + $0x648] sm:$0xff]
        %v5633 = vld [vmem:[#allocation2 + $0x650] sm:$0xff]
        %v5634 = vld [vmem:[#allocation2 + $0x658] sm:$0xff]
        %v5635 = vld [vmem:[#allocation2 + $0x660] sm:$0xff]
        %v5636 = vld [vmem:[#allocation2 + $0x668] sm:$0xff]
        %v5637 = vld [vmem:[#allocation2 + $0x670] sm:$0xff]
        %v5638 = vld [vmem:[#allocation2 + $0x678] sm:$0xff]
        %v5639 = vld [vmem:[#allocation2 + $0x680] sm:$0xff]
        %v5640 = vld [vmem:[#allocation2 + $0x688] sm:$0xff]
        %v5641 = vld [vmem:[#allocation2 + $0x690] sm:$0xff]
        %v5642 = vld [vmem:[#allocation2 + $0x698] sm:$0xff]
        %v5643 = vld [vmem:[#allocation2 + $0x6a0] sm:$0xff]
        %v5644 = vld [vmem:[#allocation2 + $0x6a8] sm:$0xff]
        %v5645 = vld [vmem:[#allocation2 + $0x6b0] sm:$0xff]
        %v5646 = vld [vmem:[#allocation2 + $0x6b8] sm:$0xff]
        %v5647 = vld [vmem:[#allocation2 + $0x6c0] sm:$0xff]
        %v5648 = vld [vmem:[#allocation2 + $0x6c8] sm:$0xff]
        %v5649 = vld [vmem:[#allocation2 + $0x6d0] sm:$0xff]
        %v5650 = vld [vmem:[#allocation2 + $0x6d8] sm:$0xff]
        %v5651 = vld [vmem:[#allocation2 + $0x6e0] sm:$0xff]
        %v5652 = vld [vmem:[#allocation2 + $0x6e8] sm:$0xff]
        %v5653 = vld [vmem:[#allocation2 + $0x6f0] sm:$0xff]
        %v5654 = vld [vmem:[#allocation2 + $0x6f8] sm:$0xff]
        %v5655 = vld [vmem:[#allocation2 + $0x700] sm:$0xff]
        %v5656 = vld [vmem:[#allocation2 + $0x708] sm:$0xff]
        %v5657 = vld [vmem:[#allocation2 + $0x710] sm:$0xff]
        %v5658 = vld [vmem:[#allocation2 + $0x718] sm:$0xff]
        %v5659 = vld [vmem:[#allocation2 + $0x720] sm:$0xff]
        %v5660 = vld [vmem:[#allocation2 + $0x728] sm:$0xff]
        %v5661 = vld [vmem:[#allocation2 + $0x730] sm:$0xff]
        %v5662 = vld [vmem:[#allocation2 + $0x738] sm:$0xff]
        %v5663 = vld [vmem:[#allocation2 + $0x740] sm:$0xff]
        %v5664 = vld [vmem:[#allocation2 + $0x748] sm:$0xff]
        %v5665 = vld [vmem:[#allocation2 + $0x750] sm:$0xff]
        %v5666 = vld [vmem:[#allocation2 + $0x758] sm:$0xff]
        %v5667 = vld [vmem:[#allocation2 + $0x760] sm:$0xff]
        %v5668 = vld [vmem:[#allocation2 + $0x768] sm:$0xff]
        %v5669 = vld [vmem:[#allocation2 + $0x770] sm:$0xff]
        %v5670 = vld [vmem:[#allocation2 + $0x778] sm:$0xff]
        %v5671 = vld [vmem:[#allocation2 + $0x780] sm:$0xff]
        %v5672 = vld [vmem:[#allocation2 + $0x788] sm:$0xff]
        %v5673 = vld [vmem:[#allocation2 + $0x790] sm:$0xff]
        %v5674 = vld [vmem:[#allocation2 + $0x798] sm:$0xff]
        %v5675 = vld [vmem:[#allocation2 + $0x7a0] sm:$0xff]
        %v5676 = vld [vmem:[#allocation2 + $0x7a8] sm:$0xff]
        %v5677 = vld [vmem:[#allocation2 + $0x7b0] sm:$0xff]
        %v5678 = vld [vmem:[#allocation2 + $0x7b8] sm:$0xff]
        %v5679 = vld [vmem:[#allocation2 + $0x7c0] sm:$0xff]
        %v5680 = vld [vmem:[#allocation2 + $0x7c8] sm:$0xff]
        %v5681 = vld [vmem:[#allocation2 + $0x7d0] sm:$0xff]
        %v5682 = vld [vmem:[#allocation2 + $0x7d8] sm:$0xff]
        %v5683 = vld [vmem:[#allocation2 + $0x7e0] sm:$0xff]
        %v5684 = vld [vmem:[#allocation2 + $0x7e8] sm:$0xff]
        %v5685 = vld [vmem:[#allocation2 + $0x7f0] sm:$0xff]
        %v5686 = vld [vmem:[#allocation2 + $0x7f8] sm:$0xff]
        %v5687 = vadd.f32 %v5175, %v5431
        %v5688 = vadd.f32 %v5176, %v5432
        %v5689 = vadd.f32 %v5177, %v5433
        %v5690 = vadd.f32 %v5178, %v5434
        %v5691 = vadd.f32 %v5179, %v5435
        %v5692 = vadd.f32 %v5180, %v5436
        %v5693 = vadd.f32 %v5181, %v5437
        %v5694 = vadd.f32 %v5182, %v5438
        %v5695 = vadd.f32 %v5183, %v5439
        %v5696 = vadd.f32 %v5184, %v5440
        %v5697 = vadd.f32 %v5185, %v5441
        %v5698 = vadd.f32 %v5186, %v5442
        %v5699 = vadd.f32 %v5187, %v5443
        %v5700 = vadd.f32 %v5188, %v5444
        %v5701 = vadd.f32 %v5189, %v5445
        %v5702 = vadd.f32 %v5190, %v5446
        %v5703 = vadd.f32 %v5191, %v5447
        %v5704 = vadd.f32 %v5192, %v5448
        %v5705 = vadd.f32 %v5193, %v5449
        %v5706 = vadd.f32 %v5194, %v5450
        %v5707 = vadd.f32 %v5195, %v5451
        %v5708 = vadd.f32 %v5196, %v5452
        %v5709 = vadd.f32 %v5197, %v5453
        %v5710 = vadd.f32 %v5198, %v5454
        %v5711 = vadd.f32 %v5199, %v5455
        %v5712 = vadd.f32 %v5200, %v5456
        %v5713 = vadd.f32 %v5201, %v5457
        %v5714 = vadd.f32 %v5202, %v5458
        %v5715 = vadd.f32 %v5203, %v5459
        %v5716 = vadd.f32 %v5204, %v5460
        %v5717 = vadd.f32 %v5205, %v5461
        %v5718 = vadd.f32 %v5206, %v5462
        %v5719 = vadd.f32 %v5207, %v5463
        %v5720 = vadd.f32 %v5208, %v5464
        %v5721 = vadd.f32 %v5209, %v5465
        %v5722 = vadd.f32 %v5210, %v5466
        %v5723 = vadd.f32 %v5211, %v5467
        %v5724 = vadd.f32 %v5212, %v5468
        %v5725 = vadd.f32 %v5213, %v5469
        %v5726 = vadd.f32 %v5214, %v5470
        %v5727 = vadd.f32 %v5215, %v5471
        %v5728 = vadd.f32 %v5216, %v5472
        %v5729 = vadd.f32 %v5217, %v5473
        %v5730 = vadd.f32 %v5218, %v5474
        %v5731 = vadd.f32 %v5219, %v5475
        %v5732 = vadd.f32 %v5220, %v5476
        %v5733 = vadd.f32 %v5221, %v5477
        %v5734 = vadd.f32 %v5222, %v5478
        %v5735 = vadd.f32 %v5223, %v5479
        %v5736 = vadd.f32 %v5224, %v5480
        %v5737 = vadd.f32 %v5225, %v5481
        %v5738 = vadd.f32 %v5226, %v5482
        %v5739 = vadd.f32 %v5227, %v5483
        %v5740 = vadd.f32 %v5228, %v5484
        %v5741 = vadd.f32 %v5229, %v5485
        %v5742 = vadd.f32 %v5230, %v5486
        %v5743 = vadd.f32 %v5231, %v5487
        %v5744 = vadd.f32 %v5232, %v5488
        %v5745 = vadd.f32 %v5233, %v5489
        %v5746 = vadd.f32 %v5234, %v5490
        %v5747 = vadd.f32 %v5235, %v5491
        %v5748 = vadd.f32 %v5236, %v5492
        %v5749 = vadd.f32 %v5237, %v5493
        %v5750 = vadd.f32 %v5238, %v5494
        %v5751 = vadd.f32 %v5239, %v5495
        %v5752 = vadd.f32 %v5240, %v5496
        %v5753 = vadd.f32 %v5241, %v5497
        %v5754 = vadd.f32 %v5242, %v5498
        %v5755 = vadd.f32 %v5243, %v5499
        %v5756 = vadd.f32 %v5244, %v5500
        %v5757 = vadd.f32 %v5245, %v5501
        %v5758 = vadd.f32 %v5246, %v5502
        %v5759 = vadd.f32 %v5247, %v5503
        %v5760 = vadd.f32 %v5248, %v5504
        %v5761 = vadd.f32 %v5249, %v5505
        %v5762 = vadd.f32 %v5250, %v5506
        %v5763 = vadd.f32 %v5251, %v5507
        %v5764 = vadd.f32 %v5252, %v5508
        %v5765 = vadd.f32 %v5253, %v5509
        %v5766 = vadd.f32 %v5254, %v5510
        %v5767 = vadd.f32 %v5255, %v5511
        %v5768 = vadd.f32 %v5256, %v5512
        %v5769 = vadd.f32 %v5257, %v5513
        %v5770 = vadd.f32 %v5258, %v5514
        %v5771 = vadd.f32 %v5259, %v5515
        %v5772 = vadd.f32 %v5260, %v5516
        %v5773 = vadd.f32 %v5261, %v5517
        %v5774 = vadd.f32 %v5262, %v5518
        %v5775 = vadd.f32 %v5263, %v5519
        %v5776 = vadd.f32 %v5264, %v5520
        %v5777 = vadd.f32 %v5265, %v5521
        %v5778 = vadd.f32 %v5266, %v5522
        %v5779 = vadd.f32 %v5267, %v5523
        %v5780 = vadd.f32 %v5268, %v5524
        %v5781 = vadd.f32 %v5269, %v5525
        %v5782 = vadd.f32 %v5270, %v5526
        %v5783 = vadd.f32 %v5271, %v5527
        %v5784 = vadd.f32 %v5272, %v5528
        %v5785 = vadd.f32 %v5273, %v5529
        %v5786 = vadd.f32 %v5274, %v5530
        %v5787 = vadd.f32 %v5275, %v5531
        %v5788 = vadd.f32 %v5276, %v5532
        %v5789 = vadd.f32 %v5277, %v5533
        %v5790 = vadd.f32 %v5278, %v5534
        %v5791 = vadd.f32 %v5279, %v5535
        %v5792 = vadd.f32 %v5280, %v5536
        %v5793 = vadd.f32 %v5281, %v5537
        %v5794 = vadd.f32 %v5282, %v5538
        %v5795 = vadd.f32 %v5283, %v5539
        %v5796 = vadd.f32 %v5284, %v5540
        %v5797 = vadd.f32 %v5285, %v5541
        %v5798 = vadd.f32 %v5286, %v5542
        %v5799 = vadd.f32 %v5287, %v5543
        %v5800 = vadd.f32 %v5288, %v5544
        %v5801 = vadd.f32 %v5289, %v5545
        %v5802 = vadd.f32 %v5290, %v5546
        %v5803 = vadd.f32 %v5291, %v5547
        %v5804 = vadd.f32 %v5292, %v5548
        %v5805 = vadd.f32 %v5293, %v5549
        %v5806 = vadd.f32 %v5294, %v5550
        %v5807 = vadd.f32 %v5295, %v5551
        %v5808 = vadd.f32 %v5296, %v5552
        %v5809 = vadd.f32 %v5297, %v5553
        %v5810 = vadd.f32 %v5298, %v5554
        %v5811 = vadd.f32 %v5299, %v5555
        %v5812 = vadd.f32 %v5300, %v5556
        %v5813 = vadd.f32 %v5301, %v5557
        %v5814 = vadd.f32 %v5302, %v5558
        %v5815 = vadd.f32 %v5303, %v5559
        %v5816 = vadd.f32 %v5304, %v5560
        %v5817 = vadd.f32 %v5305, %v5561
        %v5818 = vadd.f32 %v5306, %v5562
        %v5819 = vadd.f32 %v5307, %v5563
        %v5820 = vadd.f32 %v5308, %v5564
        %v5821 = vadd.f32 %v5309, %v5565
        %v5822 = vadd.f32 %v5310, %v5566
        %v5823 = vadd.f32 %v5311, %v5567
        %v5824 = vadd.f32 %v5312, %v5568
        %v5825 = vadd.f32 %v5313, %v5569
        %v5826 = vadd.f32 %v5314, %v5570
        %v5827 = vadd.f32 %v5315, %v5571
        %v5828 = vadd.f32 %v5316, %v5572
        %v5829 = vadd.f32 %v5317, %v5573
        %v5830 = vadd.f32 %v5318, %v5574
        %v5831 = vadd.f32 %v5319, %v5575
        %v5832 = vadd.f32 %v5320, %v5576
        %v5833 = vadd.f32 %v5321, %v5577
        %v5834 = vadd.f32 %v5322, %v5578
        %v5835 = vadd.f32 %v5323, %v5579
        %v5836 = vadd.f32 %v5324, %v5580
        %v5837 = vadd.f32 %v5325, %v5581
        %v5838 = vadd.f32 %v5326, %v5582
        %v5839 = vadd.f32 %v5327, %v5583
        %v5840 = vadd.f32 %v5328, %v5584
        %v5841 = vadd.f32 %v5329, %v5585
        %v5842 = vadd.f32 %v5330, %v5586
        %v5843 = vadd.f32 %v5331, %v5587
        %v5844 = vadd.f32 %v5332, %v5588
        %v5845 = vadd.f32 %v5333, %v5589
        %v5846 = vadd.f32 %v5334, %v5590
        %v5847 = vadd.f32 %v5335, %v5591
        %v5848 = vadd.f32 %v5336, %v5592
        %v5849 = vadd.f32 %v5337, %v5593
        %v5850 = vadd.f32 %v5338, %v5594
        %v5851 = vadd.f32 %v5339, %v5595
        %v5852 = vadd.f32 %v5340, %v5596
        %v5853 = vadd.f32 %v5341, %v5597
        %v5854 = vadd.f32 %v5342, %v5598
        %v5855 = vadd.f32 %v5343, %v5599
        %v5856 = vadd.f32 %v5344, %v5600
        %v5857 = vadd.f32 %v5345, %v5601
        %v5858 = vadd.f32 %v5346, %v5602
        %v5859 = vadd.f32 %v5347, %v5603
        %v5860 = vadd.f32 %v5348, %v5604
        %v5861 = vadd.f32 %v5349, %v5605
        %v5862 = vadd.f32 %v5350, %v5606
        %v5863 = vadd.f32 %v5351, %v5607
        %v5864 = vadd.f32 %v5352, %v5608
        %v5865 = vadd.f32 %v5353, %v5609
        %v5866 = vadd.f32 %v5354, %v5610
        %v5867 = vadd.f32 %v5355, %v5611
        %v5868 = vadd.f32 %v5356, %v5612
        %v5869 = vadd.f32 %v5357, %v5613
        %v5870 = vadd.f32 %v5358, %v5614
        %v5871 = vadd.f32 %v5359, %v5615
        %v5872 = vadd.f32 %v5360, %v5616
        %v5873 = vadd.f32 %v5361, %v5617
        %v5874 = vadd.f32 %v5362, %v5618
        %v5875 = vadd.f32 %v5363, %v5619
        %v5876 = vadd.f32 %v5364, %v5620
        %v5877 = vadd.f32 %v5365, %v5621
        %v5878 = vadd.f32 %v5366, %v5622
        %v5879 = vadd.f32 %v5367, %v5623
        %v5880 = vadd.f32 %v5368, %v5624
        %v5881 = vadd.f32 %v5369, %v5625
        %v5882 = vadd.f32 %v5370, %v5626
        %v5883 = vadd.f32 %v5371, %v5627
        %v5884 = vadd.f32 %v5372, %v5628
        %v5885 = vadd.f32 %v5373, %v5629
        %v5886 = vadd.f32 %v5374, %v5630
        %v5887 = vadd.f32 %v5375, %v5631
        %v5888 = vadd.f32 %v5376, %v5632
        %v5889 = vadd.f32 %v5377, %v5633
        %v5890 = vadd.f32 %v5378, %v5634
        %v5891 = vadd.f32 %v5379, %v5635
        %v5892 = vadd.f32 %v5380, %v5636
        %v5893 = vadd.f32 %v5381, %v5637
        %v5894 = vadd.f32 %v5382, %v5638
        %v5895 = vadd.f32 %v5383, %v5639
        %v5896 = vadd.f32 %v5384, %v5640
        %v5897 = vadd.f32 %v5385, %v5641
        %v5898 = vadd.f32 %v5386, %v5642
        %v5899 = vadd.f32 %v5387, %v5643
        %v5900 = vadd.f32 %v5388, %v5644
        %v5901 = vadd.f32 %v5389, %v5645
        %v5902 = vadd.f32 %v5390, %v5646
        %v5903 = vadd.f32 %v5391, %v5647
        %v5904 = vadd.f32 %v5392, %v5648
        %v5905 = vadd.f32 %v5393, %v5649
        %v5906 = vadd.f32 %v5394, %v5650
        %v5907 = vadd.f32 %v5395, %v5651
        %v5908 = vadd.f32 %v5396, %v5652
        %v5909 = vadd.f32 %v5397, %v5653
        %v5910 = vadd.f32 %v5398, %v5654
        %v5911 = vadd.f32 %v5399, %v5655
        %v5912 = vadd.f32 %v5400, %v5656
        %v5913 = vadd.f32 %v5401, %v5657
        %v5914 = vadd.f32 %v5402, %v5658
        %v5915 = vadd.f32 %v5403, %v5659
        %v5916 = vadd.f32 %v5404, %v5660
        %v5917 = vadd.f32 %v5405, %v5661
        %v5918 = vadd.f32 %v5406, %v5662
        %v5919 = vadd.f32 %v5407, %v5663
        %v5920 = vadd.f32 %v5408, %v5664
        %v5921 = vadd.f32 %v5409, %v5665
        %v5922 = vadd.f32 %v5410, %v5666
        %v5923 = vadd.f32 %v5411, %v5667
        %v5924 = vadd.f32 %v5412, %v5668
        %v5925 = vadd.f32 %v5413, %v5669
        %v5926 = vadd.f32 %v5414, %v5670
        %v5927 = vadd.f32 %v5415, %v5671
        %v5928 = vadd.f32 %v5416, %v5672
        %v5929 = vadd.f32 %v5417, %v5673
        %v5930 = vadd.f32 %v5418, %v5674
        %v5931 = vadd.f32 %v5419, %v5675
        %v5932 = vadd.f32 %v5420, %v5676
        %v5933 = vadd.f32 %v5421, %v5677
        %v5934 = vadd.f32 %v5422, %v5678
        %v5935 = vadd.f32 %v5423, %v5679
        %v5936 = vadd.f32 %v5424, %v5680
        %v5937 = vadd.f32 %v5425, %v5681
        %v5938 = vadd.f32 %v5426, %v5682
        %v5939 = vadd.f32 %v5427, %v5683
        %v5940 = vadd.f32 %v5428, %v5684
        %v5941 = vadd.f32 %v5429, %v5685
        %v5942 = vadd.f32 %v5430, %v5686
        %5943 = vst [vmem:[%s218] sm:$0xff] %v5687
        %5944 = vst [vmem:[%s218 + $0x8] sm:$0xff] %v5688
        %5945 = vst [vmem:[%s218 + $0x10] sm:$0xff] %v5689
        %5946 = vst [vmem:[%s218 + $0x18] sm:$0xff] %v5690
        %5947 = vst [vmem:[%s218 + $0x20] sm:$0xff] %v5691
        %5948 = vst [vmem:[%s218 + $0x28] sm:$0xff] %v5692
        %5949 = vst [vmem:[%s218 + $0x30] sm:$0xff] %v5693
        %5950 = vst [vmem:[%s218 + $0x38] sm:$0xff] %v5694
        %5951 = vst [vmem:[%s218 + $0x40] sm:$0xff] %v5695
        %5952 = vst [vmem:[%s218 + $0x48] sm:$0xff] %v5696
        %5953 = vst [vmem:[%s218 + $0x50] sm:$0xff] %v5697
        %5954 = vst [vmem:[%s218 + $0x58] sm:$0xff] %v5698
        %5955 = vst [vmem:[%s218 + $0x60] sm:$0xff] %v5699
        %5956 = vst [vmem:[%s218 + $0x68] sm:$0xff] %v5700
        %5957 = vst [vmem:[%s218 + $0x70] sm:$0xff] %v5701
        %5958 = vst [vmem:[%s218 + $0x78] sm:$0xff] %v5702
        %5959 = vst [vmem:[%s218 + $0x80] sm:$0xff] %v5703
        %5960 = vst [vmem:[%s218 + $0x88] sm:$0xff] %v5704
        %5961 = vst [vmem:[%s218 + $0x90] sm:$0xff] %v5705
        %5962 = vst [vmem:[%s218 + $0x98] sm:$0xff] %v5706
        %5963 = vst [vmem:[%s218 + $0xa0] sm:$0xff] %v5707
        %5964 = vst [vmem:[%s218 + $0xa8] sm:$0xff] %v5708
        %5965 = vst [vmem:[%s218 + $0xb0] sm:$0xff] %v5709
        %5966 = vst [vmem:[%s218 + $0xb8] sm:$0xff] %v5710
        %5967 = vst [vmem:[%s218 + $0xc0] sm:$0xff] %v5711
        %5968 = vst [vmem:[%s218 + $0xc8] sm:$0xff] %v5712
        %5969 = vst [vmem:[%s218 + $0xd0] sm:$0xff] %v5713
        %5970 = vst [vmem:[%s218 + $0xd8] sm:$0xff] %v5714
        %5971 = vst [vmem:[%s218 + $0xe0] sm:$0xff] %v5715
        %5972 = vst [vmem:[%s218 + $0xe8] sm:$0xff] %v5716
        %5973 = vst [vmem:[%s218 + $0xf0] sm:$0xff] %v5717
        %5974 = vst [vmem:[%s218 + $0xf8] sm:$0xff] %v5718
        %5975 = vst [vmem:[%s218 + $0x100] sm:$0xff] %v5719
        %5976 = vst [vmem:[%s218 + $0x108] sm:$0xff] %v5720
        %5977 = vst [vmem:[%s218 + $0x110] sm:$0xff] %v5721
        %5978 = vst [vmem:[%s218 + $0x118] sm:$0xff] %v5722
        %5979 = vst [vmem:[%s218 + $0x120] sm:$0xff] %v5723
        %5980 = vst [vmem:[%s218 + $0x128] sm:$0xff] %v5724
        %5981 = vst [vmem:[%s218 + $0x130] sm:$0xff] %v5725
        %5982 = vst [vmem:[%s218 + $0x138] sm:$0xff] %v5726
        %5983 = vst [vmem:[%s218 + $0x140] sm:$0xff] %v5727
        %5984 = vst [vmem:[%s218 + $0x148] sm:$0xff] %v5728
        %5985 = vst [vmem:[%s218 + $0x150] sm:$0xff] %v5729
        %5986 = vst [vmem:[%s218 + $0x158] sm:$0xff] %v5730
        %5987 = vst [vmem:[%s218 + $0x160] sm:$0xff] %v5731
        %5988 = vst [vmem:[%s218 + $0x168] sm:$0xff] %v5732
        %5989 = vst [vmem:[%s218 + $0x170] sm:$0xff] %v5733
        %5990 = vst [vmem:[%s218 + $0x178] sm:$0xff] %v5734
        %5991 = vst [vmem:[%s218 + $0x180] sm:$0xff] %v5735
        %5992 = vst [vmem:[%s218 + $0x188] sm:$0xff] %v5736
        %5993 = vst [vmem:[%s218 + $0x190] sm:$0xff] %v5737
        %5994 = vst [vmem:[%s218 + $0x198] sm:$0xff] %v5738
        %5995 = vst [vmem:[%s218 + $0x1a0] sm:$0xff] %v5739
        %5996 = vst [vmem:[%s218 + $0x1a8] sm:$0xff] %v5740
        %5997 = vst [vmem:[%s218 + $0x1b0] sm:$0xff] %v5741
        %5998 = vst [vmem:[%s218 + $0x1b8] sm:$0xff] %v5742
        %5999 = vst [vmem:[%s218 + $0x1c0] sm:$0xff] %v5743
        %6000 = vst [vmem:[%s218 + $0x1c8] sm:$0xff] %v5744
        %6001 = vst [vmem:[%s218 + $0x1d0] sm:$0xff] %v5745
        %6002 = vst [vmem:[%s218 + $0x1d8] sm:$0xff] %v5746
        %6003 = vst [vmem:[%s218 + $0x1e0] sm:$0xff] %v5747
        %6004 = vst [vmem:[%s218 + $0x1e8] sm:$0xff] %v5748
        %6005 = vst [vmem:[%s218 + $0x1f0] sm:$0xff] %v5749
        %6006 = vst [vmem:[%s218 + $0x1f8] sm:$0xff] %v5750
        %6007 = vst [vmem:[%s218 + $0x200] sm:$0xff] %v5751
        %6008 = vst [vmem:[%s218 + $0x208] sm:$0xff] %v5752
        %6009 = vst [vmem:[%s218 + $0x210] sm:$0xff] %v5753
        %6010 = vst [vmem:[%s218 + $0x218] sm:$0xff] %v5754
        %6011 = vst [vmem:[%s218 + $0x220] sm:$0xff] %v5755
        %6012 = vst [vmem:[%s218 + $0x228] sm:$0xff] %v5756
        %6013 = vst [vmem:[%s218 + $0x230] sm:$0xff] %v5757
        %6014 = vst [vmem:[%s218 + $0x238] sm:$0xff] %v5758
        %6015 = vst [vmem:[%s218 + $0x240] sm:$0xff] %v5759
        %6016 = vst [vmem:[%s218 + $0x248] sm:$0xff] %v5760
        %6017 = vst [vmem:[%s218 + $0x250] sm:$0xff] %v5761
        %6018 = vst [vmem:[%s218 + $0x258] sm:$0xff] %v5762
        %6019 = vst [vmem:[%s218 + $0x260] sm:$0xff] %v5763
        %6020 = vst [vmem:[%s218 + $0x268] sm:$0xff] %v5764
        %6021 = vst [vmem:[%s218 + $0x270] sm:$0xff] %v5765
        %6022 = vst [vmem:[%s218 + $0x278] sm:$0xff] %v5766
        %6023 = vst [vmem:[%s218 + $0x280] sm:$0xff] %v5767
        %6024 = vst [vmem:[%s218 + $0x288] sm:$0xff] %v5768
        %6025 = vst [vmem:[%s218 + $0x290] sm:$0xff] %v5769
        %6026 = vst [vmem:[%s218 + $0x298] sm:$0xff] %v5770
        %6027 = vst [vmem:[%s218 + $0x2a0] sm:$0xff] %v5771
        %6028 = vst [vmem:[%s218 + $0x2a8] sm:$0xff] %v5772
        %6029 = vst [vmem:[%s218 + $0x2b0] sm:$0xff] %v5773
        %6030 = vst [vmem:[%s218 + $0x2b8] sm:$0xff] %v5774
        %6031 = vst [vmem:[%s218 + $0x2c0] sm:$0xff] %v5775
        %6032 = vst [vmem:[%s218 + $0x2c8] sm:$0xff] %v5776
        %6033 = vst [vmem:[%s218 + $0x2d0] sm:$0xff] %v5777
        %6034 = vst [vmem:[%s218 + $0x2d8] sm:$0xff] %v5778
        %6035 = vst [vmem:[%s218 + $0x2e0] sm:$0xff] %v5779
        %6036 = vst [vmem:[%s218 + $0x2e8] sm:$0xff] %v5780
        %6037 = vst [vmem:[%s218 + $0x2f0] sm:$0xff] %v5781
        %6038 = vst [vmem:[%s218 + $0x2f8] sm:$0xff] %v5782
        %6039 = vst [vmem:[%s218 + $0x300] sm:$0xff] %v5783
        %6040 = vst [vmem:[%s218 + $0x308] sm:$0xff] %v5784
        %6041 = vst [vmem:[%s218 + $0x310] sm:$0xff] %v5785
        %6042 = vst [vmem:[%s218 + $0x318] sm:$0xff] %v5786
        %6043 = vst [vmem:[%s218 + $0x320] sm:$0xff] %v5787
        %6044 = vst [vmem:[%s218 + $0x328] sm:$0xff] %v5788
        %6045 = vst [vmem:[%s218 + $0x330] sm:$0xff] %v5789
        %6046 = vst [vmem:[%s218 + $0x338] sm:$0xff] %v5790
        %6047 = vst [vmem:[%s218 + $0x340] sm:$0xff] %v5791
        %6048 = vst [vmem:[%s218 + $0x348] sm:$0xff] %v5792
        %6049 = vst [vmem:[%s218 + $0x350] sm:$0xff] %v5793
        %6050 = vst [vmem:[%s218 + $0x358] sm:$0xff] %v5794
        %6051 = vst [vmem:[%s218 + $0x360] sm:$0xff] %v5795
        %6052 = vst [vmem:[%s218 + $0x368] sm:$0xff] %v5796
        %6053 = vst [vmem:[%s218 + $0x370] sm:$0xff] %v5797
        %6054 = vst [vmem:[%s218 + $0x378] sm:$0xff] %v5798
        %6055 = vst [vmem:[%s218 + $0x380] sm:$0xff] %v5799
        %6056 = vst [vmem:[%s218 + $0x388] sm:$0xff] %v5800
        %6057 = vst [vmem:[%s218 + $0x390] sm:$0xff] %v5801
        %6058 = vst [vmem:[%s218 + $0x398] sm:$0xff] %v5802
        %6059 = vst [vmem:[%s218 + $0x3a0] sm:$0xff] %v5803
        %6060 = vst [vmem:[%s218 + $0x3a8] sm:$0xff] %v5804
        %6061 = vst [vmem:[%s218 + $0x3b0] sm:$0xff] %v5805
        %6062 = vst [vmem:[%s218 + $0x3b8] sm:$0xff] %v5806
        %6063 = vst [vmem:[%s218 + $0x3c0] sm:$0xff] %v5807
        %6064 = vst [vmem:[%s218 + $0x3c8] sm:$0xff] %v5808
        %6065 = vst [vmem:[%s218 + $0x3d0] sm:$0xff] %v5809
        %6066 = vst [vmem:[%s218 + $0x3d8] sm:$0xff] %v5810
        %6067 = vst [vmem:[%s218 + $0x3e0] sm:$0xff] %v5811
        %6068 = vst [vmem:[%s218 + $0x3e8] sm:$0xff] %v5812
        %6069 = vst [vmem:[%s218 + $0x3f0] sm:$0xff] %v5813
        %6070 = vst [vmem:[%s218 + $0x3f8] sm:$0xff] %v5814
        %6071 = vst [vmem:[%s218 + $0x400] sm:$0xff] %v5815
        %6072 = vst [vmem:[%s218 + $0x408] sm:$0xff] %v5816
        %6073 = vst [vmem:[%s218 + $0x410] sm:$0xff] %v5817
        %6074 = vst [vmem:[%s218 + $0x418] sm:$0xff] %v5818
        %6075 = vst [vmem:[%s218 + $0x420] sm:$0xff] %v5819
        %6076 = vst [vmem:[%s218 + $0x428] sm:$0xff] %v5820
        %6077 = vst [vmem:[%s218 + $0x430] sm:$0xff] %v5821
        %6078 = vst [vmem:[%s218 + $0x438] sm:$0xff] %v5822
        %6079 = vst [vmem:[%s218 + $0x440] sm:$0xff] %v5823
        %6080 = vst [vmem:[%s218 + $0x448] sm:$0xff] %v5824
        %6081 = vst [vmem:[%s218 + $0x450] sm:$0xff] %v5825
        %6082 = vst [vmem:[%s218 + $0x458] sm:$0xff] %v5826
        %6083 = vst [vmem:[%s218 + $0x460] sm:$0xff] %v5827
        %6084 = vst [vmem:[%s218 + $0x468] sm:$0xff] %v5828
        %6085 = vst [vmem:[%s218 + $0x470] sm:$0xff] %v5829
        %6086 = vst [vmem:[%s218 + $0x478] sm:$0xff] %v5830
        %6087 = vst [vmem:[%s218 + $0x480] sm:$0xff] %v5831
        %6088 = vst [vmem:[%s218 + $0x488] sm:$0xff] %v5832
        %6089 = vst [vmem:[%s218 + $0x490] sm:$0xff] %v5833
        %6090 = vst [vmem:[%s218 + $0x498] sm:$0xff] %v5834
        %6091 = vst [vmem:[%s218 + $0x4a0] sm:$0xff] %v5835
        %6092 = vst [vmem:[%s218 + $0x4a8] sm:$0xff] %v5836
        %6093 = vst [vmem:[%s218 + $0x4b0] sm:$0xff] %v5837
        %6094 = vst [vmem:[%s218 + $0x4b8] sm:$0xff] %v5838
        %6095 = vst [vmem:[%s218 + $0x4c0] sm:$0xff] %v5839
        %6096 = vst [vmem:[%s218 + $0x4c8] sm:$0xff] %v5840
        %6097 = vst [vmem:[%s218 + $0x4d0] sm:$0xff] %v5841
        %6098 = vst [vmem:[%s218 + $0x4d8] sm:$0xff] %v5842
        %6099 = vst [vmem:[%s218 + $0x4e0] sm:$0xff] %v5843
        %6100 = vst [vmem:[%s218 + $0x4e8] sm:$0xff] %v5844
        %6101 = vst [vmem:[%s218 + $0x4f0] sm:$0xff] %v5845
        %6102 = vst [vmem:[%s218 + $0x4f8] sm:$0xff] %v5846
        %6103 = vst [vmem:[%s218 + $0x500] sm:$0xff] %v5847
        %6104 = vst [vmem:[%s218 + $0x508] sm:$0xff] %v5848
        %6105 = vst [vmem:[%s218 + $0x510] sm:$0xff] %v5849
        %6106 = vst [vmem:[%s218 + $0x518] sm:$0xff] %v5850
        %6107 = vst [vmem:[%s218 + $0x520] sm:$0xff] %v5851
        %6108 = vst [vmem:[%s218 + $0x528] sm:$0xff] %v5852
        %6109 = vst [vmem:[%s218 + $0x530] sm:$0xff] %v5853
        %6110 = vst [vmem:[%s218 + $0x538] sm:$0xff] %v5854
        %6111 = vst [vmem:[%s218 + $0x540] sm:$0xff] %v5855
        %6112 = vst [vmem:[%s218 + $0x548] sm:$0xff] %v5856
        %6113 = vst [vmem:[%s218 + $0x550] sm:$0xff] %v5857
        %6114 = vst [vmem:[%s218 + $0x558] sm:$0xff] %v5858
        %6115 = vst [vmem:[%s218 + $0x560] sm:$0xff] %v5859
        %6116 = vst [vmem:[%s218 + $0x568] sm:$0xff] %v5860
        %6117 = vst [vmem:[%s218 + $0x570] sm:$0xff] %v5861
        %6118 = vst [vmem:[%s218 + $0x578] sm:$0xff] %v5862
        %6119 = vst [vmem:[%s218 + $0x580] sm:$0xff] %v5863
        %6120 = vst [vmem:[%s218 + $0x588] sm:$0xff] %v5864
        %6121 = vst [vmem:[%s218 + $0x590] sm:$0xff] %v5865
        %6122 = vst [vmem:[%s218 + $0x598] sm:$0xff] %v5866
        %6123 = vst [vmem:[%s218 + $0x5a0] sm:$0xff] %v5867
        %6124 = vst [vmem:[%s218 + $0x5a8] sm:$0xff] %v5868
        %6125 = vst [vmem:[%s218 + $0x5b0] sm:$0xff] %v5869
        %6126 = vst [vmem:[%s218 + $0x5b8] sm:$0xff] %v5870
        %6127 = vst [vmem:[%s218 + $0x5c0] sm:$0xff] %v5871
        %6128 = vst [vmem:[%s218 + $0x5c8] sm:$0xff] %v5872
        %6129 = vst [vmem:[%s218 + $0x5d0] sm:$0xff] %v5873
        %6130 = vst [vmem:[%s218 + $0x5d8] sm:$0xff] %v5874
        %6131 = vst [vmem:[%s218 + $0x5e0] sm:$0xff] %v5875
        %6132 = vst [vmem:[%s218 + $0x5e8] sm:$0xff] %v5876
        %6133 = vst [vmem:[%s218 + $0x5f0] sm:$0xff] %v5877
        %6134 = vst [vmem:[%s218 + $0x5f8] sm:$0xff] %v5878
        %6135 = vst [vmem:[%s218 + $0x600] sm:$0xff] %v5879
        %6136 = vst [vmem:[%s218 + $0x608] sm:$0xff] %v5880
        %6137 = vst [vmem:[%s218 + $0x610] sm:$0xff] %v5881
        %6138 = vst [vmem:[%s218 + $0x618] sm:$0xff] %v5882
        %6139 = vst [vmem:[%s218 + $0x620] sm:$0xff] %v5883
        %6140 = vst [vmem:[%s218 + $0x628] sm:$0xff] %v5884
        %6141 = vst [vmem:[%s218 + $0x630] sm:$0xff] %v5885
        %6142 = vst [vmem:[%s218 + $0x638] sm:$0xff] %v5886
        %6143 = vst [vmem:[%s218 + $0x640] sm:$0xff] %v5887
        %6144 = vst [vmem:[%s218 + $0x648] sm:$0xff] %v5888
        %6145 = vst [vmem:[%s218 + $0x650] sm:$0xff] %v5889
        %6146 = vst [vmem:[%s218 + $0x658] sm:$0xff] %v5890
        %6147 = vst [vmem:[%s218 + $0x660] sm:$0xff] %v5891
        %6148 = vst [vmem:[%s218 + $0x668] sm:$0xff] %v5892
        %6149 = vst [vmem:[%s218 + $0x670] sm:$0xff] %v5893
        %6150 = vst [vmem:[%s218 + $0x678] sm:$0xff] %v5894
        %6151 = vst [vmem:[%s218 + $0x680] sm:$0xff] %v5895
        %6152 = vst [vmem:[%s218 + $0x688] sm:$0xff] %v5896
        %6153 = vst [vmem:[%s218 + $0x690] sm:$0xff] %v5897
        %6154 = vst [vmem:[%s218 + $0x698] sm:$0xff] %v5898
        %6155 = vst [vmem:[%s218 + $0x6a0] sm:$0xff] %v5899
        %6156 = vst [vmem:[%s218 + $0x6a8] sm:$0xff] %v5900
        %6157 = vst [vmem:[%s218 + $0x6b0] sm:$0xff] %v5901
        %6158 = vst [vmem:[%s218 + $0x6b8] sm:$0xff] %v5902
        %6159 = vst [vmem:[%s218 + $0x6c0] sm:$0xff] %v5903
        %6160 = vst [vmem:[%s218 + $0x6c8] sm:$0xff] %v5904
        %6161 = vst [vmem:[%s218 + $0x6d0] sm:$0xff] %v5905
        %6162 = vst [vmem:[%s218 + $0x6d8] sm:$0xff] %v5906
        %6163 = vst [vmem:[%s218 + $0x6e0] sm:$0xff] %v5907
        %6164 = vst [vmem:[%s218 + $0x6e8] sm:$0xff] %v5908
        %6165 = vst [vmem:[%s218 + $0x6f0] sm:$0xff] %v5909
        %6166 = vst [vmem:[%s218 + $0x6f8] sm:$0xff] %v5910
        %6167 = vst [vmem:[%s218 + $0x700] sm:$0xff] %v5911
        %6168 = vst [vmem:[%s218 + $0x708] sm:$0xff] %v5912
        %6169 = vst [vmem:[%s218 + $0x710] sm:$0xff] %v5913
        %6170 = vst [vmem:[%s218 + $0x718] sm:$0xff] %v5914
        %6171 = vst [vmem:[%s218 + $0x720] sm:$0xff] %v5915
        %6172 = vst [vmem:[%s218 + $0x728] sm:$0xff] %v5916
        %6173 = vst [vmem:[%s218 + $0x730] sm:$0xff] %v5917
        %6174 = vst [vmem:[%s218 + $0x738] sm:$0xff] %v5918
        %6175 = vst [vmem:[%s218 + $0x740] sm:$0xff] %v5919
        %6176 = vst [vmem:[%s218 + $0x748] sm:$0xff] %v5920
        %6177 = vst [vmem:[%s218 + $0x750] sm:$0xff] %v5921
        %6178 = vst [vmem:[%s218 + $0x758] sm:$0xff] %v5922
        %6179 = vst [vmem:[%s218 + $0x760] sm:$0xff] %v5923
        %6180 = vst [vmem:[%s218 + $0x768] sm:$0xff] %v5924
        %6181 = vst [vmem:[%s218 + $0x770] sm:$0xff] %v5925
        %6182 = vst [vmem:[%s218 + $0x778] sm:$0xff] %v5926
        %6183 = vst [vmem:[%s218 + $0x780] sm:$0xff] %v5927
        %6184 = vst [vmem:[%s218 + $0x788] sm:$0xff] %v5928
        %6185 = vst [vmem:[%s218 + $0x790] sm:$0xff] %v5929
        %6186 = vst [vmem:[%s218 + $0x798] sm:$0xff] %v5930
        %6187 = vst [vmem:[%s218 + $0x7a0] sm:$0xff] %v5931
        %6188 = vst [vmem:[%s218 + $0x7a8] sm:$0xff] %v5932
        %6189 = vst [vmem:[%s218 + $0x7b0] sm:$0xff] %v5933
        %6190 = vst [vmem:[%s218 + $0x7b8] sm:$0xff] %v5934
        %6191 = vst [vmem:[%s218 + $0x7c0] sm:$0xff] %v5935
        %6192 = vst [vmem:[%s218 + $0x7c8] sm:$0xff] %v5936
        %6193 = vst [vmem:[%s218 + $0x7d0] sm:$0xff] %v5937
        %6194 = vst [vmem:[%s218 + $0x7d8] sm:$0xff] %v5938
        %6195 = vst [vmem:[%s218 + $0x7e0] sm:$0xff] %v5939
        %6196 = vst [vmem:[%s218 + $0x7e8] sm:$0xff] %v5940
        %6197 = vst [vmem:[%s218 + $0x7f0] sm:$0xff] %v5941
        %6198 = vst [vmem:[%s218 + $0x7f8] sm:$0xff] %v5942
        %s6199 = sand.u32 %s101, 1
        %s6200 = scalar_lea.sflag [#allocation5], %s6199
        %s6201 = sand.u32 %s101, 1
        %s6202 = smul.addr %s6201, 2048
        %s6203 = scalar_lea.vmem [#allocation6], %s6202
        // Predicated region
        $region44: #{tpu_custom_call.1} parent=27 // pred_check
          %p6204 = pneg %p111
        $region45: #{tpu_custom_call.1} parent=27 // pred_check_branch
          %6206 = sbr.rel (%p6204) target = $region47
        $region46: #{tpu_custom_call.1} parent=27 // pred_region
          #allocation10 [shape = 'u32[6]{0}', space=smem, size = 0x18, scoped, tag = 'DMA stride descriptor']
          %s6207 = smul.u32 16, %s24
          %s6208 = smul.u32 2, %s25
          %s6210 = ssub.s32 32768, 32768
          %6211 = vsyncadd %s6200, %s6210
          %s6212 = smul.addr %s6207, 2
          %s6213 = sadd.s32 %s6208, %s6212
          %s6214 = smul.addr %s26, 512
          %s6215 = sadd.s32 %s6213, %s6214
          %s6216 = smul.addr %s6215, 128
          %s6217 = scalar_lea.hbm %s2, %s6216
          %s6219 = sshll.u32 1, 14
          %s6220 = sxor.u32 4294967295, %s6219
          %s6223 = sshll.u32 7, 18
          %s6224 = sxor.u32 4294967295, %s6223
          %s6225 = sand.u32 0, %s6224
          %s6227 = sor.u32 %s6225, 0
          %s6229 = sshll.u32 3, 24
          %s6230 = sxor.u32 4294967295, %s6229
          %s6231 = sand.u32 %s6227, %s6230
          %s6233 = sor.u32 %s6231, 0
          %s6234 = sshll.u32 %s6203, 4
          %s6235 = int_to_ptr.vmem [resolvable:$true] %s6234
          %6241 = sst [smem:[#allocation10]] 4096
          %s6242 = scalar_lea.smem [#allocation10], 1
          %6243 = sst [smem:[%s6242]] 8192
          %s6244 = scalar_lea.smem [#allocation10], 2
          %6245 = sst [smem:[%s6244]] 16
          %s6246 = scalar_lea.smem [#allocation10], 3
          %6247 = sst [smem:[%s6246]] 256
          %s6248 = scalar_lea.smem [#allocation10], 4
          %6249 = sst [smem:[%s6248]] 256
          %s6250 = scalar_lea.smem [#allocation10], 5
          %6251 = sst [smem:[%s6250]] 16
          %6253 = dma.general %s6235, 32768, %s6217, %s6200, [#allocation9], [#allocation10], %s6233, 0
        $region47: #{tpu_custom_call.1} parent=27 // pred_fallthru
          _
      $region28: #{tpu_custom_call.1} parent=5 // pred_fallthru
        _
      %p6254 = scmp.le.s32.totalorder 2, %s14
      // Predicated region
      $region48: #{tpu_custom_call.1} parent=5 // pred_check
        %p6255 = pneg %p6254
      $region49: #{tpu_custom_call.1} parent=5 // pred_check_branch
        %6257 = sbr.rel (%p6255) target = $region51
      $region50: #{tpu_custom_call.1} parent=5 // pred_region
        %s6258 = ssub.s32 %s14, 2
        // Predicated region
        $region52: #{tpu_custom_call.1} parent=50 // pred_check
          %p6259 = pneg %p117
        $region53: #{tpu_custom_call.1} parent=50 // pred_check_branch
          %6261 = sbr.rel (%p6259) target = $region55
        $region54: #{tpu_custom_call.1} parent=50 // pred_region
          %s6262 = sand.u32 %s102, 1
          %s6263 = scalar_lea.sflag [#allocation5], %s6262
          %s6264 = sand.u32 %s102, 1
          %s6265 = smul.addr %s6264, 2048
          %s6266 = scalar_lea.vmem [#allocation6], %s6265
          %6267 = dma.done %s6263, 32768
        $region55: #{tpu_custom_call.1} parent=50 // pred_fallthru
          _
      $region51: #{tpu_custom_call.1} parent=5 // pred_fallthru
        _
    $region6: #{tpu_custom_call.1} parent=1 // loop_footer
      %s18 = sadd.s32 1, %s14
    $region7: #{tpu_custom_call.1} parent=1 // loop_footer_branch
      %13 = sbr.rel target = $region3
    $region8: #{tpu_custom_call.1} parent=1 // loop_exit
      _
    %6268 = vsyncpa [#allocation4], 1
    %s6269 = scalar_lea.sflag [#allocation4], 1
    %6270 = vsyncpa %s6269, 1
    %6271 = vsyncpa [#allocation5], 1
    %s6272 = scalar_lea.sflag [#allocation5], 1
    %6273 = vsyncpa %s6272, 1

</llo_original>
